<compile_context>
chip_gen: v6e
topology: v6e:2x2x1
jax: 0.10.0
libtpu: 0.0.40
codegen_flags: <defaults>
</compile_context>

<pallas_src>
import jax
import jax.numpy as jnp
import numpy as np
from jax.experimental import pallas as pl
from jax.experimental.pallas import tpu as pltpu

B = 2
C_IN = 20            # channels out of the complex front-end
H_IN = 25            # calc_next(128, (5, 1), 5, 20) spatial height
NUM_CLASSES = 11
LANES = 128
EPS = 1e-5


# ----------------------------- static slab layout -----------------------------
_W_BLOCKS = (
    [(f"conv1_t{t}", 20, 30) for t in range(5)]
    + [("id1", 30, 40), ("r1_wa", 30, 10)]
    + [(f"r1_wb_t{t}", 10, 10) for t in range(3)]
    + [("r1_wc", 10, 40)]
    + [(f"conv2_t{t}", 40, 50) for t in range(5)]
    + [("id2", 50, 60), ("r2_wa", 50, 15)]
    + [(f"r2_wb_t{t}", 15, 15) for t in range(3)]
    + [("r2_wc", 15, 60)]
    + [(f"conv3_t{t}", 60, 80) for t in range(3)]
    + [("lin2", 80, 40), ("lin3", 40, 11)]
)
_W_IDX = {name: i for i, (name, _, _) in enumerate(_W_BLOCKS)}
_N_W = len(_W_BLOCKS)                           # 27

_V_NAMES = ["conv1_b", "bn1_s", "bn1_h", "id1_b",
            "r1a_s", "r1a_h", "r1b_s", "r1b_h", "r1c_s", "r1c_h",
            "conv2_b", "bn2_s", "bn2_h", "id2_b",
            "r2a_s", "r2a_h", "r2b_s", "r2b_h", "r2c_s", "r2c_h",
            "conv3_b", "bn3_s", "bn3_h", "lin2_b", "lin3_b"]
_V_IDX = {n: i for i, n in enumerate(_V_NAMES)}
_V_ROWS = 32                                    # 25 used rows, padded to 8-mult


# ---------------------------------- kernel -----------------------------------
def manifoldnet_res_kernel(x_ref, w_ref, v_ref, out_ref):
    f32 = jnp.float32

    def vrow(name):
        i = _V_IDX[name]
        return v_ref[i:i + 1, :]                               # [1, 128]

    def wmat(name):
        return w_ref[_W_IDX[name]]                             # [128, 128]

    def mm(x, name):
        return jnp.dot(x, wmat(name), preferred_element_type=f32)

    def conv_full(x, base, k):
        # Valid conv along the stacked row axis (sample boundaries handled by
        # the caller via extract()).  Accumulator starts from tap 0's dot.
        mo = x.shape[0] - k + 1
        acc = jnp.dot(x[0:mo, :], wmat(f"{base}_t0"),
                      preferred_element_type=f32)
        for t in range(1, k):
            acc = acc + jnp.dot(x[t:t + mo, :], wmat(f"{base}_t{t}"),
                                preferred_element_type=f32)
        return acc

    def extract(y, h_in, h_out):
        # keep per-sample valid rows [b*h_in, b*h_in + h_out)
        return jnp.concatenate(
            [y[b * h_in:b * h_in + h_out, :] for b in range(B)], axis=0)

    def bn(x, s, h):
        return x * vrow(s) + vrow(h)

    def relu(x):
        return jnp.maximum(x, 0.0)

    def maxpool2(x, hr):
        # per-sample MaxPool2d((2,1)) with floor, as two selection matmuls
        hp = hr // 2
        pp, rr = B * hp, B * hr
        r = jax.lax.broadcasted_iota(jnp.int32, (pp, rr), 0)
        c = jax.lax.broadcasted_iota(jnp.int32, (pp, rr), 1)
        samp = jnp.zeros((pp, rr), jnp.int32)
        for b in range(1, B):
            samp = samp + (r >= b * hp).astype(jnp.int32)
        src = 2 * (r - samp * hp) + samp * hr
        sel_even = (c == src).astype(f32)
        sel_odd = (c == src + 1).astype(f32)
        return jnp.maximum(
            jnp.dot(sel_even, x, preferred_element_type=f32),
            jnp.dot(sel_odd, x, preferred_element_type=f32))

    def res_block(x, hr, p):
        # BN-ReLU-Conv1x1 / BN-ReLU-Conv(3,1)pad(1,0) / BN-ReLU-Conv1x1
        r = mm(relu(bn(x, p + "a_s", p + "a_h")), p + "_wa")
        r = relu(bn(r, p + "b_s", p + "b_h"))
        z = jnp.zeros((1, LANES), f32)
        pieces = []
        for b in range(B):
            pieces += [z, r[b * hr:(b + 1) * hr, :], z]
        rp = jnp.concatenate(pieces, axis=0)                   # [B*(hr+2), 128]
        r = extract(conv_full(rp, p + "_wb", 3), hr + 2, hr)
        r = mm(relu(bn(r, p + "c_s", p + "c_h")), p + "_wc")
        return r

    # TODO(synk): complex front-end (ComplexConv2Deffangle4Dxy / ReLU4Dsp /
    # SURE_pure4D) has no available source; kernel starts from the post-SURE
    # activation (losses=None -> res_loss = 0 handled on the host).
    x = relu(x_ref[...])                                       # [B*25, 128]

    x = extract(conv_full(x, "conv1", 5), H_IN, 21) + vrow("conv1_b")  # [B*21,128]
    x = relu(bn(x, "bn1_s", "bn1_h"))
    x = mm(x, "id1") + vrow("id1_b") + res_block(x, 21, "r1")
    x = maxpool2(x, 21)                                        # [B*10, 128]

    x = extract(conv_full(x, "conv2", 5), 10, 6) + vrow("conv2_b")     # [B*6, 128]
    x = relu(bn(x, "bn2_s", "bn2_h"))
    x = mm(x, "id2") + vrow("id2_b") + res_block(x, 6, "r2")
    x = maxpool2(x, 6)                                         # [B*3, 128]

    x = extract(conv_full(x, "conv3", 3), 3, 1) + vrow("conv3_b")      # [B, 128]
    x = relu(bn(x, "bn3_s", "bn3_h"))

    y = relu(mm(x, "lin2") + vrow("lin2_b"))
    # dropout(p=0.5): inference-mode identity
    y = mm(y, "lin3") + vrow("lin3_b")
    out_ref[...] = y                                           # [B, 128] lane-dense


# ------------------------------ host-side glue --------------------------------
@jax.jit
def manifoldnet_res_forward(x_nchw, w_slab, v_slab):
    """x_nchw: post-SURE activation, PyTorch NCHW layout [B, 20, 25, 1]."""
    bx, c, h, w = x_nchw.shape
    assert (bx, c, h, w) == (B, C_IN, H_IN, 1)
    x = jnp.transpose(x_nchw[..., 0], (0, 2, 1)).astype(jnp.float32)   # [B, H, C]
    x = x.reshape(B * H_IN, C_IN)
    x = jnp.pad(x, ((0, 0), (0, LANES - C_IN)))                        # [B*H, 128]

    out = pl.pallas_call(
        manifoldnet_res_kernel,
        out_shape=jax.ShapeDtypeStruct((B, LANES), jnp.float32),
        grid=(1,),
        in_specs=[pl.BlockSpec((B * H_IN, LANES), lambda i: (0, 0)),
                  pl.BlockSpec((_N_W, LANES, LANES), lambda i: (0, 0, 0)),
                  pl.BlockSpec((_V_ROWS, LANES), lambda i: (0, 0))],
        out_specs=pl.BlockSpec((B, LANES), lambda i: (0, 0)),
        compiler_params=pltpu.CompilerParams(
            dimension_semantics=("arbitrary",)),
    )(x, w_slab, v_slab)

    logits = out[:, :NUM_CLASSES]                              # [B, 11]
    # labels=None -> SURE losses=None -> res_loss = 0 (loss_weight**2 unused)
    res_loss = jnp.float32(0.0)
    return logits, res_loss


# ----------------------------- parameter handling -----------------------------
def init_raw_params(key):
    keys = iter(jax.random.split(key, 64))

    def w(shape, scale=0.1):
        return scale * jax.random.normal(next(keys), shape, jnp.float32)

    def bn_fold(c):
        gamma = 1.0 + 0.1 * jax.random.normal(next(keys), (c,), jnp.float32)
        beta = 0.1 * jax.random.normal(next(keys), (c,), jnp.float32)
        mean = 0.1 * jax.random.normal(next(keys), (c,), jnp.float32)
        var = jax.random.uniform(next(keys), (c,), jnp.float32, 0.5, 1.5)
        s = gamma * jax.lax.rsqrt(var + EPS)
        return s, beta - mean * s

    raw = {}
    raw["conv1_w"], raw["conv1_b"] = w((5, 20, 30)), w((30,))
    raw["bn1_s"], raw["bn1_h"] = bn_fold(30)
    raw["id1_w"], raw["id1_b"] = w((30, 40)), w((40,))
    raw["r1a_s"], raw["r1a_h"] = bn_fold(30)
    raw["r1_wa"] = w((30, 10))
    raw["r1b_s"], raw["r1b_h"] = bn_fold(10)
    raw["r1_wb"] = w((3, 10, 10))
    raw["r1c_s"], raw["r1c_h"] = bn_fold(10)
    raw["r1_wc"] = w((10, 40))
    raw["conv2_w"], raw["conv2_b"] = w((5, 40, 50)), w((50,))
    raw["bn2_s"], raw["bn2_h"] = bn_fold(50)
    raw["id2_w"], raw["id2_b"] = w((50, 60)), w((60,))
    raw["r2a_s"], raw["r2a_h"] = bn_fold(50)
    raw["r2_wa"] = w((50, 15))
    raw["r2b_s"], raw["r2b_h"] = bn_fold(15)
    raw["r2_wb"] = w((3, 15, 15))
    raw["r2c_s"], raw["r2c_h"] = bn_fold(15)
    raw["r2_wc"] = w((15, 60))
    raw["conv3_w"], raw["conv3_b"] = w((3, 60, 80)), w((80,))
    raw["bn3_s"], raw["bn3_h"] = bn_fold(80)
    raw["lin2_w"], raw["lin2_b"] = w((80, 40)), w((40,))
    raw["lin3_w"], raw["lin3_b"] = w((40, 11)), w((11,))
    return raw


def pack_params(raw):
    wslab = np.zeros((_N_W, LANES, LANES), np.float32)

    def put(name, mat):
        mat = np.asarray(mat, np.float32)
        cin, cout = mat.shape
        wslab[_W_IDX[name], :cin, :cout] = mat

    for t in range(5):
        put(f"conv1_t{t}", raw["conv1_w"][t])
    put("id1", raw["id1_w"])
    put("r1_wa", raw["r1_wa"])
    for t in range(3):
        put(f"r1_wb_t{t}", raw["r1_wb"][t])
    put("r1_wc", raw["r1_wc"])
    for t in range(5):
        put(f"conv2_t{t}", raw["conv2_w"][t])
    put("id2", raw["id2_w"])
    put("r2_wa", raw["r2_wa"])
    for t in range(3):
        put(f"r2_wb_t{t}", raw["r2_wb"][t])
    put("r2_wc", raw["r2_wc"])
    for t in range(3):
        put(f"conv3_t{t}", raw["conv3_w"][t])
    put("lin2", raw["lin2_w"])
    put("lin3", raw["lin3_w"])

    vslab = np.zeros((_V_ROWS, LANES), np.float32)
    for name in _V_NAMES:
        vec = np.asarray(raw[name], np.float32)
        vslab[_V_IDX[name], :vec.shape[0]] = vec
    return jnp.asarray(wslab), jnp.asarray(vslab)


# --------------------------- pure-JAX reference check --------------------------
def _reference_forward(x_bhc, raw):
    hp = jax.lax.Precision.HIGHEST

    def conv_h(x, w, bias=None):
        k = w.shape[0]
        ho = x.shape[1] - k + 1
        y = sum(jnp.einsum("bhc,co->bho", x[:, t:t + ho, :], w[t], precision=hp)
                for t in range(k))
        return y if bias is None else y + bias

    def mm1(x, w):
        return jnp.einsum("bhc,co->bho", x, w, precision=hp)

    def bn(x, s, h):
        return x * s + h

    def relu(x):
        return jnp.maximum(x, 0.0)

    def mp(x):
        half = x.shape[1] // 2
        return jnp.maximum(x[:, 0:2 * half:2, :], x[:, 1:2 * half:2, :])

    def res(x, p):
        r = mm1(relu(bn(x, raw[p + "a_s"], raw[p + "a_h"])), raw[p + "_wa"])
        r = relu(bn(r, raw[p + "b_s"], raw[p + "b_h"]))
        r = jnp.pad(r, ((0, 0), (1, 1), (0, 0)))
        r = conv_h(r, raw[p + "_wb"])
        return mm1(relu(bn(r, raw[p + "c_s"], raw[p + "c_h"])), raw[p + "_wc"])

    x = relu(x_bhc)
    x = relu(bn(conv_h(x, raw["conv1_w"], raw["conv1_b"]), raw["bn1_s"], raw["bn1_h"]))
    x = mm1(x, raw["id1_w"]) + raw["id1_b"] + res(x, "r1")
    x = mp(x)
    x = relu(bn(conv_h(x, raw["conv2_w"], raw["conv2_b"]), raw["bn2_s"], raw["bn2_h"]))
    x = mm1(x, raw["id2_w"]) + raw["id2_b"] + res(x, "r2")
    x = mp(x)
    x = relu(bn(conv_h(x, raw["conv3_w"], raw["conv3_b"]), raw["bn3_s"], raw["bn3_h"]))
    x = x[:, 0, :]
    x = relu(jnp.dot(x, raw["lin2_w"], precision=hp) + raw["lin2_b"])
    return jnp.dot(x, raw["lin3_w"], precision=hp) + raw["lin3_b"]


if __name__ == "__main__":
    key = jax.random.PRNGKey(0)
    kx, kp = jax.random.split(key)

    # post-SURE activation in PyTorch NCHW layout: [B, 20, 25, 1]
    x = jax.random.normal(kx, (B, C_IN, H_IN, 1), jnp.float32)
    raw = init_raw_params(kp)
    w_slab, v_slab = pack_params(raw)

    logits, res_loss = manifoldnet_res_forward(x, w_slab, v_slab)
    logits = jax.block_until_ready(logits)
    assert logits.shape == (B, NUM_CLASSES)
    assert bool(jnp.all(jnp.isfinite(logits)))

    ref = _reference_forward(jnp.transpose(x[..., 0], (0, 2, 1)), raw)
    assert bool(jnp.allclose(logits, ref, rtol=2e-2, atol=2e-2))
    print("KERNEL_OK")
</pallas_src>

<mosaic_0001>
module attributes {stable_mosaic.version = 11 : i64} {
  func.func @manifoldnet_res_kernel(%arg0: i32, %arg1: memref<50x128xf32, #tpu.memory_space<vmem>>, %arg2: memref<27x128x128xf32, #tpu.memory_space<vmem>>, %arg3: memref<32x128xf32, #tpu.memory_space<vmem>>, %arg4: memref<2x128xf32, #tpu.memory_space<vmem>>) attributes {dimension_semantics = [#tpu.dimension_semantics<arbitrary>], iteration_bounds = array<i64: 1>, scalar_prefetch = 0 : i64, scratch_operands = 0 : i64, tpu.core_type = #tpu.core_type<tc>, window_params = [{pipeline_mode = #tpu.pipeline_mode<synchronous>, transform_indices = @transform_0, window_bounds = array<i64: 50, 128>}, {pipeline_mode = #tpu.pipeline_mode<synchronous>, transform_indices = @transform_1, window_bounds = array<i64: 27, 128, 128>}, {pipeline_mode = #tpu.pipeline_mode<synchronous>, transform_indices = @transform_2, window_bounds = array<i64: 32, 128>}, {pipeline_mode = #tpu.pipeline_mode<synchronous>, transform_indices = @transform_3, window_bounds = array<i64: 2, 128>}]} {
    %c0 = arith.constant 0 : index
    %c0_0 = arith.constant 0 : index
    %0 = vector.load %arg1[%c0, %c0_0] : memref<50x128xf32, #tpu.memory_space<vmem>>, vector<50x128xf32>
    %cst = arith.constant 0.000000e+00 : f32
    %1 = vector.broadcast %cst : f32 to vector<50x128xf32>
    %2 = arith.maximumf %0, %1 : vector<50x128xf32>
    %3 = vector.extract_strided_slice %2 {offsets = [0, 0], sizes = [46, 128], strides = [1, 1]} : vector<50x128xf32> to vector<46x128xf32>
    %c0_1 = arith.constant 0 : index
    %c0_2 = arith.constant 0 : index
    %c0_3 = arith.constant 0 : index
    %4 = vector.load %arg2[%c0_1, %c0_2, %c0_3] : memref<27x128x128xf32, #tpu.memory_space<vmem>>, vector<1x128x128xf32>
    %5 = vector.shape_cast %4 : vector<1x128x128xf32> to vector<128x128xf32>
    %cst_4 = arith.constant dense<0.000000e+00> : vector<46x128xf32>
    %6 = tpu.matmul %3, %5, %cst_4 {dimension_numbers = #tpu.dot_dimension_numbers<[1], [0], [0], [1], [0, 0, 1, 1], [], []>} : vector<46x128xf32>, vector<128x128xf32>, vector<46x128xf32> -> vector<46x128xf32>
    %7 = vector.extract_strided_slice %2 {offsets = [1, 0], sizes = [46, 128], strides = [1, 1]} : vector<50x128xf32> to vector<46x128xf32>
    %c1 = arith.constant 1 : index
    %c0_5 = arith.constant 0 : index
    %c0_6 = arith.constant 0 : index
    %8 = vector.load %arg2[%c1, %c0_5, %c0_6] : memref<27x128x128xf32, #tpu.memory_space<vmem>>, vector<1x128x128xf32>
    %9 = vector.shape_cast %8 : vector<1x128x128xf32> to vector<128x128xf32>
    %cst_7 = arith.constant dense<0.000000e+00> : vector<46x128xf32>
    %10 = tpu.matmul %7, %9, %cst_7 {dimension_numbers = #tpu.dot_dimension_numbers<[1], [0], [0], [1], [0, 0, 1, 1], [], []>} : vector<46x128xf32>, vector<128x128xf32>, vector<46x128xf32> -> vector<46x128xf32>
    %11 = arith.addf %6, %10 : vector<46x128xf32>
    %12 = vector.extract_strided_slice %2 {offsets = [2, 0], sizes = [46, 128], strides = [1, 1]} : vector<50x128xf32> to vector<46x128xf32>
    %c2 = arith.constant 2 : index
    %c0_8 = arith.constant 0 : index
    %c0_9 = arith.constant 0 : index
    %13 = vector.load %arg2[%c2, %c0_8, %c0_9] : memref<27x128x128xf32, #tpu.memory_space<vmem>>, vector<1x128x128xf32>
    %14 = vector.shape_cast %13 : vector<1x128x128xf32> to vector<128x128xf32>
    %cst_10 = arith.constant dense<0.000000e+00> : vector<46x128xf32>
    %15 = tpu.matmul %12, %14, %cst_10 {dimension_numbers = #tpu.dot_dimension_numbers<[1], [0], [0], [1], [0, 0, 1, 1], [], []>} : vector<46x128xf32>, vector<128x128xf32>, vector<46x128xf32> -> vector<46x128xf32>
    %16 = arith.addf %11, %15 : vector<46x128xf32>
    %17 = vector.extract_strided_slice %2 {offsets = [3, 0], sizes = [46, 128], strides = [1, 1]} : vector<50x128xf32> to vector<46x128xf32>
    %c3 = arith.constant 3 : index
    %c0_11 = arith.constant 0 : index
    %c0_12 = arith.constant 0 : index
    %18 = vector.load %arg2[%c3, %c0_11, %c0_12] : memref<27x128x128xf32, #tpu.memory_space<vmem>>, vector<1x128x128xf32>
    %19 = vector.shape_cast %18 : vector<1x128x128xf32> to vector<128x128xf32>
    %cst_13 = arith.constant dense<0.000000e+00> : vector<46x128xf32>
    %20 = tpu.matmul %17, %19, %cst_13 {dimension_numbers = #tpu.dot_dimension_numbers<[1], [0], [0], [1], [0, 0, 1, 1], [], []>} : vector<46x128xf32>, vector<128x128xf32>, vector<46x128xf32> -> vector<46x128xf32>
    %21 = arith.addf %16, %20 : vector<46x128xf32>
    %22 = vector.extract_strided_slice %2 {offsets = [4, 0], sizes = [46, 128], strides = [1, 1]} : vector<50x128xf32> to vector<46x128xf32>
    %c4 = arith.constant 4 : index
    %c0_14 = arith.constant 0 : index
    %c0_15 = arith.constant 0 : index
    %23 = vector.load %arg2[%c4, %c0_14, %c0_15] : memref<27x128x128xf32, #tpu.memory_space<vmem>>, vector<1x128x128xf32>
    %24 = vector.shape_cast %23 : vector<1x128x128xf32> to vector<128x128xf32>
    %cst_16 = arith.constant dense<0.000000e+00> : vector<46x128xf32>
    %25 = tpu.matmul %22, %24, %cst_16 {dimension_numbers = #tpu.dot_dimension_numbers<[1], [0], [0], [1], [0, 0, 1, 1], [], []>} : vector<46x128xf32>, vector<128x128xf32>, vector<46x128xf32> -> vector<46x128xf32>
    %26 = arith.addf %21, %25 : vector<46x128xf32>
    %27 = vector.extract_strided_slice %26 {offsets = [0, 0], sizes = [21, 128], strides = [1, 1]} : vector<46x128xf32> to vector<21x128xf32>
    %28 = vector.extract_strided_slice %26 {offsets = [25, 0], sizes = [21, 128], strides = [1, 1]} : vector<46x128xf32> to vector<21x128xf32>
    %29 = tpu.concatenate %27, %28 in 0 : vector<21x128xf32>, vector<21x128xf32> -> vector<42x128xf32>
    %c0_17 = arith.constant 0 : index
    %c0_18 = arith.constant 0 : index
    %30 = vector.load %arg3[%c0_17, %c0_18] : memref<32x128xf32, #tpu.memory_space<vmem>>, vector<1x128xf32>
    %31 = vector.broadcast %30 : vector<1x128xf32> to vector<42x128xf32>
    %32 = arith.addf %29, %31 : vector<42x128xf32>
    %c1_19 = arith.constant 1 : index
    %c0_20 = arith.constant 0 : index
    %33 = vector.load %arg3[%c1_19, %c0_20] : memref<32x128xf32, #tpu.memory_space<vmem>>, vector<1x128xf32>
    %34 = vector.broadcast %33 : vector<1x128xf32> to vector<42x128xf32>
    %35 = arith.mulf %32, %34 : vector<42x128xf32>
    %c2_21 = arith.constant 2 : index
    %c0_22 = arith.constant 0 : index
    %36 = vector.load %arg3[%c2_21, %c0_22] : memref<32x128xf32, #tpu.memory_space<vmem>>, vector<1x128xf32>
    %37 = vector.broadcast %36 : vector<1x128xf32> to vector<42x128xf32>
    %38 = arith.addf %35, %37 : vector<42x128xf32>
    %cst_23 = arith.constant 0.000000e+00 : f32
    %39 = vector.broadcast %cst_23 : f32 to vector<42x128xf32>
    %40 = arith.maximumf %38, %39 : vector<42x128xf32>
    %c5 = arith.constant 5 : index
    %c0_24 = arith.constant 0 : index
    %c0_25 = arith.constant 0 : index
    %41 = vector.load %arg2[%c5, %c0_24, %c0_25] : memref<27x128x128xf32, #tpu.memory_space<vmem>>, vector<1x128x128xf32>
    %42 = vector.shape_cast %41 : vector<1x128x128xf32> to vector<128x128xf32>
    %cst_26 = arith.constant dense<0.000000e+00> : vector<42x128xf32>
    %43 = tpu.matmul %40, %42, %cst_26 {dimension_numbers = #tpu.dot_dimension_numbers<[1], [0], [0], [1], [0, 0, 1, 1], [], []>} : vector<42x128xf32>, vector<128x128xf32>, vector<42x128xf32> -> vector<42x128xf32>
    %c3_27 = arith.constant 3 : index
    %c0_28 = arith.constant 0 : index
    %44 = vector.load %arg3[%c3_27, %c0_28] : memref<32x128xf32, #tpu.memory_space<vmem>>, vector<1x128xf32>
    %45 = vector.broadcast %44 : vector<1x128xf32> to vector<42x128xf32>
    %46 = arith.addf %43, %45 : vector<42x128xf32>
    %c4_29 = arith.constant 4 : index
    %c0_30 = arith.constant 0 : index
    %47 = vector.load %arg3[%c4_29, %c0_30] : memref<32x128xf32, #tpu.memory_space<vmem>>, vector<1x128xf32>
    %48 = vector.broadcast %47 : vector<1x128xf32> to vector<42x128xf32>
    %49 = arith.mulf %40, %48 : vector<42x128xf32>
    %c5_31 = arith.constant 5 : index
    %c0_32 = arith.constant 0 : index
    %50 = vector.load %arg3[%c5_31, %c0_32] : memref<32x128xf32, #tpu.memory_space<vmem>>, vector<1x128xf32>
    %51 = vector.broadcast %50 : vector<1x128xf32> to vector<42x128xf32>
    %52 = arith.addf %49, %51 : vector<42x128xf32>
    %cst_33 = arith.constant 0.000000e+00 : f32
    %53 = vector.broadcast %cst_33 : f32 to vector<42x128xf32>
    %54 = arith.maximumf %52, %53 : vector<42x128xf32>
    %c6 = arith.constant 6 : index
    %c0_34 = arith.constant 0 : index
    %c0_35 = arith.constant 0 : index
    %55 = vector.load %arg2[%c6, %c0_34, %c0_35] : memref<27x128x128xf32, #tpu.memory_space<vmem>>, vector<1x128x128xf32>
    %56 = vector.shape_cast %55 : vector<1x128x128xf32> to vector<128x128xf32>
    %cst_36 = arith.constant dense<0.000000e+00> : vector<42x128xf32>
    %57 = tpu.matmul %54, %56, %cst_36 {dimension_numbers = #tpu.dot_dimension_numbers<[1], [0], [0], [1], [0, 0, 1, 1], [], []>} : vector<42x128xf32>, vector<128x128xf32>, vector<42x128xf32> -> vector<42x128xf32>
    %c6_37 = arith.constant 6 : index
    %c0_38 = arith.constant 0 : index
    %58 = vector.load %arg3[%c6_37, %c0_38] : memref<32x128xf32, #tpu.memory_space<vmem>>, vector<1x128xf32>
    %59 = vector.broadcast %58 : vector<1x128xf32> to vector<42x128xf32>
    %60 = arith.mulf %57, %59 : vector<42x128xf32>
    %c7 = arith.constant 7 : index
    %c0_39 = arith.constant 0 : index
    %61 = vector.load %arg3[%c7, %c0_39] : memref<32x128xf32, #tpu.memory_space<vmem>>, vector<1x128xf32>
    %62 = vector.broadcast %61 : vector<1x128xf32> to vector<42x128xf32>
    %63 = arith.addf %60, %62 : vector<42x128xf32>
    %cst_40 = arith.constant 0.000000e+00 : f32
    %64 = vector.broadcast %cst_40 : f32 to vector<42x128xf32>
    %65 = arith.maximumf %63, %64 : vector<42x128xf32>
    %cst_41 = arith.constant 0.000000e+00 : f32
    %66 = vector.broadcast %cst_41 : f32 to vector<1x128xf32>
    %67 = vector.extract_strided_slice %65 {offsets = [0, 0], sizes = [21, 128], strides = [1, 1]} : vector<42x128xf32> to vector<21x128xf32>
    %68 = vector.extract_strided_slice %65 {offsets = [21, 0], sizes = [21, 128], strides = [1, 1]} : vector<42x128xf32> to vector<21x128xf32>
    %69 = tpu.concatenate %66, %67, %66, %66, %68, %66 in 0 : vector<1x128xf32>, vector<21x128xf32>, vector<1x128xf32>, vector<1x128xf32>, vector<21x128xf32>, vector<1x128xf32> -> vector<46x128xf32>
    %70 = vector.extract_strided_slice %69 {offsets = [0, 0], sizes = [44, 128], strides = [1, 1]} : vector<46x128xf32> to vector<44x128xf32>
    %c7_42 = arith.constant 7 : index
    %c0_43 = arith.constant 0 : index
    %c0_44 = arith.constant 0 : index
    %71 = vector.load %arg2[%c7_42, %c0_43, %c0_44] : memref<27x128x128xf32, #tpu.memory_space<vmem>>, vector<1x128x128xf32>
    %72 = vector.shape_cast %71 : vector<1x128x128xf32> to vector<128x128xf32>
    %cst_45 = arith.constant dense<0.000000e+00> : vector<44x128xf32>
    %73 = tpu.matmul %70, %72, %cst_45 {dimension_numbers = #tpu.dot_dimension_numbers<[1], [0], [0], [1], [0, 0, 1, 1], [], []>} : vector<44x128xf32>, vector<128x128xf32>, vector<44x128xf32> -> vector<44x128xf32>
    %74 = vector.extract_strided_slice %69 {offsets = [1, 0], sizes = [44, 128], strides = [1, 1]} : vector<46x128xf32> to vector<44x128xf32>
    %c8 = arith.constant 8 : index
    %c0_46 = arith.constant 0 : index
    %c0_47 = arith.constant 0 : index
    %75 = vector.load %arg2[%c8, %c0_46, %c0_47] : memref<27x128x128xf32, #tpu.memory_space<vmem>>, vector<1x128x128xf32>
    %76 = vector.shape_cast %75 : vector<1x128x128xf32> to vector<128x128xf32>
    %cst_48 = arith.constant dense<0.000000e+00> : vector<44x128xf32>
    %77 = tpu.matmul %74, %76, %cst_48 {dimension_numbers = #tpu.dot_dimension_numbers<[1], [0], [0], [1], [0, 0, 1, 1], [], []>} : vector<44x128xf32>, vector<128x128xf32>, vector<44x128xf32> -> vector<44x128xf32>
    %78 = arith.addf %73, %77 : vector<44x128xf32>
    %79 = vector.extract_strided_slice %69 {offsets = [2, 0], sizes = [44, 128], strides = [1, 1]} : vector<46x128xf32> to vector<44x128xf32>
    %c9 = arith.constant 9 : index
    %c0_49 = arith.constant 0 : index
    %c0_50 = arith.constant 0 : index
    %80 = vector.load %arg2[%c9, %c0_49, %c0_50] : memref<27x128x128xf32, #tpu.memory_space<vmem>>, vector<1x128x128xf32>
    %81 = vector.shape_cast %80 : vector<1x128x128xf32> to vector<128x128xf32>
    %cst_51 = arith.constant dense<0.000000e+00> : vector<44x128xf32>
    %82 = tpu.matmul %79, %81, %cst_51 {dimension_numbers = #tpu.dot_dimension_numbers<[1], [0], [0], [1], [0, 0, 1, 1], [], []>} : vector<44x128xf32>, vector<128x128xf32>, vector<44x128xf32> -> vector<44x128xf32>
    %83 = arith.addf %78, %82 : vector<44x128xf32>
    %84 = vector.extract_strided_slice %83 {offsets = [0, 0], sizes = [21, 128], strides = [1, 1]} : vector<44x128xf32> to vector<21x128xf32>
    %85 = vector.extract_strided_slice %83 {offsets = [23, 0], sizes = [21, 128], strides = [1, 1]} : vector<44x128xf32> to vector<21x128xf32>
    %86 = tpu.concatenate %84, %85 in 0 : vector<21x128xf32>, vector<21x128xf32> -> vector<42x128xf32>
    %c8_52 = arith.constant 8 : index
    %c0_53 = arith.constant 0 : index
    %87 = vector.load %arg3[%c8_52, %c0_53] : memref<32x128xf32, #tpu.memory_space<vmem>>, vector<1x128xf32>
    %88 = vector.broadcast %87 : vector<1x128xf32> to vector<42x128xf32>
    %89 = arith.mulf %86, %88 : vector<42x128xf32>
    %c9_54 = arith.constant 9 : index
    %c0_55 = arith.constant 0 : index
    %90 = vector.load %arg3[%c9_54, %c0_55] : memref<32x128xf32, #tpu.memory_space<vmem>>, vector<1x128xf32>
    %91 = vector.broadcast %90 : vector<1x128xf32> to vector<42x128xf32>
    %92 = arith.addf %89, %91 : vector<42x128xf32>
    %cst_56 = arith.constant 0.000000e+00 : f32
    %93 = vector.broadcast %cst_56 : f32 to vector<42x128xf32>
    %94 = arith.maximumf %92, %93 : vector<42x128xf32>
    %c10 = arith.constant 10 : index
    %c0_57 = arith.constant 0 : index
    %c0_58 = arith.constant 0 : index
    %95 = vector.load %arg2[%c10, %c0_57, %c0_58] : memref<27x128x128xf32, #tpu.memory_space<vmem>>, vector<1x128x128xf32>
    %96 = vector.shape_cast %95 : vector<1x128x128xf32> to vector<128x128xf32>
    %cst_59 = arith.constant dense<0.000000e+00> : vector<42x128xf32>
    %97 = tpu.matmul %94, %96, %cst_59 {dimension_numbers = #tpu.dot_dimension_numbers<[1], [0], [0], [1], [0, 0, 1, 1], [], []>} : vector<42x128xf32>, vector<128x128xf32>, vector<42x128xf32> -> vector<42x128xf32>
    %98 = arith.addf %46, %97 : vector<42x128xf32>
    %99 = tpu.iota {dimensions = array<i32: 0>} : vector<20x42xi32>
    %100 = tpu.iota {dimensions = array<i32: 1>} : vector<20x42xi32>
    %c0_i32 = arith.constant 0 : i32
    %101 = vector.broadcast %c0_i32 : i32 to vector<20x42xi32>
    %c10_i32 = arith.constant 10 : i32
    %102 = vector.broadcast %c10_i32 : i32 to vector<20x42xi32>
    %103 = arith.cmpi sge, %99, %102 : vector<20x42xi32>
    %104 = arith.extui %103 : vector<20x42xi1> to vector<20x42xi32>
    %105 = arith.addi %101, %104 : vector<20x42xi32>
    %c10_i32_60 = arith.constant 10 : i32
    %106 = vector.broadcast %c10_i32_60 : i32 to vector<20x42xi32>
    %107 = arith.muli %105, %106 : vector<20x42xi32>
    %108 = arith.subi %99, %107 : vector<20x42xi32>
    %c2_i32 = arith.constant 2 : i32
    %109 = vector.broadcast %c2_i32 : i32 to vector<20x42xi32>
    %110 = arith.muli %109, %108 : vector<20x42xi32>
    %c21_i32 = arith.constant 21 : i32
    %111 = vector.broadcast %c21_i32 : i32 to vector<20x42xi32>
    %112 = arith.muli %105, %111 : vector<20x42xi32>
    %113 = arith.addi %110, %112 : vector<20x42xi32>
    %114 = arith.cmpi eq, %100, %113 : vector<20x42xi32>
    %115 = arith.extui %114 : vector<20x42xi1> to vector<20x42xi32>
    %116 = arith.sitofp %115 : vector<20x42xi32> to vector<20x42xf32>
    %c1_i32 = arith.constant 1 : i32
    %117 = vector.broadcast %c1_i32 : i32 to vector<20x42xi32>
    %118 = arith.addi %113, %117 : vector<20x42xi32>
    %119 = arith.cmpi eq, %100, %118 : vector<20x42xi32>
    %120 = arith.extui %119 : vector<20x42xi1> to vector<20x42xi32>
    %121 = arith.sitofp %120 : vector<20x42xi32> to vector<20x42xf32>
    %cst_61 = arith.constant dense<0.000000e+00> : vector<20x128xf32>
    %122 = tpu.matmul %116, %98, %cst_61 {dimension_numbers = #tpu.dot_dimension_numbers<[1], [0], [0], [1], [0, 0, 1, 1], [], []>} : vector<20x42xf32>, vector<42x128xf32>, vector<20x128xf32> -> vector<20x128xf32>
    %cst_62 = arith.constant dense<0.000000e+00> : vector<20x128xf32>
    %123 = tpu.matmul %121, %98, %cst_62 {dimension_numbers = #tpu.dot_dimension_numbers<[1], [0], [0], [1], [0, 0, 1, 1], [], []>} : vector<20x42xf32>, vector<42x128xf32>, vector<20x128xf32> -> vector<20x128xf32>
    %124 = arith.maximumf %122, %123 : vector<20x128xf32>
    %125 = vector.extract_strided_slice %124 {offsets = [0, 0], sizes = [16, 128], strides = [1, 1]} : vector<20x128xf32> to vector<16x128xf32>
    %c11 = arith.constant 11 : index
    %c0_63 = arith.constant 0 : index
    %c0_64 = arith.constant 0 : index
    %126 = vector.load %arg2[%c11, %c0_63, %c0_64] : memref<27x128x128xf32, #tpu.memory_space<vmem>>, vector<1x128x128xf32>
    %127 = vector.shape_cast %126 : vector<1x128x128xf32> to vector<128x128xf32>
    %cst_65 = arith.constant dense<0.000000e+00> : vector<16x128xf32>
    %128 = tpu.matmul %125, %127, %cst_65 {dimension_numbers = #tpu.dot_dimension_numbers<[1], [0], [0], [1], [0, 0, 1, 1], [], []>} : vector<16x128xf32>, vector<128x128xf32>, vector<16x128xf32> -> vector<16x128xf32>
    %129 = vector.extract_strided_slice %124 {offsets = [1, 0], sizes = [16, 128], strides = [1, 1]} : vector<20x128xf32> to vector<16x128xf32>
    %c12 = arith.constant 12 : index
    %c0_66 = arith.constant 0 : index
    %c0_67 = arith.constant 0 : index
    %130 = vector.load %arg2[%c12, %c0_66, %c0_67] : memref<27x128x128xf32, #tpu.memory_space<vmem>>, vector<1x128x128xf32>
    %131 = vector.shape_cast %130 : vector<1x128x128xf32> to vector<128x128xf32>
    %cst_68 = arith.constant dense<0.000000e+00> : vector<16x128xf32>
    %132 = tpu.matmul %129, %131, %cst_68 {dimension_numbers = #tpu.dot_dimension_numbers<[1], [0], [0], [1], [0, 0, 1, 1], [], []>} : vector<16x128xf32>, vector<128x128xf32>, vector<16x128xf32> -> vector<16x128xf32>
    %133 = arith.addf %128, %132 : vector<16x128xf32>
    %134 = vector.extract_strided_slice %124 {offsets = [2, 0], sizes = [16, 128], strides = [1, 1]} : vector<20x128xf32> to vector<16x128xf32>
    %c13 = arith.constant 13 : index
    %c0_69 = arith.constant 0 : index
    %c0_70 = arith.constant 0 : index
    %135 = vector.load %arg2[%c13, %c0_69, %c0_70] : memref<27x128x128xf32, #tpu.memory_space<vmem>>, vector<1x128x128xf32>
    %136 = vector.shape_cast %135 : vector<1x128x128xf32> to vector<128x128xf32>
    %cst_71 = arith.constant dense<0.000000e+00> : vector<16x128xf32>
    %137 = tpu.matmul %134, %136, %cst_71 {dimension_numbers = #tpu.dot_dimension_numbers<[1], [0], [0], [1], [0, 0, 1, 1], [], []>} : vector<16x128xf32>, vector<128x128xf32>, vector<16x128xf32> -> vector<16x128xf32>
    %138 = arith.addf %133, %137 : vector<16x128xf32>
    %139 = vector.extract_strided_slice %124 {offsets = [3, 0], sizes = [16, 128], strides = [1, 1]} : vector<20x128xf32> to vector<16x128xf32>
    %c14 = arith.constant 14 : index
    %c0_72 = arith.constant 0 : index
    %c0_73 = arith.constant 0 : index
    %140 = vector.load %arg2[%c14, %c0_72, %c0_73] : memref<27x128x128xf32, #tpu.memory_space<vmem>>, vector<1x128x128xf32>
    %141 = vector.shape_cast %140 : vector<1x128x128xf32> to vector<128x128xf32>
    %cst_74 = arith.constant dense<0.000000e+00> : vector<16x128xf32>
    %142 = tpu.matmul %139, %141, %cst_74 {dimension_numbers = #tpu.dot_dimension_numbers<[1], [0], [0], [1], [0, 0, 1, 1], [], []>} : vector<16x128xf32>, vector<128x128xf32>, vector<16x128xf32> -> vector<16x128xf32>
    %143 = arith.addf %138, %142 : vector<16x128xf32>
    %144 = vector.extract_strided_slice %124 {offsets = [4, 0], sizes = [16, 128], strides = [1, 1]} : vector<20x128xf32> to vector<16x128xf32>
    %c15 = arith.constant 15 : index
    %c0_75 = arith.constant 0 : index
    %c0_76 = arith.constant 0 : index
    %145 = vector.load %arg2[%c15, %c0_75, %c0_76] : memref<27x128x128xf32, #tpu.memory_space<vmem>>, vector<1x128x128xf32>
    %146 = vector.shape_cast %145 : vector<1x128x128xf32> to vector<128x128xf32>
    %cst_77 = arith.constant dense<0.000000e+00> : vector<16x128xf32>
    %147 = tpu.matmul %144, %146, %cst_77 {dimension_numbers = #tpu.dot_dimension_numbers<[1], [0], [0], [1], [0, 0, 1, 1], [], []>} : vector<16x128xf32>, vector<128x128xf32>, vector<16x128xf32> -> vector<16x128xf32>
    %148 = arith.addf %143, %147 : vector<16x128xf32>
    %149 = vector.extract_strided_slice %148 {offsets = [0, 0], sizes = [6, 128], strides = [1, 1]} : vector<16x128xf32> to vector<6x128xf32>
    %150 = vector.extract_strided_slice %148 {offsets = [10, 0], sizes = [6, 128], strides = [1, 1]} : vector<16x128xf32> to vector<6x128xf32>
    %151 = tpu.concatenate %149, %150 in 0 : vector<6x128xf32>, vector<6x128xf32> -> vector<12x128xf32>
    %c10_78 = arith.constant 10 : index
    %c0_79 = arith.constant 0 : index
    %152 = vector.load %arg3[%c10_78, %c0_79] : memref<32x128xf32, #tpu.memory_space<vmem>>, vector<1x128xf32>
    %153 = vector.broadcast %152 : vector<1x128xf32> to vector<12x128xf32>
    %154 = arith.addf %151, %153 : vector<12x128xf32>
    %c11_80 = arith.constant 11 : index
    %c0_81 = arith.constant 0 : index
    %155 = vector.load %arg3[%c11_80, %c0_81] : memref<32x128xf32, #tpu.memory_space<vmem>>, vector<1x128xf32>
    %156 = vector.broadcast %155 : vector<1x128xf32> to vector<12x128xf32>
    %157 = arith.mulf %154, %156 : vector<12x128xf32>
    %c12_82 = arith.constant 12 : index
    %c0_83 = arith.constant 0 : index
    %158 = vector.load %arg3[%c12_82, %c0_83] : memref<32x128xf32, #tpu.memory_space<vmem>>, vector<1x128xf32>
    %159 = vector.broadcast %158 : vector<1x128xf32> to vector<12x128xf32>
    %160 = arith.addf %157, %159 : vector<12x128xf32>
    %cst_84 = arith.constant 0.000000e+00 : f32
    %161 = vector.broadcast %cst_84 : f32 to vector<12x128xf32>
    %162 = arith.maximumf %160, %161 : vector<12x128xf32>
    %c16 = arith.constant 16 : index
    %c0_85 = arith.constant 0 : index
    %c0_86 = arith.constant 0 : index
    %163 = vector.load %arg2[%c16, %c0_85, %c0_86] : memref<27x128x128xf32, #tpu.memory_space<vmem>>, vector<1x128x128xf32>
    %164 = vector.shape_cast %163 : vector<1x128x128xf32> to vector<128x128xf32>
    %cst_87 = arith.constant dense<0.000000e+00> : vector<12x128xf32>
    %165 = tpu.matmul %162, %164, %cst_87 {dimension_numbers = #tpu.dot_dimension_numbers<[1], [0], [0], [1], [0, 0, 1, 1], [], []>} : vector<12x128xf32>, vector<128x128xf32>, vector<12x128xf32> -> vector<12x128xf32>
    %c13_88 = arith.constant 13 : index
    %c0_89 = arith.constant 0 : index
    %166 = vector.load %arg3[%c13_88, %c0_89] : memref<32x128xf32, #tpu.memory_space<vmem>>, vector<1x128xf32>
    %167 = vector.broadcast %166 : vector<1x128xf32> to vector<12x128xf32>
    %168 = arith.addf %165, %167 : vector<12x128xf32>
    %c14_90 = arith.constant 14 : index
    %c0_91 = arith.constant 0 : index
    %169 = vector.load %arg3[%c14_90, %c0_91] : memref<32x128xf32, #tpu.memory_space<vmem>>, vector<1x128xf32>
    %170 = vector.broadcast %169 : vector<1x128xf32> to vector<12x128xf32>
    %171 = arith.mulf %162, %170 : vector<12x128xf32>
    %c15_92 = arith.constant 15 : index
    %c0_93 = arith.constant 0 : index
    %172 = vector.load %arg3[%c15_92, %c0_93] : memref<32x128xf32, #tpu.memory_space<vmem>>, vector<1x128xf32>
    %173 = vector.broadcast %172 : vector<1x128xf32> to vector<12x128xf32>
    %174 = arith.addf %171, %173 : vector<12x128xf32>
    %cst_94 = arith.constant 0.000000e+00 : f32
    %175 = vector.broadcast %cst_94 : f32 to vector<12x128xf32>
    %176 = arith.maximumf %174, %175 : vector<12x128xf32>
    %c17 = arith.constant 17 : index
    %c0_95 = arith.constant 0 : index
    %c0_96 = arith.constant 0 : index
    %177 = vector.load %arg2[%c17, %c0_95, %c0_96] : memref<27x128x128xf32, #tpu.memory_space<vmem>>, vector<1x128x128xf32>
    %178 = vector.shape_cast %177 : vector<1x128x128xf32> to vector<128x128xf32>
    %cst_97 = arith.constant dense<0.000000e+00> : vector<12x128xf32>
    %179 = tpu.matmul %176, %178, %cst_97 {dimension_numbers = #tpu.dot_dimension_numbers<[1], [0], [0], [1], [0, 0, 1, 1], [], []>} : vector<12x128xf32>, vector<128x128xf32>, vector<12x128xf32> -> vector<12x128xf32>
    %c16_98 = arith.constant 16 : index
    %c0_99 = arith.constant 0 : index
    %180 = vector.load %arg3[%c16_98, %c0_99] : memref<32x128xf32, #tpu.memory_space<vmem>>, vector<1x128xf32>
    %181 = vector.broadcast %180 : vector<1x128xf32> to vector<12x128xf32>
    %182 = arith.mulf %179, %181 : vector<12x128xf32>
    %c17_100 = arith.constant 17 : index
    %c0_101 = arith.constant 0 : index
    %183 = vector.load %arg3[%c17_100, %c0_101] : memref<32x128xf32, #tpu.memory_space<vmem>>, vector<1x128xf32>
    %184 = vector.broadcast %183 : vector<1x128xf32> to vector<12x128xf32>
    %185 = arith.addf %182, %184 : vector<12x128xf32>
    %cst_102 = arith.constant 0.000000e+00 : f32
    %186 = vector.broadcast %cst_102 : f32 to vector<12x128xf32>
    %187 = arith.maximumf %185, %186 : vector<12x128xf32>
    %cst_103 = arith.constant 0.000000e+00 : f32
    %188 = vector.broadcast %cst_103 : f32 to vector<1x128xf32>
    %189 = vector.extract_strided_slice %187 {offsets = [0, 0], sizes = [6, 128], strides = [1, 1]} : vector<12x128xf32> to vector<6x128xf32>
    %190 = vector.extract_strided_slice %187 {offsets = [6, 0], sizes = [6, 128], strides = [1, 1]} : vector<12x128xf32> to vector<6x128xf32>
    %191 = tpu.concatenate %188, %189, %188, %188, %190, %188 in 0 : vector<1x128xf32>, vector<6x128xf32>, vector<1x128xf32>, vector<1x128xf32>, vector<6x128xf32>, vector<1x128xf32> -> vector<16x128xf32>
    %192 = vector.extract_strided_slice %191 {offsets = [0, 0], sizes = [14, 128], strides = [1, 1]} : vector<16x128xf32> to vector<14x128xf32>
    %c18 = arith.constant 18 : index
    %c0_104 = arith.constant 0 : index
    %c0_105 = arith.constant 0 : index
    %193 = vector.load %arg2[%c18, %c0_104, %c0_105] : memref<27x128x128xf32, #tpu.memory_space<vmem>>, vector<1x128x128xf32>
    %194 = vector.shape_cast %193 : vector<1x128x128xf32> to vector<128x128xf32>
    %cst_106 = arith.constant dense<0.000000e+00> : vector<14x128xf32>
    %195 = tpu.matmul %192, %194, %cst_106 {dimension_numbers = #tpu.dot_dimension_numbers<[1], [0], [0], [1], [0, 0, 1, 1], [], []>} : vector<14x128xf32>, vector<128x128xf32>, vector<14x128xf32> -> vector<14x128xf32>
    %196 = vector.extract_strided_slice %191 {offsets = [1, 0], sizes = [14, 128], strides = [1, 1]} : vector<16x128xf32> to vector<14x128xf32>
    %c19 = arith.constant 19 : index
    %c0_107 = arith.constant 0 : index
    %c0_108 = arith.constant 0 : index
    %197 = vector.load %arg2[%c19, %c0_107, %c0_108] : memref<27x128x128xf32, #tpu.memory_space<vmem>>, vector<1x128x128xf32>
    %198 = vector.shape_cast %197 : vector<1x128x128xf32> to vector<128x128xf32>
    %cst_109 = arith.constant dense<0.000000e+00> : vector<14x128xf32>
    %199 = tpu.matmul %196, %198, %cst_109 {dimension_numbers = #tpu.dot_dimension_numbers<[1], [0], [0], [1], [0, 0, 1, 1], [], []>} : vector<14x128xf32>, vector<128x128xf32>, vector<14x128xf32> -> vector<14x128xf32>
    %200 = arith.addf %195, %199 : vector<14x128xf32>
    %201 = vector.extract_strided_slice %191 {offsets = [2, 0], sizes = [14, 128], strides = [1, 1]} : vector<16x128xf32> to vector<14x128xf32>
    %c20 = arith.constant 20 : index
    %c0_110 = arith.constant 0 : index
    %c0_111 = arith.constant 0 : index
    %202 = vector.load %arg2[%c20, %c0_110, %c0_111] : memref<27x128x128xf32, #tpu.memory_space<vmem>>, vector<1x128x128xf32>
    %203 = vector.shape_cast %202 : vector<1x128x128xf32> to vector<128x128xf32>
    %cst_112 = arith.constant dense<0.000000e+00> : vector<14x128xf32>
    %204 = tpu.matmul %201, %203, %cst_112 {dimension_numbers = #tpu.dot_dimension_numbers<[1], [0], [0], [1], [0, 0, 1, 1], [], []>} : vector<14x128xf32>, vector<128x128xf32>, vector<14x128xf32> -> vector<14x128xf32>
    %205 = arith.addf %200, %204 : vector<14x128xf32>
    %206 = vector.extract_strided_slice %205 {offsets = [0, 0], sizes = [6, 128], strides = [1, 1]} : vector<14x128xf32> to vector<6x128xf32>
    %207 = vector.extract_strided_slice %205 {offsets = [8, 0], sizes = [6, 128], strides = [1, 1]} : vector<14x128xf32> to vector<6x128xf32>
    %208 = tpu.concatenate %206, %207 in 0 : vector<6x128xf32>, vector<6x128xf32> -> vector<12x128xf32>
    %c18_113 = arith.constant 18 : index
    %c0_114 = arith.constant 0 : index
    %209 = vector.load %arg3[%c18_113, %c0_114] : memref<32x128xf32, #tpu.memory_space<vmem>>, vector<1x128xf32>
    %210 = vector.broadcast %209 : vector<1x128xf32> to vector<12x128xf32>
    %211 = arith.mulf %208, %210 : vector<12x128xf32>
    %c19_115 = arith.constant 19 : index
    %c0_116 = arith.constant 0 : index
    %212 = vector.load %arg3[%c19_115, %c0_116] : memref<32x128xf32, #tpu.memory_space<vmem>>, vector<1x128xf32>
    %213 = vector.broadcast %212 : vector<1x128xf32> to vector<12x128xf32>
    %214 = arith.addf %211, %213 : vector<12x128xf32>
    %cst_117 = arith.constant 0.000000e+00 : f32
    %215 = vector.broadcast %cst_117 : f32 to vector<12x128xf32>
    %216 = arith.maximumf %214, %215 : vector<12x128xf32>
    %c21 = arith.constant 21 : index
    %c0_118 = arith.constant 0 : index
    %c0_119 = arith.constant 0 : index
    %217 = vector.load %arg2[%c21, %c0_118, %c0_119] : memref<27x128x128xf32, #tpu.memory_space<vmem>>, vector<1x128x128xf32>
    %218 = vector.shape_cast %217 : vector<1x128x128xf32> to vector<128x128xf32>
    %cst_120 = arith.constant dense<0.000000e+00> : vector<12x128xf32>
    %219 = tpu.matmul %216, %218, %cst_120 {dimension_numbers = #tpu.dot_dimension_numbers<[1], [0], [0], [1], [0, 0, 1, 1], [], []>} : vector<12x128xf32>, vector<128x128xf32>, vector<12x128xf32> -> vector<12x128xf32>
    %220 = arith.addf %168, %219 : vector<12x128xf32>
    %221 = tpu.iota {dimensions = array<i32: 0>} : vector<6x12xi32>
    %222 = tpu.iota {dimensions = array<i32: 1>} : vector<6x12xi32>
    %c0_i32_121 = arith.constant 0 : i32
    %223 = vector.broadcast %c0_i32_121 : i32 to vector<6x12xi32>
    %c3_i32 = arith.constant 3 : i32
    %224 = vector.broadcast %c3_i32 : i32 to vector<6x12xi32>
    %225 = arith.cmpi sge, %221, %224 : vector<6x12xi32>
    %226 = arith.extui %225 : vector<6x12xi1> to vector<6x12xi32>
    %227 = arith.addi %223, %226 : vector<6x12xi32>
    %c3_i32_122 = arith.constant 3 : i32
    %228 = vector.broadcast %c3_i32_122 : i32 to vector<6x12xi32>
    %229 = arith.muli %227, %228 : vector<6x12xi32>
    %230 = arith.subi %221, %229 : vector<6x12xi32>
    %c2_i32_123 = arith.constant 2 : i32
    %231 = vector.broadcast %c2_i32_123 : i32 to vector<6x12xi32>
    %232 = arith.muli %231, %230 : vector<6x12xi32>
    %c6_i32 = arith.constant 6 : i32
    %233 = vector.broadcast %c6_i32 : i32 to vector<6x12xi32>
    %234 = arith.muli %227, %233 : vector<6x12xi32>
    %235 = arith.addi %232, %234 : vector<6x12xi32>
    %236 = arith.cmpi eq, %222, %235 : vector<6x12xi32>
    %237 = arith.extui %236 : vector<6x12xi1> to vector<6x12xi32>
    %238 = arith.sitofp %237 : vector<6x12xi32> to vector<6x12xf32>
    %c1_i32_124 = arith.constant 1 : i32
    %239 = vector.broadcast %c1_i32_124 : i32 to vector<6x12xi32>
    %240 = arith.addi %235, %239 : vector<6x12xi32>
    %241 = arith.cmpi eq, %222, %240 : vector<6x12xi32>
    %242 = arith.extui %241 : vector<6x12xi1> to vector<6x12xi32>
    %243 = arith.sitofp %242 : vector<6x12xi32> to vector<6x12xf32>
    %cst_125 = arith.constant dense<0.000000e+00> : vector<6x128xf32>
    %244 = tpu.matmul %238, %220, %cst_125 {dimension_numbers = #tpu.dot_dimension_numbers<[1], [0], [0], [1], [0, 0, 1, 1], [], []>} : vector<6x12xf32>, vector<12x128xf32>, vector<6x128xf32> -> vector<6x128xf32>
    %cst_126 = arith.constant dense<0.000000e+00> : vector<6x128xf32>
    %245 = tpu.matmul %243, %220, %cst_126 {dimension_numbers = #tpu.dot_dimension_numbers<[1], [0], [0], [1], [0, 0, 1, 1], [], []>} : vector<6x12xf32>, vector<12x128xf32>, vector<6x128xf32> -> vector<6x128xf32>
    %246 = arith.maximumf %244, %245 : vector<6x128xf32>
    %247 = vector.extract_strided_slice %246 {offsets = [0, 0], sizes = [4, 128], strides = [1, 1]} : vector<6x128xf32> to vector<4x128xf32>
    %c22 = arith.constant 22 : index
    %c0_127 = arith.constant 0 : index
    %c0_128 = arith.constant 0 : index
    %248 = vector.load %arg2[%c22, %c0_127, %c0_128] : memref<27x128x128xf32, #tpu.memory_space<vmem>>, vector<1x128x128xf32>
    %249 = vector.shape_cast %248 : vector<1x128x128xf32> to vector<128x128xf32>
    %cst_129 = arith.constant dense<0.000000e+00> : vector<4x128xf32>
    %250 = tpu.matmul %247, %249, %cst_129 {dimension_numbers = #tpu.dot_dimension_numbers<[1], [0], [0], [1], [0, 0, 1, 1], [], []>} : vector<4x128xf32>, vector<128x128xf32>, vector<4x128xf32> -> vector<4x128xf32>
    %251 = vector.extract_strided_slice %246 {offsets = [1, 0], sizes = [4, 128], strides = [1, 1]} : vector<6x128xf32> to vector<4x128xf32>
    %c23 = arith.constant 23 : index
    %c0_130 = arith.constant 0 : index
    %c0_131 = arith.constant 0 : index
    %252 = vector.load %arg2[%c23, %c0_130, %c0_131] : memref<27x128x128xf32, #tpu.memory_space<vmem>>, vector<1x128x128xf32>
    %253 = vector.shape_cast %252 : vector<1x128x128xf32> to vector<128x128xf32>
    %cst_132 = arith.constant dense<0.000000e+00> : vector<4x128xf32>
    %254 = tpu.matmul %251, %253, %cst_132 {dimension_numbers = #tpu.dot_dimension_numbers<[1], [0], [0], [1], [0, 0, 1, 1], [], []>} : vector<4x128xf32>, vector<128x128xf32>, vector<4x128xf32> -> vector<4x128xf32>
    %255 = arith.addf %250, %254 : vector<4x128xf32>
    %256 = vector.extract_strided_slice %246 {offsets = [2, 0], sizes = [4, 128], strides = [1, 1]} : vector<6x128xf32> to vector<4x128xf32>
    %c24 = arith.constant 24 : index
    %c0_133 = arith.constant 0 : index
    %c0_134 = arith.constant 0 : index
    %257 = vector.load %arg2[%c24, %c0_133, %c0_134] : memref<27x128x128xf32, #tpu.memory_space<vmem>>, vector<1x128x128xf32>
    %258 = vector.shape_cast %257 : vector<1x128x128xf32> to vector<128x128xf32>
    %cst_135 = arith.constant dense<0.000000e+00> : vector<4x128xf32>
    %259 = tpu.matmul %256, %258, %cst_135 {dimension_numbers = #tpu.dot_dimension_numbers<[1], [0], [0], [1], [0, 0, 1, 1], [], []>} : vector<4x128xf32>, vector<128x128xf32>, vector<4x128xf32> -> vector<4x128xf32>
    %260 = arith.addf %255, %259 : vector<4x128xf32>
    %261 = vector.extract_strided_slice %260 {offsets = [0, 0], sizes = [1, 128], strides = [1, 1]} : vector<4x128xf32> to vector<1x128xf32>
    %262 = vector.extract_strided_slice %260 {offsets = [3, 0], sizes = [1, 128], strides = [1, 1]} : vector<4x128xf32> to vector<1x128xf32>
    %263 = tpu.concatenate %261, %262 in 0 : vector<1x128xf32>, vector<1x128xf32> -> vector<2x128xf32>
    %c20_136 = arith.constant 20 : index
    %c0_137 = arith.constant 0 : index
    %264 = vector.load %arg3[%c20_136, %c0_137] : memref<32x128xf32, #tpu.memory_space<vmem>>, vector<1x128xf32>
    %265 = vector.broadcast %264 : vector<1x128xf32> to vector<2x128xf32>
    %266 = arith.addf %263, %265 : vector<2x128xf32>
    %c21_138 = arith.constant 21 : index
    %c0_139 = arith.constant 0 : index
    %267 = vector.load %arg3[%c21_138, %c0_139] : memref<32x128xf32, #tpu.memory_space<vmem>>, vector<1x128xf32>
    %268 = vector.broadcast %267 : vector<1x128xf32> to vector<2x128xf32>
    %269 = arith.mulf %266, %268 : vector<2x128xf32>
    %c22_140 = arith.constant 22 : index
    %c0_141 = arith.constant 0 : index
    %270 = vector.load %arg3[%c22_140, %c0_141] : memref<32x128xf32, #tpu.memory_space<vmem>>, vector<1x128xf32>
    %271 = vector.broadcast %270 : vector<1x128xf32> to vector<2x128xf32>
    %272 = arith.addf %269, %271 : vector<2x128xf32>
    %cst_142 = arith.constant 0.000000e+00 : f32
    %273 = vector.broadcast %cst_142 : f32 to vector<2x128xf32>
    %274 = arith.maximumf %272, %273 : vector<2x128xf32>
    %c25 = arith.constant 25 : index
    %c0_143 = arith.constant 0 : index
    %c0_144 = arith.constant 0 : index
    %275 = vector.load %arg2[%c25, %c0_143, %c0_144] : memref<27x128x128xf32, #tpu.memory_space<vmem>>, vector<1x128x128xf32>
    %276 = vector.shape_cast %275 : vector<1x128x128xf32> to vector<128x128xf32>
    %cst_145 = arith.constant dense<0.000000e+00> : vector<2x128xf32>
    %277 = tpu.matmul %274, %276, %cst_145 {dimension_numbers = #tpu.dot_dimension_numbers<[1], [0], [0], [1], [0, 0, 1, 1], [], []>} : vector<2x128xf32>, vector<128x128xf32>, vector<2x128xf32> -> vector<2x128xf32>
    %c23_146 = arith.constant 23 : index
    %c0_147 = arith.constant 0 : index
    %278 = vector.load %arg3[%c23_146, %c0_147] : memref<32x128xf32, #tpu.memory_space<vmem>>, vector<1x128xf32>
    %279 = vector.broadcast %278 : vector<1x128xf32> to vector<2x128xf32>
    %280 = arith.addf %277, %279 : vector<2x128xf32>
    %cst_148 = arith.constant 0.000000e+00 : f32
    %281 = vector.broadcast %cst_148 : f32 to vector<2x128xf32>
    %282 = arith.maximumf %280, %281 : vector<2x128xf32>
    %c26 = arith.constant 26 : index
    %c0_149 = arith.constant 0 : index
    %c0_150 = arith.constant 0 : index
    %283 = vector.load %arg2[%c26, %c0_149, %c0_150] : memref<27x128x128xf32, #tpu.memory_space<vmem>>, vector<1x128x128xf32>
    %284 = vector.shape_cast %283 : vector<1x128x128xf32> to vector<128x128xf32>
    %cst_151 = arith.constant dense<0.000000e+00> : vector<2x128xf32>
    %285 = tpu.matmul %282, %284, %cst_151 {dimension_numbers = #tpu.dot_dimension_numbers<[1], [0], [0], [1], [0, 0, 1, 1], [], []>} : vector<2x128xf32>, vector<128x128xf32>, vector<2x128xf32> -> vector<2x128xf32>
    %c24_152 = arith.constant 24 : index
    %c0_153 = arith.constant 0 : index
    %286 = vector.load %arg3[%c24_152, %c0_153] : memref<32x128xf32, #tpu.memory_space<vmem>>, vector<1x128xf32>
    %287 = vector.broadcast %286 : vector<1x128xf32> to vector<2x128xf32>
    %288 = arith.addf %285, %287 : vector<2x128xf32>
    %c0_154 = arith.constant 0 : index
    %c0_155 = arith.constant 0 : index
    %289 = vector.load %arg4[%c0_154, %c0_155] : memref<2x128xf32, #tpu.memory_space<vmem>>, vector<2x128xf32>
    tpu.vector_store %arg4[%c0_154, %c0_155], %288 {strides = array<i32>} : memref<2x128xf32, #tpu.memory_space<vmem>>, vector<2x128xf32>,
    return
  }
  func.func @transform_0(%arg0: i32) -> (i32, i32) {
    %c0_i32 = arith.constant 0 : i32
    %c0_i32_0 = arith.constant 0 : i32
    %c0_i32_1 = arith.constant 0 : i32
    return %c0_i32, %c0_i32_0 : i32, i32
  }
  func.func @transform_1(%arg0: i32) -> (i32, i32, i32) {
    %c0_i32 = arith.constant 0 : i32
    %c0_i32_0 = arith.constant 0 : i32
    %c0_i32_1 = arith.constant 0 : i32
    %c0_i32_2 = arith.constant 0 : i32
    return %c0_i32, %c0_i32_0, %c0_i32_1 : i32, i32, i32
  }
  func.func @transform_2(%arg0: i32) -> (i32, i32) {
    %c0_i32 = arith.constant 0 : i32
    %c0_i32_0 = arith.constant 0 : i32
    %c0_i32_1 = arith.constant 0 : i32
    return %c0_i32, %c0_i32_0 : i32, i32
  }
  func.func @transform_3(%arg0: i32) -> (i32, i32) {
    %c0_i32 = arith.constant 0 : i32
    %c0_i32_0 = arith.constant 0 : i32
    %c0_i32_1 = arith.constant 0 : i32
    return %c0_i32, %c0_i32_0 : i32, i32
  }
}

</mosaic_0001>

<llo_original>
// kernel: manifoldnet_res_forward.1
$region0: #{manifoldnet_res_forward.1}
  #allocation0 [shape = 'u32[]', space=smem, size = 0x4, offset = 0x4, fixed_abs, tag = 'smem constant byte address 0x4 - core index']
  #allocation1 [shape = 'u32[144,128]{1,0:T(1,128)}', space=vmem, size = 0x12000, scoped, tag = 'internal scratch']
  %s0 = inlined_call_operand.vmem [shape: f32[50,128], index: 0, kind: input, shape index: {}]
  %s1 = inlined_call_operand.hbm [shape: f32[27,128,128], index: 1, kind: input, shape index: {}]
  %s2 = inlined_call_operand.hbm [shape: f32[32,128], index: 2, kind: input, shape index: {}]
  %s3 = inlined_call_operand.hbm [shape: f32[2,128], index: 3, kind: output, shape index: {}]
  %s4 = sld [smem:[#allocation0]]
  $region30: #{manifoldnet_res_forward.1} parent=0
    _
  %s6 = ssub.s32 1, %s4
  %s7 = scalar_select 0, %s6, %s4
  $region1: #{manifoldnet_res_forward.1} parent=0
    #allocation2 [shape = 'u8[1769472]{0}', space=vmem, size = 0x1b0000, scoped, tag = 'input window, operand 1, single buffered']
    #allocation3 [shape = 's32[1]{0}', space=sflag, size = 0x4, scoped, tag = 'scoped memory for manifoldnet_res_forward.1']
    #allocation4 [shape = 's32[1]{0}', space=sflag, size = 0x4, scoped, tag = 'scoped memory for manifoldnet_res_forward.1']
    #allocation5 [shape = 'u8[16384]{0}', space=vmem, size = 0x4000, scoped, tag = 'input window, operand 2, single buffered']
    #allocation6 [shape = 's32[1]{0}', space=sflag, size = 0x4, scoped, tag = 'scoped memory for manifoldnet_res_forward.1']
    #allocation7 [shape = 'u8[1024]{0}', space=vmem, size = 0x400, scoped, tag = 'output window, operand 0, single buffered']
    %8 = vsyncpa [#allocation3], 0
    %9 = vsyncpa [#allocation6], 0
    %10 = vsyncpa [#allocation4], 0
    // Predicated region
    $region2: #{manifoldnet_res_forward.1} parent=1 // pred_check
      _
    $region3: #{manifoldnet_res_forward.1} parent=1 // pred_check_branch
      %12 = sbr.rel (0) target = $region5
    $region4: #{manifoldnet_res_forward.1} parent=1 // pred_region
      _
    $region5: #{manifoldnet_res_forward.1} parent=1 // pred_fallthru
      _
    // Predicated region
    $region6: #{manifoldnet_res_forward.1} parent=1 // pred_check
      _
    $region7: #{manifoldnet_res_forward.1} parent=1 // pred_check_branch
      %14 = sbr.rel (0) target = $region9
    $region8: #{manifoldnet_res_forward.1} parent=1 // pred_region
      %s16 = ssub.s32 55296, 55296
      %17 = vsyncadd [#allocation3], %s16
      %s18 = sshll.u32 [#allocation2], 4
      %s19 = int_to_ptr.vmem [resolvable:$true] %s18
      %24 = dma.hbm_to_vmem [thread:$0]  %s1, 55296, %s19, [#allocation3], 128, 128, 8
    $region9: #{manifoldnet_res_forward.1} parent=1 // pred_fallthru
      _
    // Predicated region
    $region10: #{manifoldnet_res_forward.1} parent=1 // pred_check
      _
    $region11: #{manifoldnet_res_forward.1} parent=1 // pred_check_branch
      %26 = sbr.rel (0) target = $region13
    $region12: #{manifoldnet_res_forward.1} parent=1 // pred_region
      %s28 = ssub.s32 512, 512
      %29 = vsyncadd [#allocation6], %s28
      %s30 = sshll.u32 [#allocation5], 4
      %s31 = int_to_ptr.vmem [resolvable:$true] %s30
      %36 = dma.hbm_to_vmem [thread:$0]  %s2, 512, %s31, [#allocation6], 128, 128, 8
    $region13: #{manifoldnet_res_forward.1} parent=1 // pred_fallthru
      _
    // Predicated region
    $region14: #{manifoldnet_res_forward.1} parent=1 // pred_check
      _
    $region15: #{manifoldnet_res_forward.1} parent=1 // pred_check_branch
      %38 = sbr.rel (0) target = $region17
    $region16: #{manifoldnet_res_forward.1} parent=1 // pred_region
      %39 = dma.done [#allocation3], 55296
    $region17: #{manifoldnet_res_forward.1} parent=1 // pred_fallthru
      _
    // Predicated region
    $region18: #{manifoldnet_res_forward.1} parent=1 // pred_check
      _
    $region19: #{manifoldnet_res_forward.1} parent=1 // pred_check_branch
      %41 = sbr.rel (0) target = $region21
    $region20: #{manifoldnet_res_forward.1} parent=1 // pred_region
      %42 = dma.done [#allocation6], 512
    $region21: #{manifoldnet_res_forward.1} parent=1 // pred_fallthru
      _
    %v43 = vld [vmem:[%s0] sm:$0xff]
    %v44 = vld [vmem:[%s0 + $0x8] sm:$0xff]
    %v45 = vld [vmem:[%s0 + $0x10] sm:$0xff]
    %v46 = vld [vmem:[%s0 + $0x18] sm:$0xff]
    %v47 = vld [vmem:[%s0 + $0x20] sm:$0xff]
    %v48 = vld [vmem:[%s0 + $0x28] sm:$0xff]
    %v49 = vld [vmem:[%s0 + $0x30] sm:$0x3]
    %v50 = vmax.f32 %v43, 0.0
    %v51 = vmax.f32 %v44, 0.0
    %v52 = vmax.f32 %v45, 0.0
    %v53 = vmax.f32 %v46, 0.0
    %v54 = vmax.f32 %v47, 0.0
    %v55 = vmax.f32 %v48, 0.0
    %v56 = vmax.f32 %v49, 0.0
    %v57 = vld [vmem:[#allocation2] sm:$0xff]
    %v58 = vld [vmem:[#allocation2 + $0x8] sm:$0xff]
    %v59 = vld [vmem:[#allocation2 + $0x10] sm:$0xff]
    %v60 = vld [vmem:[#allocation2 + $0x18] sm:$0xff]
    %v61 = vld [vmem:[#allocation2 + $0x20] sm:$0xff]
    %v62 = vld [vmem:[#allocation2 + $0x28] sm:$0xff]
    %v63 = vld [vmem:[#allocation2 + $0x30] sm:$0xff]
    %v64 = vld [vmem:[#allocation2 + $0x38] sm:$0xff]
    %v65 = vld [vmem:[#allocation2 + $0x40] sm:$0xff]
    %v66 = vld [vmem:[#allocation2 + $0x48] sm:$0xff]
    %v67 = vld [vmem:[#allocation2 + $0x50] sm:$0xff]
    %v68 = vld [vmem:[#allocation2 + $0x58] sm:$0xff]
    %v69 = vld [vmem:[#allocation2 + $0x60] sm:$0xff]
    %v70 = vld [vmem:[#allocation2 + $0x68] sm:$0xff]
    %v71 = vld [vmem:[#allocation2 + $0x70] sm:$0xff]
    %v72 = vld [vmem:[#allocation2 + $0x78] sm:$0xff]
    %s73 = scalar_lea.vmem [#allocation2], 128
    %v74 = vld [vmem:[%s73] sm:$0xff]
    %v75 = vld [vmem:[%s73 + $0x8] sm:$0xff]
    %v76 = vld [vmem:[%s73 + $0x10] sm:$0xff]
    %v77 = vld [vmem:[%s73 + $0x18] sm:$0xff]
    %v78 = vld [vmem:[%s73 + $0x20] sm:$0xff]
    %v79 = vld [vmem:[%s73 + $0x28] sm:$0xff]
    %v80 = vld [vmem:[%s73 + $0x30] sm:$0xff]
    %v81 = vld [vmem:[%s73 + $0x38] sm:$0xff]
    %v82 = vld [vmem:[%s73 + $0x40] sm:$0xff]
    %v83 = vld [vmem:[%s73 + $0x48] sm:$0xff]
    %v84 = vld [vmem:[%s73 + $0x50] sm:$0xff]
    %v85 = vld [vmem:[%s73 + $0x58] sm:$0xff]
    %v86 = vld [vmem:[%s73 + $0x60] sm:$0xff]
    %v87 = vld [vmem:[%s73 + $0x68] sm:$0xff]
    %v88 = vld [vmem:[%s73 + $0x70] sm:$0xff]
    %v89 = vld [vmem:[%s73 + $0x78] sm:$0xff]
    %vm96 = vcmask 1046528
    %v97 = vrot.slane %v50, 1
    %v98 = vrot.slane %v51, 1
    %v99 = vsel %vm96, %v97, %v98
    %v100 = vrot.slane %v52, 1
    %v101 = vsel %vm96, %v98, %v100
    %v102 = vrot.slane %v53, 1
    %v103 = vsel %vm96, %v100, %v102
    %v104 = vrot.slane %v54, 1
    %v105 = vsel %vm96, %v102, %v104
    %v106 = vrot.slane %v55, 1
    %v107 = vsel %vm96, %v104, %v106
    %114 = vmatprep.subr.mxu0 0.0
    %115 = vmatpush1.msra.mxu0 %v89
    %116 = vmatprep.subr.mxu0 0.0
    %117 = vmatpush1.msra.mxu0 %v88
    %118 = vmatprep.subr.mxu0 0.0
    %119 = vmatpush1.msra.mxu0 %v87
    %120 = vmatprep.subr.mxu0 0.0
    %121 = vmatpush1.msra.mxu0 %v86
    %122 = vmatprep.subr.mxu0 0.0
    %123 = vmatpush1.msra.mxu0 %v85
    %124 = vmatprep.subr.mxu0 0.0
    %125 = vmatpush1.msra.mxu0 %v84
    %126 = vmatprep.subr.mxu0 0.0
    %127 = vmatpush1.msra.mxu0 %v83
    %128 = vmatprep.subr.mxu0 0.0
    %129 = vmatpush1.msra.mxu0 %v82
    %130 = vmatprep.subr.mxu0 0.0
    %131 = vmatpush1.msra.mxu0 %v81
    %132 = vmatprep.subr.mxu0 0.0
    %133 = vmatpush1.msra.mxu0 %v80
    %134 = vmatprep.subr.mxu0 0.0
    %135 = vmatpush1.msra.mxu0 %v79
    %136 = vmatprep.subr.mxu0 0.0
    %137 = vmatpush1.msra.mxu0 %v78
    %138 = vmatprep.subr.mxu0 0.0
    %139 = vmatpush1.msra.mxu0 %v77
    %140 = vmatprep.subr.mxu0 0.0
    %141 = vmatpush1.msra.mxu0 %v76
    %142 = vmatprep.subr.mxu0 0.0
    %143 = vmatpush1.msra.mxu0 %v75
    %144 = vmatprep.subr.mxu0 0.0
    %145 = vmatpush1.msra.mxu0 %v74
    %146 = vmatprep.subr.mxu0 0.0
    %147 = vmatpush2.msra.mxu0 0.0
    %148 = vmatprep.subr.mxu0 0.0
    %149 = vmatpush2.msra.mxu0 0.0
    %150 = vmatprep.subr.mxu0 0.0
    %151 = vmatpush2.msra.mxu0 0.0
    %152 = vmatprep.subr.mxu0 0.0
    %153 = vmatpush2.msra.mxu0 0.0
    %154 = vmatprep.subr.mxu0 0.0
    %155 = vmatpush2.msra.mxu0 0.0
    %156 = vmatprep.subr.mxu0 0.0
    %157 = vmatpush2.msra.mxu0 0.0
    %158 = vmatprep.subr.mxu0 0.0
    %159 = vmatpush2.msra.mxu0 0.0
    %160 = vmatprep.subr.mxu0 0.0
    %161 = vmatpush2.msra.mxu0 0.0
    %162 = vmatprep.subr.mxu0 0.0
    %163 = vmatpush2.msra.mxu0 0.0
    %164 = vmatprep.subr.mxu0 0.0
    %165 = vmatpush2.msra.mxu0 0.0
    %166 = vmatprep.subr.mxu0 0.0
    %167 = vmatpush2.msra.mxu0 0.0
    %168 = vmatprep.subr.mxu0 0.0
    %169 = vmatpush2.msra.mxu0 0.0
    %170 = vmatprep.subr.mxu0 0.0
    %171 = vmatpush2.msra.mxu0 0.0
    %172 = vmatprep.subr.mxu0 0.0
    %173 = vmatpush2.msra.mxu0 0.0
    %174 = vmatprep.subr.mxu0 0.0
    %175 = vmatpush2.msra.mxu0 0.0
    %176 = vmatprep.subr.mxu0 0.0
    %177 = vmatpush2.msra.mxu0 0.0
    %178 = vmatprep.mubr.f32.mxu0 0.0
    %179 = vmatmul.mubr.f32.gmra.mxu0 %v99
    %v180 = vpop.f32.mrf.mxu0
    %v181 = vadd.f32 0.0, %v180
    %v182 = vpop.f32.mrf.mxu0
    %183 = vmatprep.mubr.f32.mxu0 0.0
    %184 = vmatmul.mubr.f32.gmra.mxu0 %v101
    %v185 = vpop.f32.mrf.mxu0
    %v186 = vadd.f32 0.0, %v185
    %v187 = vpop.f32.mrf.mxu0
    %188 = vmatprep.mubr.f32.mxu0 0.0
    %189 = vmatmul.mubr.f32.gmra.mxu0 %v103
    %v190 = vpop.f32.mrf.mxu0
    %v191 = vadd.f32 0.0, %v190
    %v192 = vpop.f32.mrf.mxu0
    %193 = vmatprep.mubr.f32.mxu0 0.0
    %194 = vmatmul.mubr.f32.gmra.mxu0 %v105
    %v195 = vpop.f32.mrf.mxu0
    %v196 = vadd.f32 0.0, %v195
    %v197 = vpop.f32.mrf.mxu0
    %198 = vmatprep.mubr.f32.mxu0 0.0
    %199 = vmatmul.mubr.f32.gmra.mxu0 %v107
    %v200 = vpop.f32.mrf.mxu0
    %v201 = vadd.f32 0.0, %v200
    %v202 = vpop.f32.mrf.mxu0
    %203 = vmatprep.mubr.f32.mxu0 0.0
    %204 = vmatmul.mubr.f32.gmra.mxu0 %v106
    %v205 = vpop.f32.mrf.mxu0
    %v206 = vadd.f32 0.0, %v205
    %v207 = vpop.f32.mrf.mxu0
    %208 = vdwg.mxu0
    %209 = vmatprep.subr.mxu0 0.0
    %210 = vmatpush1.msra.mxu0 %v72
    %211 = vmatprep.subr.mxu0 0.0
    %212 = vmatpush1.msra.mxu0 %v71
    %213 = vmatprep.subr.mxu0 0.0
    %214 = vmatpush1.msra.mxu0 %v70
    %215 = vmatprep.subr.mxu0 0.0
    %216 = vmatpush1.msra.mxu0 %v69
    %217 = vmatprep.subr.mxu0 0.0
    %218 = vmatpush1.msra.mxu0 %v68
    %219 = vmatprep.subr.mxu0 0.0
    %220 = vmatpush1.msra.mxu0 %v67
    %221 = vmatprep.subr.mxu0 0.0
    %222 = vmatpush1.msra.mxu0 %v66
    %223 = vmatprep.subr.mxu0 0.0
    %224 = vmatpush1.msra.mxu0 %v65
    %225 = vmatprep.subr.mxu0 0.0
    %226 = vmatpush1.msra.mxu0 %v64
    %227 = vmatprep.subr.mxu0 0.0
    %228 = vmatpush1.msra.mxu0 %v63
    %229 = vmatprep.subr.mxu0 0.0
    %230 = vmatpush1.msra.mxu0 %v62
    %231 = vmatprep.subr.mxu0 0.0
    %232 = vmatpush1.msra.mxu0 %v61
    %233 = vmatprep.subr.mxu0 0.0
    %234 = vmatpush1.msra.mxu0 %v60
    %235 = vmatprep.subr.mxu0 0.0
    %236 = vmatpush1.msra.mxu0 %v59
    %237 = vmatprep.subr.mxu0 0.0
    %238 = vmatpush1.msra.mxu0 %v58
    %239 = vmatprep.subr.mxu0 0.0
    %240 = vmatpush1.msra.mxu0 %v57
    %241 = vmatprep.subr.mxu0 0.0
    %242 = vmatpush2.msra.mxu0 0.0
    %243 = vmatprep.subr.mxu0 0.0
    %244 = vmatpush2.msra.mxu0 0.0
    %245 = vmatprep.subr.mxu0 0.0
    %246 = vmatpush2.msra.mxu0 0.0
    %247 = vmatprep.subr.mxu0 0.0
    %248 = vmatpush2.msra.mxu0 0.0
    %249 = vmatprep.subr.mxu0 0.0
    %250 = vmatpush2.msra.mxu0 0.0
    %251 = vmatprep.subr.mxu0 0.0
    %252 = vmatpush2.msra.mxu0 0.0
    %253 = vmatprep.subr.mxu0 0.0
    %254 = vmatpush2.msra.mxu0 0.0
    %255 = vmatprep.subr.mxu0 0.0
    %256 = vmatpush2.msra.mxu0 0.0
    %257 = vmatprep.subr.mxu0 0.0
    %258 = vmatpush2.msra.mxu0 0.0
    %259 = vmatprep.subr.mxu0 0.0
    %260 = vmatpush2.msra.mxu0 0.0
    %261 = vmatprep.subr.mxu0 0.0
    %262 = vmatpush2.msra.mxu0 0.0
    %263 = vmatprep.subr.mxu0 0.0
    %264 = vmatpush2.msra.mxu0 0.0
    %265 = vmatprep.subr.mxu0 0.0
    %266 = vmatpush2.msra.mxu0 0.0
    %267 = vmatprep.subr.mxu0 0.0
    %268 = vmatpush2.msra.mxu0 0.0
    %269 = vmatprep.subr.mxu0 0.0
    %270 = vmatpush2.msra.mxu0 0.0
    %271 = vmatprep.subr.mxu0 0.0
    %272 = vmatpush2.msra.mxu0 0.0
    %273 = vmatprep.mubr.f32.mxu0 0.0
    %274 = vmatmul.mubr.f32.gmra.mxu0 %v50
    %v275 = vpop.f32.mrf.mxu0
    %v276 = vadd.f32 %v181, %v275
    %v277 = vpop.f32.mrf.mxu0
    %278 = vmatprep.mubr.f32.mxu0 0.0
    %279 = vmatmul.mubr.f32.gmra.mxu0 %v51
    %v280 = vpop.f32.mrf.mxu0
    %v281 = vadd.f32 %v186, %v280
    %v282 = vpop.f32.mrf.mxu0
    %283 = vmatprep.mubr.f32.mxu0 0.0
    %284 = vmatmul.mubr.f32.gmra.mxu0 %v52
    %v285 = vpop.f32.mrf.mxu0
    %v286 = vadd.f32 %v191, %v285
    %v287 = vpop.f32.mrf.mxu0
    %288 = vmatprep.mubr.f32.mxu0 0.0
    %289 = vmatmul.mubr.f32.gmra.mxu0 %v53
    %v290 = vpop.f32.mrf.mxu0
    %v291 = vadd.f32 %v196, %v290
    %v292 = vpop.f32.mrf.mxu0
    %293 = vmatprep.mubr.f32.mxu0 0.0
    %294 = vmatmul.mubr.f32.gmra.mxu0 %v54
    %v295 = vpop.f32.mrf.mxu0
    %v296 = vadd.f32 %v201, %v295
    %v297 = vpop.f32.mrf.mxu0
    %298 = vmatprep.mubr.f32.mxu0 0.0
    %299 = vmatmul.mubr.f32.gmra.mxu0 %v55
    %v300 = vpop.f32.mrf.mxu0
    %v301 = vadd.f32 %v206, %v300
    %v302 = vpop.f32.mrf.mxu0
    %303 = vdwg.mxu0
    %s304 = scalar_lea.vmem [#allocation2], 256
    %v305 = vld [vmem:[%s304] sm:$0xff]
    %v306 = vld [vmem:[%s304 + $0x8] sm:$0xff]
    %v307 = vld [vmem:[%s304 + $0x10] sm:$0xff]
    %v308 = vld [vmem:[%s304 + $0x18] sm:$0xff]
    %v309 = vld [vmem:[%s304 + $0x20] sm:$0xff]
    %v310 = vld [vmem:[%s304 + $0x28] sm:$0xff]
    %v311 = vld [vmem:[%s304 + $0x30] sm:$0xff]
    %v312 = vld [vmem:[%s304 + $0x38] sm:$0xff]
    %v313 = vld [vmem:[%s304 + $0x40] sm:$0xff]
    %v314 = vld [vmem:[%s304 + $0x48] sm:$0xff]
    %v315 = vld [vmem:[%s304 + $0x50] sm:$0xff]
    %v316 = vld [vmem:[%s304 + $0x58] sm:$0xff]
    %v317 = vld [vmem:[%s304 + $0x60] sm:$0xff]
    %v318 = vld [vmem:[%s304 + $0x68] sm:$0xff]
    %v319 = vld [vmem:[%s304 + $0x70] sm:$0xff]
    %v320 = vld [vmem:[%s304 + $0x78] sm:$0xff]
    %vm321 = vcmask 1045504
    %v322 = vrot.slane %v50, 2
    %v323 = vrot.slane %v51, 2
    %v324 = vsel %vm321, %v322, %v323
    %v325 = vrot.slane %v52, 2
    %v326 = vsel %vm321, %v323, %v325
    %v327 = vrot.slane %v53, 2
    %v328 = vsel %vm321, %v325, %v327
    %v329 = vrot.slane %v54, 2
    %v330 = vsel %vm321, %v327, %v329
    %v331 = vrot.slane %v55, 2
    %v332 = vsel %vm321, %v329, %v331
    %339 = vmatprep.subr.mxu0 0.0
    %340 = vmatpush1.msra.mxu0 %v320
    %341 = vmatprep.subr.mxu0 0.0
    %342 = vmatpush1.msra.mxu0 %v319
    %343 = vmatprep.subr.mxu0 0.0
    %344 = vmatpush1.msra.mxu0 %v318
    %345 = vmatprep.subr.mxu0 0.0
    %346 = vmatpush1.msra.mxu0 %v317
    %347 = vmatprep.subr.mxu0 0.0
    %348 = vmatpush1.msra.mxu0 %v316
    %349 = vmatprep.subr.mxu0 0.0
    %350 = vmatpush1.msra.mxu0 %v315
    %351 = vmatprep.subr.mxu0 0.0
    %352 = vmatpush1.msra.mxu0 %v314
    %353 = vmatprep.subr.mxu0 0.0
    %354 = vmatpush1.msra.mxu0 %v313
    %355 = vmatprep.subr.mxu0 0.0
    %356 = vmatpush1.msra.mxu0 %v312
    %357 = vmatprep.subr.mxu0 0.0
    %358 = vmatpush1.msra.mxu0 %v311
    %359 = vmatprep.subr.mxu0 0.0
    %360 = vmatpush1.msra.mxu0 %v310
    %361 = vmatprep.subr.mxu0 0.0
    %362 = vmatpush1.msra.mxu0 %v309
    %363 = vmatprep.subr.mxu0 0.0
    %364 = vmatpush1.msra.mxu0 %v308
    %365 = vmatprep.subr.mxu0 0.0
    %366 = vmatpush1.msra.mxu0 %v307
    %367 = vmatprep.subr.mxu0 0.0
    %368 = vmatpush1.msra.mxu0 %v306
    %369 = vmatprep.subr.mxu0 0.0
    %370 = vmatpush1.msra.mxu0 %v305
    %371 = vmatprep.subr.mxu0 0.0
    %372 = vmatpush2.msra.mxu0 0.0
    %373 = vmatprep.subr.mxu0 0.0
    %374 = vmatpush2.msra.mxu0 0.0
    %375 = vmatprep.subr.mxu0 0.0
    %376 = vmatpush2.msra.mxu0 0.0
    %377 = vmatprep.subr.mxu0 0.0
    %378 = vmatpush2.msra.mxu0 0.0
    %379 = vmatprep.subr.mxu0 0.0
    %380 = vmatpush2.msra.mxu0 0.0
    %381 = vmatprep.subr.mxu0 0.0
    %382 = vmatpush2.msra.mxu0 0.0
    %383 = vmatprep.subr.mxu0 0.0
    %384 = vmatpush2.msra.mxu0 0.0
    %385 = vmatprep.subr.mxu0 0.0
    %386 = vmatpush2.msra.mxu0 0.0
    %387 = vmatprep.subr.mxu0 0.0
    %388 = vmatpush2.msra.mxu0 0.0
    %389 = vmatprep.subr.mxu0 0.0
    %390 = vmatpush2.msra.mxu0 0.0
    %391 = vmatprep.subr.mxu0 0.0
    %392 = vmatpush2.msra.mxu0 0.0
    %393 = vmatprep.subr.mxu0 0.0
    %394 = vmatpush2.msra.mxu0 0.0
    %395 = vmatprep.subr.mxu0 0.0
    %396 = vmatpush2.msra.mxu0 0.0
    %397 = vmatprep.subr.mxu0 0.0
    %398 = vmatpush2.msra.mxu0 0.0
    %399 = vmatprep.subr.mxu0 0.0
    %400 = vmatpush2.msra.mxu0 0.0
    %401 = vmatprep.subr.mxu0 0.0
    %402 = vmatpush2.msra.mxu0 0.0
    %403 = vmatprep.mubr.f32.mxu0 0.0
    %404 = vmatmul.mubr.f32.gmra.mxu0 %v324
    %v405 = vpop.f32.mrf.mxu0
    %v406 = vadd.f32 0.0, %v405
    %v407 = vpop.f32.mrf.mxu0
    %408 = vmatprep.mubr.f32.mxu0 0.0
    %409 = vmatmul.mubr.f32.gmra.mxu0 %v326
    %v410 = vpop.f32.mrf.mxu0
    %v411 = vadd.f32 0.0, %v410
    %v412 = vpop.f32.mrf.mxu0
    %413 = vmatprep.mubr.f32.mxu0 0.0
    %414 = vmatmul.mubr.f32.gmra.mxu0 %v328
    %v415 = vpop.f32.mrf.mxu0
    %v416 = vadd.f32 0.0, %v415
    %v417 = vpop.f32.mrf.mxu0
    %418 = vmatprep.mubr.f32.mxu0 0.0
    %419 = vmatmul.mubr.f32.gmra.mxu0 %v330
    %v420 = vpop.f32.mrf.mxu0
    %v421 = vadd.f32 0.0, %v420
    %v422 = vpop.f32.mrf.mxu0
    %423 = vmatprep.mubr.f32.mxu0 0.0
    %424 = vmatmul.mubr.f32.gmra.mxu0 %v332
    %v425 = vpop.f32.mrf.mxu0
    %v426 = vadd.f32 0.0, %v425
    %v427 = vpop.f32.mrf.mxu0
    %428 = vmatprep.mubr.f32.mxu0 0.0
    %429 = vmatmul.mubr.f32.gmra.mxu0 %v331
    %v430 = vpop.f32.mrf.mxu0
    %v431 = vadd.f32 0.0, %v430
    %v432 = vpop.f32.mrf.mxu0
    %433 = vdwg.mxu0
    %v434 = vadd.f32 %v276, %v406
    %v435 = vadd.f32 %v281, %v411
    %v436 = vadd.f32 %v286, %v416
    %v437 = vadd.f32 %v291, %v421
    %v438 = vadd.f32 %v296, %v426
    %v439 = vadd.f32 %v301, %v431
    %s440 = scalar_lea.vmem [#allocation2], 384
    %v441 = vld [vmem:[%s440] sm:$0xff]
    %v442 = vld [vmem:[%s440 + $0x8] sm:$0xff]
    %v443 = vld [vmem:[%s440 + $0x10] sm:$0xff]
    %v444 = vld [vmem:[%s440 + $0x18] sm:$0xff]
    %v445 = vld [vmem:[%s440 + $0x20] sm:$0xff]
    %v446 = vld [vmem:[%s440 + $0x28] sm:$0xff]
    %v447 = vld [vmem:[%s440 + $0x30] sm:$0xff]
    %v448 = vld [vmem:[%s440 + $0x38] sm:$0xff]
    %v449 = vld [vmem:[%s440 + $0x40] sm:$0xff]
    %v450 = vld [vmem:[%s440 + $0x48] sm:$0xff]
    %v451 = vld [vmem:[%s440 + $0x50] sm:$0xff]
    %v452 = vld [vmem:[%s440 + $0x58] sm:$0xff]
    %v453 = vld [vmem:[%s440 + $0x60] sm:$0xff]
    %v454 = vld [vmem:[%s440 + $0x68] sm:$0xff]
    %v455 = vld [vmem:[%s440 + $0x70] sm:$0xff]
    %v456 = vld [vmem:[%s440 + $0x78] sm:$0xff]
    %vm458 = vcmask 1044480
    %v459 = vrot.slane %v50, 3
    %v460 = vrot.slane %v51, 3
    %v461 = vsel %vm458, %v459, %v460
    %v462 = vrot.slane %v52, 3
    %v463 = vsel %vm458, %v460, %v462
    %v464 = vrot.slane %v53, 3
    %v465 = vsel %vm458, %v462, %v464
    %v466 = vrot.slane %v54, 3
    %v467 = vsel %vm458, %v464, %v466
    %v468 = vrot.slane %v55, 3
    %v469 = vsel %vm458, %v466, %v468
    %v470 = vrot.slane %v56, 3
    %v471 = vsel %vm458, %v468, %v470
    %478 = vmatprep.subr.mxu0 0.0
    %479 = vmatpush1.msra.mxu0 %v456
    %480 = vmatprep.subr.mxu0 0.0
    %481 = vmatpush1.msra.mxu0 %v455
    %482 = vmatprep.subr.mxu0 0.0
    %483 = vmatpush1.msra.mxu0 %v454
    %484 = vmatprep.subr.mxu0 0.0
    %485 = vmatpush1.msra.mxu0 %v453
    %486 = vmatprep.subr.mxu0 0.0
    %487 = vmatpush1.msra.mxu0 %v452
    %488 = vmatprep.subr.mxu0 0.0
    %489 = vmatpush1.msra.mxu0 %v451
    %490 = vmatprep.subr.mxu0 0.0
    %491 = vmatpush1.msra.mxu0 %v450
    %492 = vmatprep.subr.mxu0 0.0
    %493 = vmatpush1.msra.mxu0 %v449
    %494 = vmatprep.subr.mxu0 0.0
    %495 = vmatpush1.msra.mxu0 %v448
    %496 = vmatprep.subr.mxu0 0.0
    %497 = vmatpush1.msra.mxu0 %v447
    %498 = vmatprep.subr.mxu0 0.0
    %499 = vmatpush1.msra.mxu0 %v446
    %500 = vmatprep.subr.mxu0 0.0
    %501 = vmatpush1.msra.mxu0 %v445
    %502 = vmatprep.subr.mxu0 0.0
    %503 = vmatpush1.msra.mxu0 %v444
    %504 = vmatprep.subr.mxu0 0.0
    %505 = vmatpush1.msra.mxu0 %v443
    %506 = vmatprep.subr.mxu0 0.0
    %507 = vmatpush1.msra.mxu0 %v442
    %508 = vmatprep.subr.mxu0 0.0
    %509 = vmatpush1.msra.mxu0 %v441
    %510 = vmatprep.subr.mxu0 0.0
    %511 = vmatpush2.msra.mxu0 0.0
    %512 = vmatprep.subr.mxu0 0.0
    %513 = vmatpush2.msra.mxu0 0.0
    %514 = vmatprep.subr.mxu0 0.0
    %515 = vmatpush2.msra.mxu0 0.0
    %516 = vmatprep.subr.mxu0 0.0
    %517 = vmatpush2.msra.mxu0 0.0
    %518 = vmatprep.subr.mxu0 0.0
    %519 = vmatpush2.msra.mxu0 0.0
    %520 = vmatprep.subr.mxu0 0.0
    %521 = vmatpush2.msra.mxu0 0.0
    %522 = vmatprep.subr.mxu0 0.0
    %523 = vmatpush2.msra.mxu0 0.0
    %524 = vmatprep.subr.mxu0 0.0
    %525 = vmatpush2.msra.mxu0 0.0
    %526 = vmatprep.subr.mxu0 0.0
    %527 = vmatpush2.msra.mxu0 0.0
    %528 = vmatprep.subr.mxu0 0.0
    %529 = vmatpush2.msra.mxu0 0.0
    %530 = vmatprep.subr.mxu0 0.0
    %531 = vmatpush2.msra.mxu0 0.0
    %532 = vmatprep.subr.mxu0 0.0
    %533 = vmatpush2.msra.mxu0 0.0
    %534 = vmatprep.subr.mxu0 0.0
    %535 = vmatpush2.msra.mxu0 0.0
    %536 = vmatprep.subr.mxu0 0.0
    %537 = vmatpush2.msra.mxu0 0.0
    %538 = vmatprep.subr.mxu0 0.0
    %539 = vmatpush2.msra.mxu0 0.0
    %540 = vmatprep.subr.mxu0 0.0
    %541 = vmatpush2.msra.mxu0 0.0
    %542 = vmatprep.mubr.f32.mxu0 0.0
    %543 = vmatmul.mubr.f32.gmra.mxu0 %v461
    %v544 = vpop.f32.mrf.mxu0
    %v545 = vadd.f32 0.0, %v544
    %v546 = vpop.f32.mrf.mxu0
    %547 = vmatprep.mubr.f32.mxu0 0.0
    %548 = vmatmul.mubr.f32.gmra.mxu0 %v463
    %v549 = vpop.f32.mrf.mxu0
    %v550 = vadd.f32 0.0, %v549
    %v551 = vpop.f32.mrf.mxu0
    %552 = vmatprep.mubr.f32.mxu0 0.0
    %553 = vmatmul.mubr.f32.gmra.mxu0 %v465
    %v554 = vpop.f32.mrf.mxu0
    %v555 = vadd.f32 0.0, %v554
    %v556 = vpop.f32.mrf.mxu0
    %557 = vmatprep.mubr.f32.mxu0 0.0
    %558 = vmatmul.mubr.f32.gmra.mxu0 %v467
    %v559 = vpop.f32.mrf.mxu0
    %v560 = vadd.f32 0.0, %v559
    %v561 = vpop.f32.mrf.mxu0
    %562 = vmatprep.mubr.f32.mxu0 0.0
    %563 = vmatmul.mubr.f32.gmra.mxu0 %v469
    %v564 = vpop.f32.mrf.mxu0
    %v565 = vadd.f32 0.0, %v564
    %v566 = vpop.f32.mrf.mxu0
    %567 = vmatprep.mubr.f32.mxu0 0.0
    %568 = vmatmul.mubr.f32.gmra.mxu0 %v471
    %v569 = vpop.f32.mrf.mxu0
    %v570 = vadd.f32 0.0, %v569
    %v571 = vpop.f32.mrf.mxu0
    %572 = vdwg.mxu0
    %v573 = vadd.f32 %v434, %v545
    %v574 = vadd.f32 %v435, %v550
    %v575 = vadd.f32 %v436, %v555
    %v576 = vadd.f32 %v437, %v560
    %v577 = vadd.f32 %v438, %v565
    %v578 = vadd.f32 %v439, %v570
    %s579 = scalar_lea.vmem [#allocation2], 512
    %v580 = vld [vmem:[%s579] sm:$0xff]
    %v581 = vld [vmem:[%s579 + $0x8] sm:$0xff]
    %v582 = vld [vmem:[%s579 + $0x10] sm:$0xff]
    %v583 = vld [vmem:[%s579 + $0x18] sm:$0xff]
    %v584 = vld [vmem:[%s579 + $0x20] sm:$0xff]
    %v585 = vld [vmem:[%s579 + $0x28] sm:$0xff]
    %v586 = vld [vmem:[%s579 + $0x30] sm:$0xff]
    %v587 = vld [vmem:[%s579 + $0x38] sm:$0xff]
    %v588 = vld [vmem:[%s579 + $0x40] sm:$0xff]
    %v589 = vld [vmem:[%s579 + $0x48] sm:$0xff]
    %v590 = vld [vmem:[%s579 + $0x50] sm:$0xff]
    %v591 = vld [vmem:[%s579 + $0x58] sm:$0xff]
    %v592 = vld [vmem:[%s579 + $0x60] sm:$0xff]
    %v593 = vld [vmem:[%s579 + $0x68] sm:$0xff]
    %v594 = vld [vmem:[%s579 + $0x70] sm:$0xff]
    %v595 = vld [vmem:[%s579 + $0x78] sm:$0xff]
    %vm596 = vcmask 1043456
    %v597 = vrot.slane %v50, 4
    %v598 = vrot.slane %v51, 4
    %v599 = vsel %vm596, %v597, %v598
    %v600 = vrot.slane %v52, 4
    %v601 = vsel %vm596, %v598, %v600
    %v602 = vrot.slane %v53, 4
    %v603 = vsel %vm596, %v600, %v602
    %v604 = vrot.slane %v54, 4
    %v605 = vsel %vm596, %v602, %v604
    %v606 = vrot.slane %v55, 4
    %v607 = vsel %vm596, %v604, %v606
    %v608 = vrot.slane %v56, 4
    %v609 = vsel %vm596, %v606, %v608
    %616 = vmatprep.subr.mxu0 0.0
    %617 = vmatpush1.msra.mxu0 %v595
    %618 = vmatprep.subr.mxu0 0.0
    %619 = vmatpush1.msra.mxu0 %v594
    %620 = vmatprep.subr.mxu0 0.0
    %621 = vmatpush1.msra.mxu0 %v593
    %622 = vmatprep.subr.mxu0 0.0
    %623 = vmatpush1.msra.mxu0 %v592
    %624 = vmatprep.subr.mxu0 0.0
    %625 = vmatpush1.msra.mxu0 %v591
    %626 = vmatprep.subr.mxu0 0.0
    %627 = vmatpush1.msra.mxu0 %v590
    %628 = vmatprep.subr.mxu0 0.0
    %629 = vmatpush1.msra.mxu0 %v589
    %630 = vmatprep.subr.mxu0 0.0
    %631 = vmatpush1.msra.mxu0 %v588
    %632 = vmatprep.subr.mxu0 0.0
    %633 = vmatpush1.msra.mxu0 %v587
    %634 = vmatprep.subr.mxu0 0.0
    %635 = vmatpush1.msra.mxu0 %v586
    %636 = vmatprep.subr.mxu0 0.0
    %637 = vmatpush1.msra.mxu0 %v585
    %638 = vmatprep.subr.mxu0 0.0
    %639 = vmatpush1.msra.mxu0 %v584
    %640 = vmatprep.subr.mxu0 0.0
    %641 = vmatpush1.msra.mxu0 %v583
    %642 = vmatprep.subr.mxu0 0.0
    %643 = vmatpush1.msra.mxu0 %v582
    %644 = vmatprep.subr.mxu0 0.0
    %645 = vmatpush1.msra.mxu0 %v581
    %646 = vmatprep.subr.mxu0 0.0
    %647 = vmatpush1.msra.mxu0 %v580
    %648 = vmatprep.subr.mxu0 0.0
    %649 = vmatpush2.msra.mxu0 0.0
    %650 = vmatprep.subr.mxu0 0.0
    %651 = vmatpush2.msra.mxu0 0.0
    %652 = vmatprep.subr.mxu0 0.0
    %653 = vmatpush2.msra.mxu0 0.0
    %654 = vmatprep.subr.mxu0 0.0
    %655 = vmatpush2.msra.mxu0 0.0
    %656 = vmatprep.subr.mxu0 0.0
    %657 = vmatpush2.msra.mxu0 0.0
    %658 = vmatprep.subr.mxu0 0.0
    %659 = vmatpush2.msra.mxu0 0.0
    %660 = vmatprep.subr.mxu0 0.0
    %661 = vmatpush2.msra.mxu0 0.0
    %662 = vmatprep.subr.mxu0 0.0
    %663 = vmatpush2.msra.mxu0 0.0
    %664 = vmatprep.subr.mxu0 0.0
    %665 = vmatpush2.msra.mxu0 0.0
    %666 = vmatprep.subr.mxu0 0.0
    %667 = vmatpush2.msra.mxu0 0.0
    %668 = vmatprep.subr.mxu0 0.0
    %669 = vmatpush2.msra.mxu0 0.0
    %670 = vmatprep.subr.mxu0 0.0
    %671 = vmatpush2.msra.mxu0 0.0
    %672 = vmatprep.subr.mxu0 0.0
    %673 = vmatpush2.msra.mxu0 0.0
    %674 = vmatprep.subr.mxu0 0.0
    %675 = vmatpush2.msra.mxu0 0.0
    %676 = vmatprep.subr.mxu0 0.0
    %677 = vmatpush2.msra.mxu0 0.0
    %678 = vmatprep.subr.mxu0 0.0
    %679 = vmatpush2.msra.mxu0 0.0
    %680 = vmatprep.mubr.f32.mxu0 0.0
    %681 = vmatmul.mubr.f32.gmra.mxu0 %v599
    %v682 = vpop.f32.mrf.mxu0
    %v683 = vadd.f32 0.0, %v682
    %v684 = vpop.f32.mrf.mxu0
    %685 = vmatprep.mubr.f32.mxu0 0.0
    %686 = vmatmul.mubr.f32.gmra.mxu0 %v601
    %v687 = vpop.f32.mrf.mxu0
    %v688 = vadd.f32 0.0, %v687
    %v689 = vpop.f32.mrf.mxu0
    %690 = vmatprep.mubr.f32.mxu0 0.0
    %691 = vmatmul.mubr.f32.gmra.mxu0 %v603
    %v692 = vpop.f32.mrf.mxu0
    %v693 = vadd.f32 0.0, %v692
    %v694 = vpop.f32.mrf.mxu0
    %695 = vmatprep.mubr.f32.mxu0 0.0
    %696 = vmatmul.mubr.f32.gmra.mxu0 %v605
    %v697 = vpop.f32.mrf.mxu0
    %v698 = vadd.f32 0.0, %v697
    %v699 = vpop.f32.mrf.mxu0
    %700 = vmatprep.mubr.f32.mxu0 0.0
    %701 = vmatmul.mubr.f32.gmra.mxu0 %v607
    %v702 = vpop.f32.mrf.mxu0
    %v703 = vadd.f32 0.0, %v702
    %v704 = vpop.f32.mrf.mxu0
    %705 = vmatprep.mubr.f32.mxu0 0.0
    %706 = vmatmul.mubr.f32.gmra.mxu0 %v609
    %v707 = vpop.f32.mrf.mxu0
    %v708 = vadd.f32 0.0, %v707
    %v709 = vpop.f32.mrf.mxu0
    %710 = vdwg.mxu0
    %v711 = vadd.f32 %v573, %v683
    %v712 = vadd.f32 %v574, %v688
    %v713 = vadd.f32 %v575, %v693
    %v714 = vadd.f32 %v576, %v698
    %v715 = vadd.f32 %v577, %v703
    %v716 = vadd.f32 %v578, %v708
    %v720 = vrot.slane %v714, 4
    %v721 = vrot.slane %v715, 4
    %v722 = vsel %vm596, %v720, %v721
    %v723 = vrot.slane %v716, 4
    %v724 = vsel %vm596, %v721, %v723
    %v729 = vsel %vm458, %v713, %v720
    %v730 = vld [vmem:[#allocation5] sm:$0x1]
    %v731 = vlaneseq
    %v732 = vshrl.u32 %v731, 7
    %v733 = vsub.s32 0, %v732
    %v734 = vrot.slane %v730, %v733
    %v735 = vadd.f32 %v711, %v734
    %v736 = vadd.f32 %v712, %v734
    %v737 = vadd.f32 %v729, %v734
    %v738 = vadd.f32 %v722, %v734
    %v739 = vadd.f32 %v724, %v734
    %v740 = vadd.f32 %v723, %v734
    %v741 = vld [vmem:[#allocation5 + $0x1] sm:$0x1]
    %v742 = vlaneseq
    %v743 = vshrl.u32 %v742, 7
    %v744 = vsub.s32 0, %v743
    %v745 = vrot.slane %v741, %v744
    %v746 = vmul.f32 %v735, %v745
    %v747 = vmul.f32 %v736, %v745
    %v748 = vmul.f32 %v737, %v745
    %v749 = vmul.f32 %v738, %v745
    %v750 = vmul.f32 %v739, %v745
    %v751 = vmul.f32 %v740, %v745
    %v752 = vld [vmem:[#allocation5 + $0x2] sm:$0x1]
    %v753 = vlaneseq
    %v754 = vshrl.u32 %v753, 7
    %v755 = vsub.s32 0, %v754
    %v756 = vrot.slane %v752, %v755
    %v757 = vadd.f32 %v746, %v756
    %v758 = vadd.f32 %v747, %v756
    %v759 = vadd.f32 %v748, %v756
    %v760 = vadd.f32 %v749, %v756
    %v761 = vadd.f32 %v750, %v756
    %v762 = vadd.f32 %v751, %v756
    %v763 = vmax.f32 %v757, 0.0
    %v764 = vmax.f32 %v758, 0.0
    %v765 = vmax.f32 %v759, 0.0
    %v766 = vmax.f32 %v760, 0.0
    %v767 = vmax.f32 %v761, 0.0
    %v768 = vmax.f32 %v762, 0.0
    %s769 = scalar_lea.vmem [#allocation2], 640
    %v770 = vld [vmem:[%s769] sm:$0xff]
    %v771 = vld [vmem:[%s769 + $0x8] sm:$0xff]
    %v772 = vld [vmem:[%s769 + $0x10] sm:$0xff]
    %v773 = vld [vmem:[%s769 + $0x18] sm:$0xff]
    %v774 = vld [vmem:[%s769 + $0x20] sm:$0xff]
    %v775 = vld [vmem:[%s769 + $0x28] sm:$0xff]
    %v776 = vld [vmem:[%s769 + $0x30] sm:$0xff]
    %v777 = vld [vmem:[%s769 + $0x38] sm:$0xff]
    %v778 = vld [vmem:[%s769 + $0x40] sm:$0xff]
    %v779 = vld [vmem:[%s769 + $0x48] sm:$0xff]
    %v780 = vld [vmem:[%s769 + $0x50] sm:$0xff]
    %v781 = vld [vmem:[%s769 + $0x58] sm:$0xff]
    %v782 = vld [vmem:[%s769 + $0x60] sm:$0xff]
    %v783 = vld [vmem:[%s769 + $0x68] sm:$0xff]
    %v784 = vld [vmem:[%s769 + $0x70] sm:$0xff]
    %v785 = vld [vmem:[%s769 + $0x78] sm:$0xff]
    %v786 = vld [vmem:[#allocation5 + $0x3] sm:$0x1]
    %v787 = vlaneseq
    %v788 = vshrl.u32 %v787, 7
    %v789 = vsub.s32 0, %v788
    %v790 = vrot.slane %v786, %v789
    %791 = vmatprep.subr.mxu0 0.0
    %792 = vmatpush1.msra.mxu0 %v785
    %793 = vmatprep.subr.mxu0 0.0
    %794 = vmatpush1.msra.mxu0 %v784
    %795 = vmatprep.subr.mxu0 0.0
    %796 = vmatpush1.msra.mxu0 %v783
    %797 = vmatprep.subr.mxu0 0.0
    %798 = vmatpush1.msra.mxu0 %v782
    %799 = vmatprep.subr.mxu0 0.0
    %800 = vmatpush1.msra.mxu0 %v781
    %801 = vmatprep.subr.mxu0 0.0
    %802 = vmatpush1.msra.mxu0 %v780
    %803 = vmatprep.subr.mxu0 0.0
    %804 = vmatpush1.msra.mxu0 %v779
    %805 = vmatprep.subr.mxu0 0.0
    %806 = vmatpush1.msra.mxu0 %v778
    %807 = vmatprep.subr.mxu0 0.0
    %808 = vmatpush1.msra.mxu0 %v777
    %809 = vmatprep.subr.mxu0 0.0
    %810 = vmatpush1.msra.mxu0 %v776
    %811 = vmatprep.subr.mxu0 0.0
    %812 = vmatpush1.msra.mxu0 %v775
    %813 = vmatprep.subr.mxu0 0.0
    %814 = vmatpush1.msra.mxu0 %v774
    %815 = vmatprep.subr.mxu0 0.0
    %816 = vmatpush1.msra.mxu0 %v773
    %817 = vmatprep.subr.mxu0 0.0
    %818 = vmatpush1.msra.mxu0 %v772
    %819 = vmatprep.subr.mxu0 0.0
    %820 = vmatpush1.msra.mxu0 %v771
    %821 = vmatprep.subr.mxu0 0.0
    %822 = vmatpush1.msra.mxu0 %v770
    %823 = vmatprep.subr.mxu0 0.0
    %824 = vmatpush2.msra.mxu0 0.0
    %825 = vmatprep.subr.mxu0 0.0
    %826 = vmatpush2.msra.mxu0 0.0
    %827 = vmatprep.subr.mxu0 0.0
    %828 = vmatpush2.msra.mxu0 0.0
    %829 = vmatprep.subr.mxu0 0.0
    %830 = vmatpush2.msra.mxu0 0.0
    %831 = vmatprep.subr.mxu0 0.0
    %832 = vmatpush2.msra.mxu0 0.0
    %833 = vmatprep.subr.mxu0 0.0
    %834 = vmatpush2.msra.mxu0 0.0
    %835 = vmatprep.subr.mxu0 0.0
    %836 = vmatpush2.msra.mxu0 0.0
    %837 = vmatprep.subr.mxu0 0.0
    %838 = vmatpush2.msra.mxu0 0.0
    %839 = vmatprep.subr.mxu0 0.0
    %840 = vmatpush2.msra.mxu0 0.0
    %841 = vmatprep.subr.mxu0 0.0
    %842 = vmatpush2.msra.mxu0 0.0
    %843 = vmatprep.subr.mxu0 0.0
    %844 = vmatpush2.msra.mxu0 0.0
    %845 = vmatprep.subr.mxu0 0.0
    %846 = vmatpush2.msra.mxu0 0.0
    %847 = vmatprep.subr.mxu0 0.0
    %848 = vmatpush2.msra.mxu0 0.0
    %849 = vmatprep.subr.mxu0 0.0
    %850 = vmatpush2.msra.mxu0 0.0
    %851 = vmatprep.subr.mxu0 0.0
    %852 = vmatpush2.msra.mxu0 0.0
    %853 = vmatprep.subr.mxu0 0.0
    %854 = vmatpush2.msra.mxu0 0.0
    %855 = vmatprep.mubr.f32.mxu0 0.0
    %856 = vmatmul.mubr.f32.gmra.mxu0 %v763
    %v857 = vpop.f32.mrf.mxu0
    %v858 = vadd.f32 %v790, %v857
    %v859 = vpop.f32.mrf.mxu0
    %860 = vmatprep.mubr.f32.mxu0 0.0
    %861 = vmatmul.mubr.f32.gmra.mxu0 %v764
    %v862 = vpop.f32.mrf.mxu0
    %v863 = vadd.f32 %v790, %v862
    %v864 = vpop.f32.mrf.mxu0
    %865 = vmatprep.mubr.f32.mxu0 0.0
    %866 = vmatmul.mubr.f32.gmra.mxu0 %v765
    %v867 = vpop.f32.mrf.mxu0
    %v868 = vadd.f32 %v790, %v867
    %v869 = vpop.f32.mrf.mxu0
    %870 = vmatprep.mubr.f32.mxu0 0.0
    %871 = vmatmul.mubr.f32.gmra.mxu0 %v766
    %v872 = vpop.f32.mrf.mxu0
    %v873 = vadd.f32 %v790, %v872
    %v874 = vpop.f32.mrf.mxu0
    %875 = vmatprep.mubr.f32.mxu0 0.0
    %876 = vmatmul.mubr.f32.gmra.mxu0 %v767
    %v877 = vpop.f32.mrf.mxu0
    %v878 = vadd.f32 %v790, %v877
    %v879 = vpop.f32.mrf.mxu0
    %880 = vmatprep.mubr.f32.mxu0 0.0
    %881 = vmatmul.mubr.f32.gmra.mxu0 %v768
    %v882 = vpop.f32.mrf.mxu0
    %v883 = vadd.f32 %v790, %v882
    %v884 = vpop.f32.mrf.mxu0
    %885 = vdwg.mxu0
    %v886 = vld [vmem:[#allocation5 + $0x4] sm:$0x1]
    %v887 = vlaneseq
    %v888 = vshrl.u32 %v887, 7
    %v889 = vsub.s32 0, %v888
    %v890 = vrot.slane %v886, %v889
    %v891 = vmul.f32 %v763, %v890
    %v892 = vmul.f32 %v764, %v890
    %v893 = vmul.f32 %v765, %v890
    %v894 = vmul.f32 %v766, %v890
    %v895 = vmul.f32 %v767, %v890
    %v896 = vmul.f32 %v768, %v890
    %v897 = vld [vmem:[#allocation5 + $0x5] sm:$0x1]
    %v898 = vlaneseq
    %v899 = vshrl.u32 %v898, 7
    %v900 = vsub.s32 0, %v899
    %v901 = vrot.slane %v897, %v900
    %v902 = vadd.f32 %v891, %v901
    %v903 = vadd.f32 %v892, %v901
    %v904 = vadd.f32 %v893, %v901
    %v905 = vadd.f32 %v894, %v901
    %v906 = vadd.f32 %v895, %v901
    %v907 = vadd.f32 %v896, %v901
    %v908 = vmax.f32 %v902, 0.0
    %v909 = vmax.f32 %v903, 0.0
    %v910 = vmax.f32 %v904, 0.0
    %v911 = vmax.f32 %v905, 0.0
    %v912 = vmax.f32 %v906, 0.0
    %v913 = vmax.f32 %v907, 0.0
    %s914 = scalar_lea.vmem [#allocation2], 768
    %v915 = vld [vmem:[%s914] sm:$0xff]
    %v916 = vld [vmem:[%s914 + $0x8] sm:$0xff]
    %v917 = vld [vmem:[%s914 + $0x10] sm:$0xff]
    %v918 = vld [vmem:[%s914 + $0x18] sm:$0xff]
    %v919 = vld [vmem:[%s914 + $0x20] sm:$0xff]
    %v920 = vld [vmem:[%s914 + $0x28] sm:$0xff]
    %v921 = vld [vmem:[%s914 + $0x30] sm:$0xff]
    %v922 = vld [vmem:[%s914 + $0x38] sm:$0xff]
    %v923 = vld [vmem:[%s914 + $0x40] sm:$0xff]
    %v924 = vld [vmem:[%s914 + $0x48] sm:$0xff]
    %v925 = vld [vmem:[%s914 + $0x50] sm:$0xff]
    %v926 = vld [vmem:[%s914 + $0x58] sm:$0xff]
    %v927 = vld [vmem:[%s914 + $0x60] sm:$0xff]
    %v928 = vld [vmem:[%s914 + $0x68] sm:$0xff]
    %v929 = vld [vmem:[%s914 + $0x70] sm:$0xff]
    %v930 = vld [vmem:[%s914 + $0x78] sm:$0xff]
    %931 = vmatprep.subr.mxu0 0.0
    %932 = vmatpush1.msra.mxu0 %v930
    %933 = vmatprep.subr.mxu0 0.0
    %934 = vmatpush1.msra.mxu0 %v929
    %935 = vmatprep.subr.mxu0 0.0
    %936 = vmatpush1.msra.mxu0 %v928
    %937 = vmatprep.subr.mxu0 0.0
    %938 = vmatpush1.msra.mxu0 %v927
    %939 = vmatprep.subr.mxu0 0.0
    %940 = vmatpush1.msra.mxu0 %v926
    %941 = vmatprep.subr.mxu0 0.0
    %942 = vmatpush1.msra.mxu0 %v925
    %943 = vmatprep.subr.mxu0 0.0
    %944 = vmatpush1.msra.mxu0 %v924
    %945 = vmatprep.subr.mxu0 0.0
    %946 = vmatpush1.msra.mxu0 %v923
    %947 = vmatprep.subr.mxu0 0.0
    %948 = vmatpush1.msra.mxu0 %v922
    %949 = vmatprep.subr.mxu0 0.0
    %950 = vmatpush1.msra.mxu0 %v921
    %951 = vmatprep.subr.mxu0 0.0
    %952 = vmatpush1.msra.mxu0 %v920
    %953 = vmatprep.subr.mxu0 0.0
    %954 = vmatpush1.msra.mxu0 %v919
    %955 = vmatprep.subr.mxu0 0.0
    %956 = vmatpush1.msra.mxu0 %v918
    %957 = vmatprep.subr.mxu0 0.0
    %958 = vmatpush1.msra.mxu0 %v917
    %959 = vmatprep.subr.mxu0 0.0
    %960 = vmatpush1.msra.mxu0 %v916
    %961 = vmatprep.subr.mxu0 0.0
    %962 = vmatpush1.msra.mxu0 %v915
    %963 = vmatprep.subr.mxu0 0.0
    %964 = vmatpush2.msra.mxu0 0.0
    %965 = vmatprep.subr.mxu0 0.0
    %966 = vmatpush2.msra.mxu0 0.0
    %967 = vmatprep.subr.mxu0 0.0
    %968 = vmatpush2.msra.mxu0 0.0
    %969 = vmatprep.subr.mxu0 0.0
    %970 = vmatpush2.msra.mxu0 0.0
    %971 = vmatprep.subr.mxu0 0.0
    %972 = vmatpush2.msra.mxu0 0.0
    %973 = vmatprep.subr.mxu0 0.0
    %974 = vmatpush2.msra.mxu0 0.0
    %975 = vmatprep.subr.mxu0 0.0
    %976 = vmatpush2.msra.mxu0 0.0
    %977 = vmatprep.subr.mxu0 0.0
    %978 = vmatpush2.msra.mxu0 0.0
    %979 = vmatprep.subr.mxu0 0.0
    %980 = vmatpush2.msra.mxu0 0.0
    %981 = vmatprep.subr.mxu0 0.0
    %982 = vmatpush2.msra.mxu0 0.0
    %983 = vmatprep.subr.mxu0 0.0
    %984 = vmatpush2.msra.mxu0 0.0
    %985 = vmatprep.subr.mxu0 0.0
    %986 = vmatpush2.msra.mxu0 0.0
    %987 = vmatprep.subr.mxu0 0.0
    %988 = vmatpush2.msra.mxu0 0.0
    %989 = vmatprep.subr.mxu0 0.0
    %990 = vmatpush2.msra.mxu0 0.0
    %991 = vmatprep.subr.mxu0 0.0
    %992 = vmatpush2.msra.mxu0 0.0
    %993 = vmatprep.subr.mxu0 0.0
    %994 = vmatpush2.msra.mxu0 0.0
    %995 = vmatprep.mubr.f32.mxu0 0.0
    %996 = vmatmul.mubr.f32.gmra.mxu0 %v908
    %v997 = vpop.f32.mrf.mxu0
    %v998 = vadd.f32 0.0, %v997
    %v999 = vpop.f32.mrf.mxu0
    %1000 = vmatprep.mubr.f32.mxu0 0.0
    %1001 = vmatmul.mubr.f32.gmra.mxu0 %v909
    %v1002 = vpop.f32.mrf.mxu0
    %v1003 = vadd.f32 0.0, %v1002
    %v1004 = vpop.f32.mrf.mxu0
    %1005 = vmatprep.mubr.f32.mxu0 0.0
    %1006 = vmatmul.mubr.f32.gmra.mxu0 %v910
    %v1007 = vpop.f32.mrf.mxu0
    %v1008 = vadd.f32 0.0, %v1007
    %v1009 = vpop.f32.mrf.mxu0
    %1010 = vmatprep.mubr.f32.mxu0 0.0
    %1011 = vmatmul.mubr.f32.gmra.mxu0 %v911
    %v1012 = vpop.f32.mrf.mxu0
    %v1013 = vadd.f32 0.0, %v1012
    %v1014 = vpop.f32.mrf.mxu0
    %1015 = vmatprep.mubr.f32.mxu0 0.0
    %1016 = vmatmul.mubr.f32.gmra.mxu0 %v912
    %v1017 = vpop.f32.mrf.mxu0
    %v1018 = vadd.f32 0.0, %v1017
    %v1019 = vpop.f32.mrf.mxu0
    %1020 = vmatprep.mubr.f32.mxu0 0.0
    %1021 = vmatmul.mubr.f32.gmra.mxu0 %v913
    %v1022 = vpop.f32.mrf.mxu0
    %v1023 = vadd.f32 0.0, %v1022
    %v1024 = vpop.f32.mrf.mxu0
    %1025 = vdwg.mxu0
    %v1026 = vld [vmem:[#allocation5 + $0x6] sm:$0x1]
    %v1027 = vlaneseq
    %v1028 = vshrl.u32 %v1027, 7
    %v1029 = vsub.s32 0, %v1028
    %v1030 = vrot.slane %v1026, %v1029
    %v1031 = vmul.f32 %v998, %v1030
    %v1032 = vmul.f32 %v1003, %v1030
    %v1033 = vmul.f32 %v1008, %v1030
    %v1034 = vmul.f32 %v1013, %v1030
    %v1035 = vmul.f32 %v1018, %v1030
    %v1036 = vmul.f32 %v1023, %v1030
    %v1037 = vld [vmem:[#allocation5 + $0x7] sm:$0x1]
    %v1038 = vlaneseq
    %v1039 = vshrl.u32 %v1038, 7
    %v1040 = vsub.s32 0, %v1039
    %v1041 = vrot.slane %v1037, %v1040
    %v1042 = vadd.f32 %v1031, %v1041
    %v1043 = vadd.f32 %v1032, %v1041
    %v1044 = vadd.f32 %v1033, %v1041
    %v1045 = vadd.f32 %v1034, %v1041
    %v1046 = vadd.f32 %v1035, %v1041
    %v1047 = vadd.f32 %v1036, %v1041
    %v1048 = vmax.f32 %v1042, 0.0
    %v1049 = vmax.f32 %v1043, 0.0
    %v1050 = vmax.f32 %v1044, 0.0
    %v1051 = vmax.f32 %v1045, 0.0
    %v1052 = vmax.f32 %v1046, 0.0
    %v1053 = vmax.f32 %v1047, 0.0
    %vm1057 = vcmask 1040384
    %v1058 = vrot.slane %v1048, 7
    %v1059 = vrot.slane %v1049, 7
    %v1060 = vsel %vm1057, %v1058, %v1059
    %v1061 = vrot.slane %v1050, 7
    %v1062 = vsel %vm1057, %v1059, %v1061
    %vm1069 = vcmask 1042432
    %v1070 = vrot.slane %v1050, 5
    %v1071 = vrot.slane %v1051, 5
    %v1072 = vsel %vm1069, %v1070, %v1071
    %v1073 = vrot.slane %v1052, 5
    %v1074 = vsel %vm1069, %v1071, %v1073
    %v1075 = vrot.slane %v1053, 5
    %v1076 = vsel %vm1069, %v1073, %v1075
    %v1080 = vsel %vm1057, 0.0, %v1058
    %v1081 = vsel %vm321, %v1062, 0.0
    %v1082 = vsel %vm96, %v1081, 0.0
    %v1083 = vsel %vm458, %v1076, 0.0
    %s1084 = scalar_lea.vmem [#allocation2], 896
    %v1085 = vld [vmem:[%s1084] sm:$0xff]
    %v1086 = vld [vmem:[%s1084 + $0x8] sm:$0xff]
    %v1087 = vld [vmem:[%s1084 + $0x10] sm:$0xff]
    %v1088 = vld [vmem:[%s1084 + $0x18] sm:$0xff]
    %v1089 = vld [vmem:[%s1084 + $0x20] sm:$0xff]
    %v1090 = vld [vmem:[%s1084 + $0x28] sm:$0xff]
    %v1091 = vld [vmem:[%s1084 + $0x30] sm:$0xff]
    %v1092 = vld [vmem:[%s1084 + $0x38] sm:$0xff]
    %v1093 = vld [vmem:[%s1084 + $0x40] sm:$0xff]
    %v1094 = vld [vmem:[%s1084 + $0x48] sm:$0xff]
    %v1095 = vld [vmem:[%s1084 + $0x50] sm:$0xff]
    %v1096 = vld [vmem:[%s1084 + $0x58] sm:$0xff]
    %v1097 = vld [vmem:[%s1084 + $0x60] sm:$0xff]
    %v1098 = vld [vmem:[%s1084 + $0x68] sm:$0xff]
    %v1099 = vld [vmem:[%s1084 + $0x70] sm:$0xff]
    %v1100 = vld [vmem:[%s1084 + $0x78] sm:$0xff]
    %s1101 = scalar_lea.vmem [#allocation2], 1024
    %v1102 = vld [vmem:[%s1101] sm:$0xff]
    %v1103 = vld [vmem:[%s1101 + $0x8] sm:$0xff]
    %v1104 = vld [vmem:[%s1101 + $0x10] sm:$0xff]
    %v1105 = vld [vmem:[%s1101 + $0x18] sm:$0xff]
    %v1106 = vld [vmem:[%s1101 + $0x20] sm:$0xff]
    %v1107 = vld [vmem:[%s1101 + $0x28] sm:$0xff]
    %v1108 = vld [vmem:[%s1101 + $0x30] sm:$0xff]
    %v1109 = vld [vmem:[%s1101 + $0x38] sm:$0xff]
    %v1110 = vld [vmem:[%s1101 + $0x40] sm:$0xff]
    %v1111 = vld [vmem:[%s1101 + $0x48] sm:$0xff]
    %v1112 = vld [vmem:[%s1101 + $0x50] sm:$0xff]
    %v1113 = vld [vmem:[%s1101 + $0x58] sm:$0xff]
    %v1114 = vld [vmem:[%s1101 + $0x60] sm:$0xff]
    %v1115 = vld [vmem:[%s1101 + $0x68] sm:$0xff]
    %v1116 = vld [vmem:[%s1101 + $0x70] sm:$0xff]
    %v1117 = vld [vmem:[%s1101 + $0x78] sm:$0xff]
    %v1121 = vrot.slane %v1080, 1
    %v1122 = vrot.slane %v1060, 1
    %v1123 = vsel %vm96, %v1121, %v1122
    %v1124 = vrot.slane %v1082, 1
    %v1125 = vsel %vm96, %v1122, %v1124
    %v1126 = vrot.slane %v1072, 1
    %v1127 = vsel %vm96, %v1124, %v1126
    %v1128 = vrot.slane %v1074, 1
    %v1129 = vsel %vm96, %v1126, %v1128
    %v1130 = vrot.slane %v1083, 1
    %v1131 = vsel %vm96, %v1128, %v1130
    %1138 = vmatprep.subr.mxu0 0.0
    %1139 = vmatpush1.msra.mxu0 %v1117
    %1140 = vmatprep.subr.mxu0 0.0
    %1141 = vmatpush1.msra.mxu0 %v1116
    %1142 = vmatprep.subr.mxu0 0.0
    %1143 = vmatpush1.msra.mxu0 %v1115
    %1144 = vmatprep.subr.mxu0 0.0
    %1145 = vmatpush1.msra.mxu0 %v1114
    %1146 = vmatprep.subr.mxu0 0.0
    %1147 = vmatpush1.msra.mxu0 %v1113
    %1148 = vmatprep.subr.mxu0 0.0
    %1149 = vmatpush1.msra.mxu0 %v1112
    %1150 = vmatprep.subr.mxu0 0.0
    %1151 = vmatpush1.msra.mxu0 %v1111
    %1152 = vmatprep.subr.mxu0 0.0
    %1153 = vmatpush1.msra.mxu0 %v1110
    %1154 = vmatprep.subr.mxu0 0.0
    %1155 = vmatpush1.msra.mxu0 %v1109
    %1156 = vmatprep.subr.mxu0 0.0
    %1157 = vmatpush1.msra.mxu0 %v1108
    %1158 = vmatprep.subr.mxu0 0.0
    %1159 = vmatpush1.msra.mxu0 %v1107
    %1160 = vmatprep.subr.mxu0 0.0
    %1161 = vmatpush1.msra.mxu0 %v1106
    %1162 = vmatprep.subr.mxu0 0.0
    %1163 = vmatpush1.msra.mxu0 %v1105
    %1164 = vmatprep.subr.mxu0 0.0
    %1165 = vmatpush1.msra.mxu0 %v1104
    %1166 = vmatprep.subr.mxu0 0.0
    %1167 = vmatpush1.msra.mxu0 %v1103
    %1168 = vmatprep.subr.mxu0 0.0
    %1169 = vmatpush1.msra.mxu0 %v1102
    %1170 = vmatprep.subr.mxu0 0.0
    %1171 = vmatpush2.msra.mxu0 0.0
    %1172 = vmatprep.subr.mxu0 0.0
    %1173 = vmatpush2.msra.mxu0 0.0
    %1174 = vmatprep.subr.mxu0 0.0
    %1175 = vmatpush2.msra.mxu0 0.0
    %1176 = vmatprep.subr.mxu0 0.0
    %1177 = vmatpush2.msra.mxu0 0.0
    %1178 = vmatprep.subr.mxu0 0.0
    %1179 = vmatpush2.msra.mxu0 0.0
    %1180 = vmatprep.subr.mxu0 0.0
    %1181 = vmatpush2.msra.mxu0 0.0
    %1182 = vmatprep.subr.mxu0 0.0
    %1183 = vmatpush2.msra.mxu0 0.0
    %1184 = vmatprep.subr.mxu0 0.0
    %1185 = vmatpush2.msra.mxu0 0.0
    %1186 = vmatprep.subr.mxu0 0.0
    %1187 = vmatpush2.msra.mxu0 0.0
    %1188 = vmatprep.subr.mxu0 0.0
    %1189 = vmatpush2.msra.mxu0 0.0
    %1190 = vmatprep.subr.mxu0 0.0
    %1191 = vmatpush2.msra.mxu0 0.0
    %1192 = vmatprep.subr.mxu0 0.0
    %1193 = vmatpush2.msra.mxu0 0.0
    %1194 = vmatprep.subr.mxu0 0.0
    %1195 = vmatpush2.msra.mxu0 0.0
    %1196 = vmatprep.subr.mxu0 0.0
    %1197 = vmatpush2.msra.mxu0 0.0
    %1198 = vmatprep.subr.mxu0 0.0
    %1199 = vmatpush2.msra.mxu0 0.0
    %1200 = vmatprep.subr.mxu0 0.0
    %1201 = vmatpush2.msra.mxu0 0.0
    %1202 = vmatprep.mubr.f32.mxu0 0.0
    %1203 = vmatmul.mubr.f32.gmra.mxu0 %v1123
    %v1204 = vpop.f32.mrf.mxu0
    %v1205 = vadd.f32 0.0, %v1204
    %v1206 = vpop.f32.mrf.mxu0
    %1207 = vmatprep.mubr.f32.mxu0 0.0
    %1208 = vmatmul.mubr.f32.gmra.mxu0 %v1125
    %v1209 = vpop.f32.mrf.mxu0
    %v1210 = vadd.f32 0.0, %v1209
    %v1211 = vpop.f32.mrf.mxu0
    %1212 = vmatprep.mubr.f32.mxu0 0.0
    %1213 = vmatmul.mubr.f32.gmra.mxu0 %v1127
    %v1214 = vpop.f32.mrf.mxu0
    %v1215 = vadd.f32 0.0, %v1214
    %v1216 = vpop.f32.mrf.mxu0
    %1217 = vmatprep.mubr.f32.mxu0 0.0
    %1218 = vmatmul.mubr.f32.gmra.mxu0 %v1129
    %v1219 = vpop.f32.mrf.mxu0
    %v1220 = vadd.f32 0.0, %v1219
    %v1221 = vpop.f32.mrf.mxu0
    %1222 = vmatprep.mubr.f32.mxu0 0.0
    %1223 = vmatmul.mubr.f32.gmra.mxu0 %v1131
    %v1224 = vpop.f32.mrf.mxu0
    %v1225 = vadd.f32 0.0, %v1224
    %v1226 = vpop.f32.mrf.mxu0
    %1227 = vmatprep.mubr.f32.mxu0 0.0
    %1228 = vmatmul.mubr.f32.gmra.mxu0 %v1130
    %v1229 = vpop.f32.mrf.mxu0
    %v1230 = vadd.f32 0.0, %v1229
    %v1231 = vpop.f32.mrf.mxu0
    %1232 = vdwg.mxu0
    %1233 = vmatprep.subr.mxu0 0.0
    %1234 = vmatpush1.msra.mxu0 %v1100
    %1235 = vmatprep.subr.mxu0 0.0
    %1236 = vmatpush1.msra.mxu0 %v1099
    %1237 = vmatprep.subr.mxu0 0.0
    %1238 = vmatpush1.msra.mxu0 %v1098
    %1239 = vmatprep.subr.mxu0 0.0
    %1240 = vmatpush1.msra.mxu0 %v1097
    %1241 = vmatprep.subr.mxu0 0.0
    %1242 = vmatpush1.msra.mxu0 %v1096
    %1243 = vmatprep.subr.mxu0 0.0
    %1244 = vmatpush1.msra.mxu0 %v1095
    %1245 = vmatprep.subr.mxu0 0.0
    %1246 = vmatpush1.msra.mxu0 %v1094
    %1247 = vmatprep.subr.mxu0 0.0
    %1248 = vmatpush1.msra.mxu0 %v1093
    %1249 = vmatprep.subr.mxu0 0.0
    %1250 = vmatpush1.msra.mxu0 %v1092
    %1251 = vmatprep.subr.mxu0 0.0
    %1252 = vmatpush1.msra.mxu0 %v1091
    %1253 = vmatprep.subr.mxu0 0.0
    %1254 = vmatpush1.msra.mxu0 %v1090
    %1255 = vmatprep.subr.mxu0 0.0
    %1256 = vmatpush1.msra.mxu0 %v1089
    %1257 = vmatprep.subr.mxu0 0.0
    %1258 = vmatpush1.msra.mxu0 %v1088
    %1259 = vmatprep.subr.mxu0 0.0
    %1260 = vmatpush1.msra.mxu0 %v1087
    %1261 = vmatprep.subr.mxu0 0.0
    %1262 = vmatpush1.msra.mxu0 %v1086
    %1263 = vmatprep.subr.mxu0 0.0
    %1264 = vmatpush1.msra.mxu0 %v1085
    %1265 = vmatprep.subr.mxu0 0.0
    %1266 = vmatpush2.msra.mxu0 0.0
    %1267 = vmatprep.subr.mxu0 0.0
    %1268 = vmatpush2.msra.mxu0 0.0
    %1269 = vmatprep.subr.mxu0 0.0
    %1270 = vmatpush2.msra.mxu0 0.0
    %1271 = vmatprep.subr.mxu0 0.0
    %1272 = vmatpush2.msra.mxu0 0.0
    %1273 = vmatprep.subr.mxu0 0.0
    %1274 = vmatpush2.msra.mxu0 0.0
    %1275 = vmatprep.subr.mxu0 0.0
    %1276 = vmatpush2.msra.mxu0 0.0
    %1277 = vmatprep.subr.mxu0 0.0
    %1278 = vmatpush2.msra.mxu0 0.0
    %1279 = vmatprep.subr.mxu0 0.0
    %1280 = vmatpush2.msra.mxu0 0.0
    %1281 = vmatprep.subr.mxu0 0.0
    %1282 = vmatpush2.msra.mxu0 0.0
    %1283 = vmatprep.subr.mxu0 0.0
    %1284 = vmatpush2.msra.mxu0 0.0
    %1285 = vmatprep.subr.mxu0 0.0
    %1286 = vmatpush2.msra.mxu0 0.0
    %1287 = vmatprep.subr.mxu0 0.0
    %1288 = vmatpush2.msra.mxu0 0.0
    %1289 = vmatprep.subr.mxu0 0.0
    %1290 = vmatpush2.msra.mxu0 0.0
    %1291 = vmatprep.subr.mxu0 0.0
    %1292 = vmatpush2.msra.mxu0 0.0
    %1293 = vmatprep.subr.mxu0 0.0
    %1294 = vmatpush2.msra.mxu0 0.0
    %1295 = vmatprep.subr.mxu0 0.0
    %1296 = vmatpush2.msra.mxu0 0.0
    %1297 = vmatprep.mubr.f32.mxu0 0.0
    %1298 = vmatmul.mubr.f32.gmra.mxu0 %v1080
    %v1299 = vpop.f32.mrf.mxu0
    %v1300 = vadd.f32 %v1205, %v1299
    %v1301 = vpop.f32.mrf.mxu0
    %1302 = vmatprep.mubr.f32.mxu0 0.0
    %1303 = vmatmul.mubr.f32.gmra.mxu0 %v1060
    %v1304 = vpop.f32.mrf.mxu0
    %v1305 = vadd.f32 %v1210, %v1304
    %v1306 = vpop.f32.mrf.mxu0
    %1307 = vmatprep.mubr.f32.mxu0 0.0
    %1308 = vmatmul.mubr.f32.gmra.mxu0 %v1082
    %v1309 = vpop.f32.mrf.mxu0
    %v1310 = vadd.f32 %v1215, %v1309
    %v1311 = vpop.f32.mrf.mxu0
    %1312 = vmatprep.mubr.f32.mxu0 0.0
    %1313 = vmatmul.mubr.f32.gmra.mxu0 %v1072
    %v1314 = vpop.f32.mrf.mxu0
    %v1315 = vadd.f32 %v1220, %v1314
    %v1316 = vpop.f32.mrf.mxu0
    %1317 = vmatprep.mubr.f32.mxu0 0.0
    %1318 = vmatmul.mubr.f32.gmra.mxu0 %v1074
    %v1319 = vpop.f32.mrf.mxu0
    %v1320 = vadd.f32 %v1225, %v1319
    %v1321 = vpop.f32.mrf.mxu0
    %1322 = vmatprep.mubr.f32.mxu0 0.0
    %1323 = vmatmul.mubr.f32.gmra.mxu0 %v1083
    %v1324 = vpop.f32.mrf.mxu0
    %v1325 = vadd.f32 %v1230, %v1324
    %v1326 = vpop.f32.mrf.mxu0
    %1327 = vdwg.mxu0
    %s1328 = scalar_lea.vmem [#allocation2], 1152
    %v1329 = vld [vmem:[%s1328] sm:$0xff]
    %v1330 = vld [vmem:[%s1328 + $0x8] sm:$0xff]
    %v1331 = vld [vmem:[%s1328 + $0x10] sm:$0xff]
    %v1332 = vld [vmem:[%s1328 + $0x18] sm:$0xff]
    %v1333 = vld [vmem:[%s1328 + $0x20] sm:$0xff]
    %v1334 = vld [vmem:[%s1328 + $0x28] sm:$0xff]
    %v1335 = vld [vmem:[%s1328 + $0x30] sm:$0xff]
    %v1336 = vld [vmem:[%s1328 + $0x38] sm:$0xff]
    %v1337 = vld [vmem:[%s1328 + $0x40] sm:$0xff]
    %v1338 = vld [vmem:[%s1328 + $0x48] sm:$0xff]
    %v1339 = vld [vmem:[%s1328 + $0x50] sm:$0xff]
    %v1340 = vld [vmem:[%s1328 + $0x58] sm:$0xff]
    %v1341 = vld [vmem:[%s1328 + $0x60] sm:$0xff]
    %v1342 = vld [vmem:[%s1328 + $0x68] sm:$0xff]
    %v1343 = vld [vmem:[%s1328 + $0x70] sm:$0xff]
    %v1344 = vld [vmem:[%s1328 + $0x78] sm:$0xff]
    %v1345 = vrot.slane %v1080, 2
    %v1346 = vrot.slane %v1060, 2
    %v1347 = vsel %vm321, %v1345, %v1346
    %v1348 = vrot.slane %v1082, 2
    %v1349 = vsel %vm321, %v1346, %v1348
    %v1350 = vrot.slane %v1072, 2
    %v1351 = vsel %vm321, %v1348, %v1350
    %v1352 = vrot.slane %v1074, 2
    %v1353 = vsel %vm321, %v1350, %v1352
    %v1354 = vrot.slane %v1083, 2
    %v1355 = vsel %vm321, %v1352, %v1354
    %1362 = vmatprep.subr.mxu0 0.0
    %1363 = vmatpush1.msra.mxu0 %v1344
    %1364 = vmatprep.subr.mxu0 0.0
    %1365 = vmatpush1.msra.mxu0 %v1343
    %1366 = vmatprep.subr.mxu0 0.0
    %1367 = vmatpush1.msra.mxu0 %v1342
    %1368 = vmatprep.subr.mxu0 0.0
    %1369 = vmatpush1.msra.mxu0 %v1341
    %1370 = vmatprep.subr.mxu0 0.0
    %1371 = vmatpush1.msra.mxu0 %v1340
    %1372 = vmatprep.subr.mxu0 0.0
    %1373 = vmatpush1.msra.mxu0 %v1339
    %1374 = vmatprep.subr.mxu0 0.0
    %1375 = vmatpush1.msra.mxu0 %v1338
    %1376 = vmatprep.subr.mxu0 0.0
    %1377 = vmatpush1.msra.mxu0 %v1337
    %1378 = vmatprep.subr.mxu0 0.0
    %1379 = vmatpush1.msra.mxu0 %v1336
    %1380 = vmatprep.subr.mxu0 0.0
    %1381 = vmatpush1.msra.mxu0 %v1335
    %1382 = vmatprep.subr.mxu0 0.0
    %1383 = vmatpush1.msra.mxu0 %v1334
    %1384 = vmatprep.subr.mxu0 0.0
    %1385 = vmatpush1.msra.mxu0 %v1333
    %1386 = vmatprep.subr.mxu0 0.0
    %1387 = vmatpush1.msra.mxu0 %v1332
    %1388 = vmatprep.subr.mxu0 0.0
    %1389 = vmatpush1.msra.mxu0 %v1331
    %1390 = vmatprep.subr.mxu0 0.0
    %1391 = vmatpush1.msra.mxu0 %v1330
    %1392 = vmatprep.subr.mxu0 0.0
    %1393 = vmatpush1.msra.mxu0 %v1329
    %1394 = vmatprep.subr.mxu0 0.0
    %1395 = vmatpush2.msra.mxu0 0.0
    %1396 = vmatprep.subr.mxu0 0.0
    %1397 = vmatpush2.msra.mxu0 0.0
    %1398 = vmatprep.subr.mxu0 0.0
    %1399 = vmatpush2.msra.mxu0 0.0
    %1400 = vmatprep.subr.mxu0 0.0
    %1401 = vmatpush2.msra.mxu0 0.0
    %1402 = vmatprep.subr.mxu0 0.0
    %1403 = vmatpush2.msra.mxu0 0.0
    %1404 = vmatprep.subr.mxu0 0.0
    %1405 = vmatpush2.msra.mxu0 0.0
    %1406 = vmatprep.subr.mxu0 0.0
    %1407 = vmatpush2.msra.mxu0 0.0
    %1408 = vmatprep.subr.mxu0 0.0
    %1409 = vmatpush2.msra.mxu0 0.0
    %1410 = vmatprep.subr.mxu0 0.0
    %1411 = vmatpush2.msra.mxu0 0.0
    %1412 = vmatprep.subr.mxu0 0.0
    %1413 = vmatpush2.msra.mxu0 0.0
    %1414 = vmatprep.subr.mxu0 0.0
    %1415 = vmatpush2.msra.mxu0 0.0
    %1416 = vmatprep.subr.mxu0 0.0
    %1417 = vmatpush2.msra.mxu0 0.0
    %1418 = vmatprep.subr.mxu0 0.0
    %1419 = vmatpush2.msra.mxu0 0.0
    %1420 = vmatprep.subr.mxu0 0.0
    %1421 = vmatpush2.msra.mxu0 0.0
    %1422 = vmatprep.subr.mxu0 0.0
    %1423 = vmatpush2.msra.mxu0 0.0
    %1424 = vmatprep.subr.mxu0 0.0
    %1425 = vmatpush2.msra.mxu0 0.0
    %1426 = vmatprep.mubr.f32.mxu0 0.0
    %1427 = vmatmul.mubr.f32.gmra.mxu0 %v1347
    %v1428 = vpop.f32.mrf.mxu0
    %v1429 = vadd.f32 0.0, %v1428
    %v1430 = vpop.f32.mrf.mxu0
    %1431 = vmatprep.mubr.f32.mxu0 0.0
    %1432 = vmatmul.mubr.f32.gmra.mxu0 %v1349
    %v1433 = vpop.f32.mrf.mxu0
    %v1434 = vadd.f32 0.0, %v1433
    %v1435 = vpop.f32.mrf.mxu0
    %1436 = vmatprep.mubr.f32.mxu0 0.0
    %1437 = vmatmul.mubr.f32.gmra.mxu0 %v1351
    %v1438 = vpop.f32.mrf.mxu0
    %v1439 = vadd.f32 0.0, %v1438
    %v1440 = vpop.f32.mrf.mxu0
    %1441 = vmatprep.mubr.f32.mxu0 0.0
    %1442 = vmatmul.mubr.f32.gmra.mxu0 %v1353
    %v1443 = vpop.f32.mrf.mxu0
    %v1444 = vadd.f32 0.0, %v1443
    %v1445 = vpop.f32.mrf.mxu0
    %1446 = vmatprep.mubr.f32.mxu0 0.0
    %1447 = vmatmul.mubr.f32.gmra.mxu0 %v1355
    %v1448 = vpop.f32.mrf.mxu0
    %v1449 = vadd.f32 0.0, %v1448
    %v1450 = vpop.f32.mrf.mxu0
    %1451 = vmatprep.mubr.f32.mxu0 0.0
    %1452 = vmatmul.mubr.f32.gmra.mxu0 %v1354
    %v1453 = vpop.f32.mrf.mxu0
    %v1454 = vadd.f32 0.0, %v1453
    %v1455 = vpop.f32.mrf.mxu0
    %1456 = vdwg.mxu0
    %v1457 = vadd.f32 %v1300, %v1429
    %v1458 = vadd.f32 %v1305, %v1434
    %v1459 = vadd.f32 %v1310, %v1439
    %v1460 = vadd.f32 %v1315, %v1444
    %v1461 = vadd.f32 %v1320, %v1449
    %v1462 = vadd.f32 %v1325, %v1454
    %v1467 = vrot.slane %v1459, 2
    %v1468 = vrot.slane %v1460, 2
    %v1469 = vsel %vm321, %v1467, %v1468
    %v1470 = vrot.slane %v1461, 2
    %v1471 = vsel %vm321, %v1468, %v1470
    %v1472 = vrot.slane %v1462, 2
    %v1473 = vsel %vm321, %v1470, %v1472
    %v1478 = vsel %vm458, %v1459, %v1469
    %v1479 = vld [vmem:[#allocation5 + $0x8] sm:$0x1]
    %v1480 = vlaneseq
    %v1481 = vshrl.u32 %v1480, 7
    %v1482 = vsub.s32 0, %v1481
    %v1483 = vrot.slane %v1479, %v1482
    %v1484 = vmul.f32 %v1457, %v1483
    %v1485 = vmul.f32 %v1458, %v1483
    %v1486 = vmul.f32 %v1478, %v1483
    %v1487 = vmul.f32 %v1471, %v1483
    %v1488 = vmul.f32 %v1473, %v1483
    %v1489 = vmul.f32 %v1472, %v1483
    %v1490 = vld [vmem:[#allocation5 + $0x9] sm:$0x1]
    %v1491 = vlaneseq
    %v1492 = vshrl.u32 %v1491, 7
    %v1493 = vsub.s32 0, %v1492
    %v1494 = vrot.slane %v1490, %v1493
    %v1495 = vadd.f32 %v1484, %v1494
    %v1496 = vadd.f32 %v1485, %v1494
    %v1497 = vadd.f32 %v1486, %v1494
    %v1498 = vadd.f32 %v1487, %v1494
    %v1499 = vadd.f32 %v1488, %v1494
    %v1500 = vadd.f32 %v1489, %v1494
    %v1501 = vmax.f32 %v1495, 0.0
    %v1502 = vmax.f32 %v1496, 0.0
    %v1503 = vmax.f32 %v1497, 0.0
    %v1504 = vmax.f32 %v1498, 0.0
    %v1505 = vmax.f32 %v1499, 0.0
    %v1506 = vmax.f32 %v1500, 0.0
    %s1507 = scalar_lea.vmem [#allocation2], 1280
    %v1508 = vld [vmem:[%s1507] sm:$0xff]
    %v1509 = vld [vmem:[%s1507 + $0x8] sm:$0xff]
    %v1510 = vld [vmem:[%s1507 + $0x10] sm:$0xff]
    %v1511 = vld [vmem:[%s1507 + $0x18] sm:$0xff]
    %v1512 = vld [vmem:[%s1507 + $0x20] sm:$0xff]
    %v1513 = vld [vmem:[%s1507 + $0x28] sm:$0xff]
    %v1514 = vld [vmem:[%s1507 + $0x30] sm:$0xff]
    %v1515 = vld [vmem:[%s1507 + $0x38] sm:$0xff]
    %v1516 = vld [vmem:[%s1507 + $0x40] sm:$0xff]
    %v1517 = vld [vmem:[%s1507 + $0x48] sm:$0xff]
    %v1518 = vld [vmem:[%s1507 + $0x50] sm:$0xff]
    %v1519 = vld [vmem:[%s1507 + $0x58] sm:$0xff]
    %v1520 = vld [vmem:[%s1507 + $0x60] sm:$0xff]
    %v1521 = vld [vmem:[%s1507 + $0x68] sm:$0xff]
    %v1522 = vld [vmem:[%s1507 + $0x70] sm:$0xff]
    %v1523 = vld [vmem:[%s1507 + $0x78] sm:$0xff]
    %1524 = vmatprep.subr.mxu0 0.0
    %1525 = vmatpush1.msra.mxu0 %v1523
    %1526 = vmatprep.subr.mxu0 0.0
    %1527 = vmatpush1.msra.mxu0 %v1522
    %1528 = vmatprep.subr.mxu0 0.0
    %1529 = vmatpush1.msra.mxu0 %v1521
    %1530 = vmatprep.subr.mxu0 0.0
    %1531 = vmatpush1.msra.mxu0 %v1520
    %1532 = vmatprep.subr.mxu0 0.0
    %1533 = vmatpush1.msra.mxu0 %v1519
    %1534 = vmatprep.subr.mxu0 0.0
    %1535 = vmatpush1.msra.mxu0 %v1518
    %1536 = vmatprep.subr.mxu0 0.0
    %1537 = vmatpush1.msra.mxu0 %v1517
    %1538 = vmatprep.subr.mxu0 0.0
    %1539 = vmatpush1.msra.mxu0 %v1516
    %1540 = vmatprep.subr.mxu0 0.0
    %1541 = vmatpush1.msra.mxu0 %v1515
    %1542 = vmatprep.subr.mxu0 0.0
    %1543 = vmatpush1.msra.mxu0 %v1514
    %1544 = vmatprep.subr.mxu0 0.0
    %1545 = vmatpush1.msra.mxu0 %v1513
    %1546 = vmatprep.subr.mxu0 0.0
    %1547 = vmatpush1.msra.mxu0 %v1512
    %1548 = vmatprep.subr.mxu0 0.0
    %1549 = vmatpush1.msra.mxu0 %v1511
    %1550 = vmatprep.subr.mxu0 0.0
    %1551 = vmatpush1.msra.mxu0 %v1510
    %1552 = vmatprep.subr.mxu0 0.0
    %1553 = vmatpush1.msra.mxu0 %v1509
    %1554 = vmatprep.subr.mxu0 0.0
    %1555 = vmatpush1.msra.mxu0 %v1508
    %1556 = vmatprep.subr.mxu0 0.0
    %1557 = vmatpush2.msra.mxu0 0.0
    %1558 = vmatprep.subr.mxu0 0.0
    %1559 = vmatpush2.msra.mxu0 0.0
    %1560 = vmatprep.subr.mxu0 0.0
    %1561 = vmatpush2.msra.mxu0 0.0
    %1562 = vmatprep.subr.mxu0 0.0
    %1563 = vmatpush2.msra.mxu0 0.0
    %1564 = vmatprep.subr.mxu0 0.0
    %1565 = vmatpush2.msra.mxu0 0.0
    %1566 = vmatprep.subr.mxu0 0.0
    %1567 = vmatpush2.msra.mxu0 0.0
    %1568 = vmatprep.subr.mxu0 0.0
    %1569 = vmatpush2.msra.mxu0 0.0
    %1570 = vmatprep.subr.mxu0 0.0
    %1571 = vmatpush2.msra.mxu0 0.0
    %1572 = vmatprep.subr.mxu0 0.0
    %1573 = vmatpush2.msra.mxu0 0.0
    %1574 = vmatprep.subr.mxu0 0.0
    %1575 = vmatpush2.msra.mxu0 0.0
    %1576 = vmatprep.subr.mxu0 0.0
    %1577 = vmatpush2.msra.mxu0 0.0
    %1578 = vmatprep.subr.mxu0 0.0
    %1579 = vmatpush2.msra.mxu0 0.0
    %1580 = vmatprep.subr.mxu0 0.0
    %1581 = vmatpush2.msra.mxu0 0.0
    %1582 = vmatprep.subr.mxu0 0.0
    %1583 = vmatpush2.msra.mxu0 0.0
    %1584 = vmatprep.subr.mxu0 0.0
    %1585 = vmatpush2.msra.mxu0 0.0
    %1586 = vmatprep.subr.mxu0 0.0
    %1587 = vmatpush2.msra.mxu0 0.0
    %1588 = vmatprep.mubr.f32.mxu0 0.0
    %1589 = vmatmul.mubr.f32.gmra.mxu0 %v1501
    %v1590 = vpop.f32.mrf.mxu0
    %v1591 = vadd.f32 0.0, %v1590
    %v1592 = vpop.f32.mrf.mxu0
    %1593 = vmatprep.mubr.f32.mxu0 0.0
    %1594 = vmatmul.mubr.f32.gmra.mxu0 %v1502
    %v1595 = vpop.f32.mrf.mxu0
    %v1596 = vadd.f32 0.0, %v1595
    %v1597 = vpop.f32.mrf.mxu0
    %1598 = vmatprep.mubr.f32.mxu0 0.0
    %1599 = vmatmul.mubr.f32.gmra.mxu0 %v1503
    %v1600 = vpop.f32.mrf.mxu0
    %v1601 = vadd.f32 0.0, %v1600
    %v1602 = vpop.f32.mrf.mxu0
    %1603 = vmatprep.mubr.f32.mxu0 0.0
    %1604 = vmatmul.mubr.f32.gmra.mxu0 %v1504
    %v1605 = vpop.f32.mrf.mxu0
    %v1606 = vadd.f32 0.0, %v1605
    %v1607 = vpop.f32.mrf.mxu0
    %1608 = vmatprep.mubr.f32.mxu0 0.0
    %1609 = vmatmul.mubr.f32.gmra.mxu0 %v1505
    %v1610 = vpop.f32.mrf.mxu0
    %v1611 = vadd.f32 0.0, %v1610
    %v1612 = vpop.f32.mrf.mxu0
    %1613 = vmatprep.mubr.f32.mxu0 0.0
    %1614 = vmatmul.mubr.f32.gmra.mxu0 %v1506
    %v1615 = vpop.f32.mrf.mxu0
    %v1616 = vadd.f32 0.0, %v1615
    %v1617 = vpop.f32.mrf.mxu0
    %1618 = vdwg.mxu0
    %v1619 = vadd.f32 %v858, %v1591
    %v1620 = vadd.f32 %v863, %v1596
    %v1621 = vadd.f32 %v868, %v1601
    %v1622 = vadd.f32 %v873, %v1606
    %v1623 = vadd.f32 %v878, %v1611
    %v1624 = vadd.f32 %v883, %v1616
    %v1625 = vlaneseq
    %v1626 = vshrl.u32 %v1625, 7
    %v1627 = vadd.s32 %v1626, 8
    %v1628 = vadd.s32 %v1626, 16
    %v1629 = vlaneseq
    %v1630 = vand.u32 %v1629, 127
    %vm1631 = vcmp.ge.s32.totalorder %v1626, 10
    %vm1632 = vcmp.ge.s32.totalorder %v1627, 10
    %vm1633 = vcmp.ge.s32.totalorder %v1628, 10
    %v1634 = vsel %vm1631, 1, 0
    %v1635 = vsel %vm1632, 1, 0
    %v1636 = vsel %vm1633, 1, 0
    %v1637 = vmul.u32 %v1634, 10
    %v1638 = vmul.u32 %v1635, 10
    %v1639 = vmul.u32 %v1636, 10
    %v1640 = vsub.s32 %v1626, %v1637
    %v1641 = vsub.s32 %v1627, %v1638
    %v1642 = vsub.s32 %v1628, %v1639
    %v1643 = vmul.u32 %v1640, 2
    %v1644 = vmul.u32 %v1641, 2
    %v1645 = vmul.u32 %v1642, 2
    %v1646 = vmul.u32 %v1634, 21
    %v1647 = vmul.u32 %v1635, 21
    %v1648 = vmul.u32 %v1636, 21
    %v1649 = vadd.s32 %v1643, %v1646
    %v1650 = vadd.s32 %v1644, %v1647
    %v1651 = vadd.s32 %v1645, %v1648
    %vm1652 = vcmp.eq.s32.totalorder %v1630, %v1649
    %vm1653 = vcmp.eq.s32.totalorder %v1630, %v1650
    %vm1654 = vcmp.eq.s32.totalorder %v1630, %v1651
    %v1655 = vsel %vm1652, 1, 0
    %v1656 = vsel %vm1653, 1, 0
    %v1657 = vsel %vm1654, 1, 0
    %v1658 = vcvt.s32.f32 %v1655
    %v1659 = vcvt.s32.f32 %v1656
    %v1660 = vcvt.s32.f32 %v1657
    %v1661 = vadd.s32 %v1649, 1
    %v1662 = vadd.s32 %v1650, 1
    %v1663 = vadd.s32 %v1651, 1
    %vm1664 = vcmp.eq.s32.totalorder %v1630, %v1661
    %vm1665 = vcmp.eq.s32.totalorder %v1630, %v1662
    %vm1666 = vcmp.eq.s32.totalorder %v1630, %v1663
    %v1667 = vsel %vm1664, 1, 0
    %v1668 = vsel %vm1665, 1, 0
    %v1669 = vsel %vm1666, 1, 0
    %v1670 = vcvt.s32.f32 %v1667
    %v1671 = vcvt.s32.f32 %v1668
    %v1672 = vcvt.s32.f32 %v1669
    %vm1673 = vcmask 343040
    %v1675 = vsel %vm1673, %v1658, 0
    %v1678 = vsel %vm1673, %v1659, 0
    %v1681 = vsel %vm1673, %v1660, 0
    %vm1683 = vcmask 1041408
    %v1685 = vsel %vm1683, %v1624, 0
    %1687 = vmatprep.subr.mxu0 0.0
    %1688 = vmatpush1.msra.mxu0 0.0
    %1689 = vmatprep.subr.mxu0 0.0
    %1690 = vmatpush1.msra.mxu0 0.0
    %1691 = vmatprep.subr.mxu0 0.0
    %1692 = vmatpush1.msra.mxu0 0.0
    %1693 = vmatprep.subr.mxu0 0.0
    %1694 = vmatpush1.msra.mxu0 0.0
    %1695 = vmatprep.subr.mxu0 0.0
    %1696 = vmatpush1.msra.mxu0 0.0
    %1697 = vmatprep.subr.mxu0 0.0
    %1698 = vmatpush1.msra.mxu0 0.0
    %1699 = vmatprep.subr.mxu0 0.0
    %1700 = vmatpush1.msra.mxu0 0.0
    %1701 = vmatprep.subr.mxu0 0.0
    %1702 = vmatpush1.msra.mxu0 0.0
    %1703 = vmatprep.subr.mxu0 0.0
    %1704 = vmatpush1.msra.mxu0 0.0
    %1705 = vmatprep.subr.mxu0 0.0
    %1706 = vmatpush1.msra.mxu0 0.0
    %1707 = vmatprep.subr.mxu0 0.0
    %1708 = vmatpush1.msra.mxu0 %v1685
    %1709 = vmatprep.subr.mxu0 0.0
    %1710 = vmatpush1.msra.mxu0 %v1623
    %1711 = vmatprep.subr.mxu0 0.0
    %1712 = vmatpush1.msra.mxu0 %v1622
    %1713 = vmatprep.subr.mxu0 0.0
    %1714 = vmatpush1.msra.mxu0 %v1621
    %1715 = vmatprep.subr.mxu0 0.0
    %1716 = vmatpush1.msra.mxu0 %v1620
    %1717 = vmatprep.subr.mxu0 0.0
    %1718 = vmatpush1.msra.mxu0 %v1619
    %1719 = vmatprep.subr.mxu0 0.0
    %1720 = vmatpush2.msra.mxu0 0.0
    %1721 = vmatprep.subr.mxu0 0.0
    %1722 = vmatpush2.msra.mxu0 0.0
    %1723 = vmatprep.subr.mxu0 0.0
    %1724 = vmatpush2.msra.mxu0 0.0
    %1725 = vmatprep.subr.mxu0 0.0
    %1726 = vmatpush2.msra.mxu0 0.0
    %1727 = vmatprep.subr.mxu0 0.0
    %1728 = vmatpush2.msra.mxu0 0.0
    %1729 = vmatprep.subr.mxu0 0.0
    %1730 = vmatpush2.msra.mxu0 0.0
    %1731 = vmatprep.subr.mxu0 0.0
    %1732 = vmatpush2.msra.mxu0 0.0
    %1733 = vmatprep.subr.mxu0 0.0
    %1734 = vmatpush2.msra.mxu0 0.0
    %1735 = vmatprep.subr.mxu0 0.0
    %1736 = vmatpush2.msra.mxu0 0.0
    %1737 = vmatprep.subr.mxu0 0.0
    %1738 = vmatpush2.msra.mxu0 0.0
    %1739 = vmatprep.subr.mxu0 0.0
    %1740 = vmatpush2.msra.mxu0 0.0
    %1741 = vmatprep.subr.mxu0 0.0
    %1742 = vmatpush2.msra.mxu0 0.0
    %1743 = vmatprep.subr.mxu0 0.0
    %1744 = vmatpush2.msra.mxu0 0.0
    %1745 = vmatprep.subr.mxu0 0.0
    %1746 = vmatpush2.msra.mxu0 0.0
    %1747 = vmatprep.subr.mxu0 0.0
    %1748 = vmatpush2.msra.mxu0 0.0
    %1749 = vmatprep.subr.mxu0 0.0
    %1750 = vmatpush2.msra.mxu0 0.0
    %1751 = vmatprep.mubr.f32.mxu0 0.0
    %1752 = vmatmul.mubr.f32.gmra.mxu0 %v1675
    %v1753 = vpop.f32.mrf.mxu0
    %v1754 = vadd.f32 0.0, %v1753
    %v1755 = vpop.f32.mrf.mxu0
    %1756 = vmatprep.mubr.f32.mxu0 0.0
    %1757 = vmatmul.mubr.f32.gmra.mxu0 %v1678
    %v1758 = vpop.f32.mrf.mxu0
    %v1759 = vadd.f32 0.0, %v1758
    %v1760 = vpop.f32.mrf.mxu0
    %1761 = vmatprep.mubr.f32.mxu0 0.0
    %1762 = vmatmul.mubr.f32.gmra.mxu0 %v1681
    %v1763 = vpop.f32.mrf.mxu0
    %v1764 = vadd.f32 0.0, %v1763
    %v1765 = vpop.f32.mrf.mxu0
    %1766 = vdwg.mxu0
    %v1768 = vsel %vm1673, %v1670, 0
    %v1771 = vsel %vm1673, %v1671, 0
    %v1774 = vsel %vm1673, %v1672, 0
    %1776 = vmatprep.subr.mxu0 0.0
    %1777 = vmatpush1.msra.mxu0 0.0
    %1778 = vmatprep.subr.mxu0 0.0
    %1779 = vmatpush1.msra.mxu0 0.0
    %1780 = vmatprep.subr.mxu0 0.0
    %1781 = vmatpush1.msra.mxu0 0.0
    %1782 = vmatprep.subr.mxu0 0.0
    %1783 = vmatpush1.msra.mxu0 0.0
    %1784 = vmatprep.subr.mxu0 0.0
    %1785 = vmatpush1.msra.mxu0 0.0
    %1786 = vmatprep.subr.mxu0 0.0
    %1787 = vmatpush1.msra.mxu0 0.0
    %1788 = vmatprep.subr.mxu0 0.0
    %1789 = vmatpush1.msra.mxu0 0.0
    %1790 = vmatprep.subr.mxu0 0.0
    %1791 = vmatpush1.msra.mxu0 0.0
    %1792 = vmatprep.subr.mxu0 0.0
    %1793 = vmatpush1.msra.mxu0 0.0
    %1794 = vmatprep.subr.mxu0 0.0
    %1795 = vmatpush1.msra.mxu0 0.0
    %1796 = vmatprep.subr.mxu0 0.0
    %1797 = vmatpush1.msra.mxu0 %v1685
    %1798 = vmatprep.subr.mxu0 0.0
    %1799 = vmatpush1.msra.mxu0 %v1623
    %1800 = vmatprep.subr.mxu0 0.0
    %1801 = vmatpush1.msra.mxu0 %v1622
    %1802 = vmatprep.subr.mxu0 0.0
    %1803 = vmatpush1.msra.mxu0 %v1621
    %1804 = vmatprep.subr.mxu0 0.0
    %1805 = vmatpush1.msra.mxu0 %v1620
    %1806 = vmatprep.subr.mxu0 0.0
    %1807 = vmatpush1.msra.mxu0 %v1619
    %1808 = vmatprep.subr.mxu0 0.0
    %1809 = vmatpush2.msra.mxu0 0.0
    %1810 = vmatprep.subr.mxu0 0.0
    %1811 = vmatpush2.msra.mxu0 0.0
    %1812 = vmatprep.subr.mxu0 0.0
    %1813 = vmatpush2.msra.mxu0 0.0
    %1814 = vmatprep.subr.mxu0 0.0
    %1815 = vmatpush2.msra.mxu0 0.0
    %1816 = vmatprep.subr.mxu0 0.0
    %1817 = vmatpush2.msra.mxu0 0.0
    %1818 = vmatprep.subr.mxu0 0.0
    %1819 = vmatpush2.msra.mxu0 0.0
    %1820 = vmatprep.subr.mxu0 0.0
    %1821 = vmatpush2.msra.mxu0 0.0
    %1822 = vmatprep.subr.mxu0 0.0
    %1823 = vmatpush2.msra.mxu0 0.0
    %1824 = vmatprep.subr.mxu0 0.0
    %1825 = vmatpush2.msra.mxu0 0.0
    %1826 = vmatprep.subr.mxu0 0.0
    %1827 = vmatpush2.msra.mxu0 0.0
    %1828 = vmatprep.subr.mxu0 0.0
    %1829 = vmatpush2.msra.mxu0 0.0
    %1830 = vmatprep.subr.mxu0 0.0
    %1831 = vmatpush2.msra.mxu0 0.0
    %1832 = vmatprep.subr.mxu0 0.0
    %1833 = vmatpush2.msra.mxu0 0.0
    %1834 = vmatprep.subr.mxu0 0.0
    %1835 = vmatpush2.msra.mxu0 0.0
    %1836 = vmatprep.subr.mxu0 0.0
    %1837 = vmatpush2.msra.mxu0 0.0
    %1838 = vmatprep.subr.mxu0 0.0
    %1839 = vmatpush2.msra.mxu0 0.0
    %1840 = vmatprep.mubr.f32.mxu0 0.0
    %1841 = vmatmul.mubr.f32.gmra.mxu0 %v1768
    %v1842 = vpop.f32.mrf.mxu0
    %v1843 = vadd.f32 0.0, %v1842
    %v1844 = vpop.f32.mrf.mxu0
    %1845 = vmatprep.mubr.f32.mxu0 0.0
    %1846 = vmatmul.mubr.f32.gmra.mxu0 %v1771
    %v1847 = vpop.f32.mrf.mxu0
    %v1848 = vadd.f32 0.0, %v1847
    %v1849 = vpop.f32.mrf.mxu0
    %1850 = vmatprep.mubr.f32.mxu0 0.0
    %1851 = vmatmul.mubr.f32.gmra.mxu0 %v1774
    %v1852 = vpop.f32.mrf.mxu0
    %v1853 = vadd.f32 0.0, %v1852
    %v1854 = vpop.f32.mrf.mxu0
    %1855 = vdwg.mxu0
    %v1856 = vmax.f32 %v1754, %v1843
    %v1857 = vmax.f32 %v1759, %v1848
    %v1858 = vmax.f32 %v1764, %v1853
    %s1859 = scalar_lea.vmem [#allocation2], 1408
    %v1860 = vld [vmem:[%s1859] sm:$0xff]
    %v1861 = vld [vmem:[%s1859 + $0x8] sm:$0xff]
    %v1862 = vld [vmem:[%s1859 + $0x10] sm:$0xff]
    %v1863 = vld [vmem:[%s1859 + $0x18] sm:$0xff]
    %v1864 = vld [vmem:[%s1859 + $0x20] sm:$0xff]
    %v1865 = vld [vmem:[%s1859 + $0x28] sm:$0xff]
    %v1866 = vld [vmem:[%s1859 + $0x30] sm:$0xff]
    %v1867 = vld [vmem:[%s1859 + $0x38] sm:$0xff]
    %v1868 = vld [vmem:[%s1859 + $0x40] sm:$0xff]
    %v1869 = vld [vmem:[%s1859 + $0x48] sm:$0xff]
    %v1870 = vld [vmem:[%s1859 + $0x50] sm:$0xff]
    %v1871 = vld [vmem:[%s1859 + $0x58] sm:$0xff]
    %v1872 = vld [vmem:[%s1859 + $0x60] sm:$0xff]
    %v1873 = vld [vmem:[%s1859 + $0x68] sm:$0xff]
    %v1874 = vld [vmem:[%s1859 + $0x70] sm:$0xff]
    %v1875 = vld [vmem:[%s1859 + $0x78] sm:$0xff]
    %s1876 = scalar_lea.vmem [#allocation2], 1536
    %v1877 = vld [vmem:[%s1876] sm:$0xff]
    %v1878 = vld [vmem:[%s1876 + $0x8] sm:$0xff]
    %v1879 = vld [vmem:[%s1876 + $0x10] sm:$0xff]
    %v1880 = vld [vmem:[%s1876 + $0x18] sm:$0xff]
    %v1881 = vld [vmem:[%s1876 + $0x20] sm:$0xff]
    %v1882 = vld [vmem:[%s1876 + $0x28] sm:$0xff]
    %v1883 = vld [vmem:[%s1876 + $0x30] sm:$0xff]
    %v1884 = vld [vmem:[%s1876 + $0x38] sm:$0xff]
    %v1885 = vld [vmem:[%s1876 + $0x40] sm:$0xff]
    %v1886 = vld [vmem:[%s1876 + $0x48] sm:$0xff]
    %v1887 = vld [vmem:[%s1876 + $0x50] sm:$0xff]
    %v1888 = vld [vmem:[%s1876 + $0x58] sm:$0xff]
    %v1889 = vld [vmem:[%s1876 + $0x60] sm:$0xff]
    %v1890 = vld [vmem:[%s1876 + $0x68] sm:$0xff]
    %v1891 = vld [vmem:[%s1876 + $0x70] sm:$0xff]
    %v1892 = vld [vmem:[%s1876 + $0x78] sm:$0xff]
    %v1896 = vrot.slane %v1856, 1
    %v1897 = vrot.slane %v1857, 1
    %v1898 = vsel %vm96, %v1896, %v1897
    %v1899 = vrot.slane %v1858, 1
    %v1900 = vsel %vm96, %v1897, %v1899
    %1903 = vmatprep.subr.mxu0 0.0
    %1904 = vmatpush1.msra.mxu0 %v1892
    %1905 = vmatprep.subr.mxu0 0.0
    %1906 = vmatpush1.msra.mxu0 %v1891
    %1907 = vmatprep.subr.mxu0 0.0
    %1908 = vmatpush1.msra.mxu0 %v1890
    %1909 = vmatprep.subr.mxu0 0.0
    %1910 = vmatpush1.msra.mxu0 %v1889
    %1911 = vmatprep.subr.mxu0 0.0
    %1912 = vmatpush1.msra.mxu0 %v1888
    %1913 = vmatprep.subr.mxu0 0.0
    %1914 = vmatpush1.msra.mxu0 %v1887
    %1915 = vmatprep.subr.mxu0 0.0
    %1916 = vmatpush1.msra.mxu0 %v1886
    %1917 = vmatprep.subr.mxu0 0.0
    %1918 = vmatpush1.msra.mxu0 %v1885
    %1919 = vmatprep.subr.mxu0 0.0
    %1920 = vmatpush1.msra.mxu0 %v1884
    %1921 = vmatprep.subr.mxu0 0.0
    %1922 = vmatpush1.msra.mxu0 %v1883
    %1923 = vmatprep.subr.mxu0 0.0
    %1924 = vmatpush1.msra.mxu0 %v1882
    %1925 = vmatprep.subr.mxu0 0.0
    %1926 = vmatpush1.msra.mxu0 %v1881
    %1927 = vmatprep.subr.mxu0 0.0
    %1928 = vmatpush1.msra.mxu0 %v1880
    %1929 = vmatprep.subr.mxu0 0.0
    %1930 = vmatpush1.msra.mxu0 %v1879
    %1931 = vmatprep.subr.mxu0 0.0
    %1932 = vmatpush1.msra.mxu0 %v1878
    %1933 = vmatprep.subr.mxu0 0.0
    %1934 = vmatpush1.msra.mxu0 %v1877
    %1935 = vmatprep.subr.mxu0 0.0
    %1936 = vmatpush2.msra.mxu0 0.0
    %1937 = vmatprep.subr.mxu0 0.0
    %1938 = vmatpush2.msra.mxu0 0.0
    %1939 = vmatprep.subr.mxu0 0.0
    %1940 = vmatpush2.msra.mxu0 0.0
    %1941 = vmatprep.subr.mxu0 0.0
    %1942 = vmatpush2.msra.mxu0 0.0
    %1943 = vmatprep.subr.mxu0 0.0
    %1944 = vmatpush2.msra.mxu0 0.0
    %1945 = vmatprep.subr.mxu0 0.0
    %1946 = vmatpush2.msra.mxu0 0.0
    %1947 = vmatprep.subr.mxu0 0.0
    %1948 = vmatpush2.msra.mxu0 0.0
    %1949 = vmatprep.subr.mxu0 0.0
    %1950 = vmatpush2.msra.mxu0 0.0
    %1951 = vmatprep.subr.mxu0 0.0
    %1952 = vmatpush2.msra.mxu0 0.0
    %1953 = vmatprep.subr.mxu0 0.0
    %1954 = vmatpush2.msra.mxu0 0.0
    %1955 = vmatprep.subr.mxu0 0.0
    %1956 = vmatpush2.msra.mxu0 0.0
    %1957 = vmatprep.subr.mxu0 0.0
    %1958 = vmatpush2.msra.mxu0 0.0
    %1959 = vmatprep.subr.mxu0 0.0
    %1960 = vmatpush2.msra.mxu0 0.0
    %1961 = vmatprep.subr.mxu0 0.0
    %1962 = vmatpush2.msra.mxu0 0.0
    %1963 = vmatprep.subr.mxu0 0.0
    %1964 = vmatpush2.msra.mxu0 0.0
    %1965 = vmatprep.subr.mxu0 0.0
    %1966 = vmatpush2.msra.mxu0 0.0
    %1967 = vmatprep.mubr.f32.mxu0 0.0
    %1968 = vmatmul.mubr.f32.gmra.mxu0 %v1898
    %v1969 = vpop.f32.mrf.mxu0
    %v1970 = vadd.f32 0.0, %v1969
    %v1971 = vpop.f32.mrf.mxu0
    %1972 = vmatprep.mubr.f32.mxu0 0.0
    %1973 = vmatmul.mubr.f32.gmra.mxu0 %v1900
    %v1974 = vpop.f32.mrf.mxu0
    %v1975 = vadd.f32 0.0, %v1974
    %v1976 = vpop.f32.mrf.mxu0
    %1977 = vdwg.mxu0
    %1978 = vmatprep.subr.mxu0 0.0
    %1979 = vmatpush1.msra.mxu0 %v1875
    %1980 = vmatprep.subr.mxu0 0.0
    %1981 = vmatpush1.msra.mxu0 %v1874
    %1982 = vmatprep.subr.mxu0 0.0
    %1983 = vmatpush1.msra.mxu0 %v1873
    %1984 = vmatprep.subr.mxu0 0.0
    %1985 = vmatpush1.msra.mxu0 %v1872
    %1986 = vmatprep.subr.mxu0 0.0
    %1987 = vmatpush1.msra.mxu0 %v1871
    %1988 = vmatprep.subr.mxu0 0.0
    %1989 = vmatpush1.msra.mxu0 %v1870
    %1990 = vmatprep.subr.mxu0 0.0
    %1991 = vmatpush1.msra.mxu0 %v1869
    %1992 = vmatprep.subr.mxu0 0.0
    %1993 = vmatpush1.msra.mxu0 %v1868
    %1994 = vmatprep.subr.mxu0 0.0
    %1995 = vmatpush1.msra.mxu0 %v1867
    %1996 = vmatprep.subr.mxu0 0.0
    %1997 = vmatpush1.msra.mxu0 %v1866
    %1998 = vmatprep.subr.mxu0 0.0
    %1999 = vmatpush1.msra.mxu0 %v1865
    %2000 = vmatprep.subr.mxu0 0.0
    %2001 = vmatpush1.msra.mxu0 %v1864
    %2002 = vmatprep.subr.mxu0 0.0
    %2003 = vmatpush1.msra.mxu0 %v1863
    %2004 = vmatprep.subr.mxu0 0.0
    %2005 = vmatpush1.msra.mxu0 %v1862
    %2006 = vmatprep.subr.mxu0 0.0
    %2007 = vmatpush1.msra.mxu0 %v1861
    %2008 = vmatprep.subr.mxu0 0.0
    %2009 = vmatpush1.msra.mxu0 %v1860
    %2010 = vmatprep.subr.mxu0 0.0
    %2011 = vmatpush2.msra.mxu0 0.0
    %2012 = vmatprep.subr.mxu0 0.0
    %2013 = vmatpush2.msra.mxu0 0.0
    %2014 = vmatprep.subr.mxu0 0.0
    %2015 = vmatpush2.msra.mxu0 0.0
    %2016 = vmatprep.subr.mxu0 0.0
    %2017 = vmatpush2.msra.mxu0 0.0
    %2018 = vmatprep.subr.mxu0 0.0
    %2019 = vmatpush2.msra.mxu0 0.0
    %2020 = vmatprep.subr.mxu0 0.0
    %2021 = vmatpush2.msra.mxu0 0.0
    %2022 = vmatprep.subr.mxu0 0.0
    %2023 = vmatpush2.msra.mxu0 0.0
    %2024 = vmatprep.subr.mxu0 0.0
    %2025 = vmatpush2.msra.mxu0 0.0
    %2026 = vmatprep.subr.mxu0 0.0
    %2027 = vmatpush2.msra.mxu0 0.0
    %2028 = vmatprep.subr.mxu0 0.0
    %2029 = vmatpush2.msra.mxu0 0.0
    %2030 = vmatprep.subr.mxu0 0.0
    %2031 = vmatpush2.msra.mxu0 0.0
    %2032 = vmatprep.subr.mxu0 0.0
    %2033 = vmatpush2.msra.mxu0 0.0
    %2034 = vmatprep.subr.mxu0 0.0
    %2035 = vmatpush2.msra.mxu0 0.0
    %2036 = vmatprep.subr.mxu0 0.0
    %2037 = vmatpush2.msra.mxu0 0.0
    %2038 = vmatprep.subr.mxu0 0.0
    %2039 = vmatpush2.msra.mxu0 0.0
    %2040 = vmatprep.subr.mxu0 0.0
    %2041 = vmatpush2.msra.mxu0 0.0
    %2042 = vmatprep.mubr.f32.mxu0 0.0
    %2043 = vmatmul.mubr.f32.gmra.mxu0 %v1856
    %v2044 = vpop.f32.mrf.mxu0
    %v2045 = vadd.f32 %v1970, %v2044
    %v2046 = vpop.f32.mrf.mxu0
    %2047 = vmatprep.mubr.f32.mxu0 0.0
    %2048 = vmatmul.mubr.f32.gmra.mxu0 %v1857
    %v2049 = vpop.f32.mrf.mxu0
    %v2050 = vadd.f32 %v1975, %v2049
    %v2051 = vpop.f32.mrf.mxu0
    %2052 = vdwg.mxu0
    %s2053 = scalar_lea.vmem [#allocation2], 1664
    %v2054 = vld [vmem:[%s2053] sm:$0xff]
    %v2055 = vld [vmem:[%s2053 + $0x8] sm:$0xff]
    %v2056 = vld [vmem:[%s2053 + $0x10] sm:$0xff]
    %v2057 = vld [vmem:[%s2053 + $0x18] sm:$0xff]
    %v2058 = vld [vmem:[%s2053 + $0x20] sm:$0xff]
    %v2059 = vld [vmem:[%s2053 + $0x28] sm:$0xff]
    %v2060 = vld [vmem:[%s2053 + $0x30] sm:$0xff]
    %v2061 = vld [vmem:[%s2053 + $0x38] sm:$0xff]
    %v2062 = vld [vmem:[%s2053 + $0x40] sm:$0xff]
    %v2063 = vld [vmem:[%s2053 + $0x48] sm:$0xff]
    %v2064 = vld [vmem:[%s2053 + $0x50] sm:$0xff]
    %v2065 = vld [vmem:[%s2053 + $0x58] sm:$0xff]
    %v2066 = vld [vmem:[%s2053 + $0x60] sm:$0xff]
    %v2067 = vld [vmem:[%s2053 + $0x68] sm:$0xff]
    %v2068 = vld [vmem:[%s2053 + $0x70] sm:$0xff]
    %v2069 = vld [vmem:[%s2053 + $0x78] sm:$0xff]
    %v2070 = vrot.slane %v1856, 2
    %v2071 = vrot.slane %v1857, 2
    %v2072 = vsel %vm321, %v2070, %v2071
    %v2073 = vrot.slane %v1858, 2
    %v2074 = vsel %vm321, %v2071, %v2073
    %2077 = vmatprep.subr.mxu0 0.0
    %2078 = vmatpush1.msra.mxu0 %v2069
    %2079 = vmatprep.subr.mxu0 0.0
    %2080 = vmatpush1.msra.mxu0 %v2068
    %2081 = vmatprep.subr.mxu0 0.0
    %2082 = vmatpush1.msra.mxu0 %v2067
    %2083 = vmatprep.subr.mxu0 0.0
    %2084 = vmatpush1.msra.mxu0 %v2066
    %2085 = vmatprep.subr.mxu0 0.0
    %2086 = vmatpush1.msra.mxu0 %v2065
    %2087 = vmatprep.subr.mxu0 0.0
    %2088 = vmatpush1.msra.mxu0 %v2064
    %2089 = vmatprep.subr.mxu0 0.0
    %2090 = vmatpush1.msra.mxu0 %v2063
    %2091 = vmatprep.subr.mxu0 0.0
    %2092 = vmatpush1.msra.mxu0 %v2062
    %2093 = vmatprep.subr.mxu0 0.0
    %2094 = vmatpush1.msra.mxu0 %v2061
    %2095 = vmatprep.subr.mxu0 0.0
    %2096 = vmatpush1.msra.mxu0 %v2060
    %2097 = vmatprep.subr.mxu0 0.0
    %2098 = vmatpush1.msra.mxu0 %v2059
    %2099 = vmatprep.subr.mxu0 0.0
    %2100 = vmatpush1.msra.mxu0 %v2058
    %2101 = vmatprep.subr.mxu0 0.0
    %2102 = vmatpush1.msra.mxu0 %v2057
    %2103 = vmatprep.subr.mxu0 0.0
    %2104 = vmatpush1.msra.mxu0 %v2056
    %2105 = vmatprep.subr.mxu0 0.0
    %2106 = vmatpush1.msra.mxu0 %v2055
    %2107 = vmatprep.subr.mxu0 0.0
    %2108 = vmatpush1.msra.mxu0 %v2054
    %2109 = vmatprep.subr.mxu0 0.0
    %2110 = vmatpush2.msra.mxu0 0.0
    %2111 = vmatprep.subr.mxu0 0.0
    %2112 = vmatpush2.msra.mxu0 0.0
    %2113 = vmatprep.subr.mxu0 0.0
    %2114 = vmatpush2.msra.mxu0 0.0
    %2115 = vmatprep.subr.mxu0 0.0
    %2116 = vmatpush2.msra.mxu0 0.0
    %2117 = vmatprep.subr.mxu0 0.0
    %2118 = vmatpush2.msra.mxu0 0.0
    %2119 = vmatprep.subr.mxu0 0.0
    %2120 = vmatpush2.msra.mxu0 0.0
    %2121 = vmatprep.subr.mxu0 0.0
    %2122 = vmatpush2.msra.mxu0 0.0
    %2123 = vmatprep.subr.mxu0 0.0
    %2124 = vmatpush2.msra.mxu0 0.0
    %2125 = vmatprep.subr.mxu0 0.0
    %2126 = vmatpush2.msra.mxu0 0.0
    %2127 = vmatprep.subr.mxu0 0.0
    %2128 = vmatpush2.msra.mxu0 0.0
    %2129 = vmatprep.subr.mxu0 0.0
    %2130 = vmatpush2.msra.mxu0 0.0
    %2131 = vmatprep.subr.mxu0 0.0
    %2132 = vmatpush2.msra.mxu0 0.0
    %2133 = vmatprep.subr.mxu0 0.0
    %2134 = vmatpush2.msra.mxu0 0.0
    %2135 = vmatprep.subr.mxu0 0.0
    %2136 = vmatpush2.msra.mxu0 0.0
    %2137 = vmatprep.subr.mxu0 0.0
    %2138 = vmatpush2.msra.mxu0 0.0
    %2139 = vmatprep.subr.mxu0 0.0
    %2140 = vmatpush2.msra.mxu0 0.0
    %2141 = vmatprep.mubr.f32.mxu0 0.0
    %2142 = vmatmul.mubr.f32.gmra.mxu0 %v2072
    %v2143 = vpop.f32.mrf.mxu0
    %v2144 = vadd.f32 0.0, %v2143
    %v2145 = vpop.f32.mrf.mxu0
    %2146 = vmatprep.mubr.f32.mxu0 0.0
    %2147 = vmatmul.mubr.f32.gmra.mxu0 %v2074
    %v2148 = vpop.f32.mrf.mxu0
    %v2149 = vadd.f32 0.0, %v2148
    %v2150 = vpop.f32.mrf.mxu0
    %2151 = vdwg.mxu0
    %v2152 = vadd.f32 %v2045, %v2144
    %v2153 = vadd.f32 %v2050, %v2149
    %s2154 = scalar_lea.vmem [#allocation2], 1792
    %v2155 = vld [vmem:[%s2154] sm:$0xff]
    %v2156 = vld [vmem:[%s2154 + $0x8] sm:$0xff]
    %v2157 = vld [vmem:[%s2154 + $0x10] sm:$0xff]
    %v2158 = vld [vmem:[%s2154 + $0x18] sm:$0xff]
    %v2159 = vld [vmem:[%s2154 + $0x20] sm:$0xff]
    %v2160 = vld [vmem:[%s2154 + $0x28] sm:$0xff]
    %v2161 = vld [vmem:[%s2154 + $0x30] sm:$0xff]
    %v2162 = vld [vmem:[%s2154 + $0x38] sm:$0xff]
    %v2163 = vld [vmem:[%s2154 + $0x40] sm:$0xff]
    %v2164 = vld [vmem:[%s2154 + $0x48] sm:$0xff]
    %v2165 = vld [vmem:[%s2154 + $0x50] sm:$0xff]
    %v2166 = vld [vmem:[%s2154 + $0x58] sm:$0xff]
    %v2167 = vld [vmem:[%s2154 + $0x60] sm:$0xff]
    %v2168 = vld [vmem:[%s2154 + $0x68] sm:$0xff]
    %v2169 = vld [vmem:[%s2154 + $0x70] sm:$0xff]
    %v2170 = vld [vmem:[%s2154 + $0x78] sm:$0xff]
    %v2171 = vrot.slane %v1856, 3
    %v2172 = vrot.slane %v1857, 3
    %v2173 = vsel %vm458, %v2171, %v2172
    %v2174 = vrot.slane %v1858, 3
    %v2175 = vsel %vm458, %v2172, %v2174
    %2178 = vmatprep.subr.mxu0 0.0
    %2179 = vmatpush1.msra.mxu0 %v2170
    %2180 = vmatprep.subr.mxu0 0.0
    %2181 = vmatpush1.msra.mxu0 %v2169
    %2182 = vmatprep.subr.mxu0 0.0
    %2183 = vmatpush1.msra.mxu0 %v2168
    %2184 = vmatprep.subr.mxu0 0.0
    %2185 = vmatpush1.msra.mxu0 %v2167
    %2186 = vmatprep.subr.mxu0 0.0
    %2187 = vmatpush1.msra.mxu0 %v2166
    %2188 = vmatprep.subr.mxu0 0.0
    %2189 = vmatpush1.msra.mxu0 %v2165
    %2190 = vmatprep.subr.mxu0 0.0
    %2191 = vmatpush1.msra.mxu0 %v2164
    %2192 = vmatprep.subr.mxu0 0.0
    %2193 = vmatpush1.msra.mxu0 %v2163
    %2194 = vmatprep.subr.mxu0 0.0
    %2195 = vmatpush1.msra.mxu0 %v2162
    %2196 = vmatprep.subr.mxu0 0.0
    %2197 = vmatpush1.msra.mxu0 %v2161
    %2198 = vmatprep.subr.mxu0 0.0
    %2199 = vmatpush1.msra.mxu0 %v2160
    %2200 = vmatprep.subr.mxu0 0.0
    %2201 = vmatpush1.msra.mxu0 %v2159
    %2202 = vmatprep.subr.mxu0 0.0
    %2203 = vmatpush1.msra.mxu0 %v2158
    %2204 = vmatprep.subr.mxu0 0.0
    %2205 = vmatpush1.msra.mxu0 %v2157
    %2206 = vmatprep.subr.mxu0 0.0
    %2207 = vmatpush1.msra.mxu0 %v2156
    %2208 = vmatprep.subr.mxu0 0.0
    %2209 = vmatpush1.msra.mxu0 %v2155
    %2210 = vmatprep.subr.mxu0 0.0
    %2211 = vmatpush2.msra.mxu0 0.0
    %2212 = vmatprep.subr.mxu0 0.0
    %2213 = vmatpush2.msra.mxu0 0.0
    %2214 = vmatprep.subr.mxu0 0.0
    %2215 = vmatpush2.msra.mxu0 0.0
    %2216 = vmatprep.subr.mxu0 0.0
    %2217 = vmatpush2.msra.mxu0 0.0
    %2218 = vmatprep.subr.mxu0 0.0
    %2219 = vmatpush2.msra.mxu0 0.0
    %2220 = vmatprep.subr.mxu0 0.0
    %2221 = vmatpush2.msra.mxu0 0.0
    %2222 = vmatprep.subr.mxu0 0.0
    %2223 = vmatpush2.msra.mxu0 0.0
    %2224 = vmatprep.subr.mxu0 0.0
    %2225 = vmatpush2.msra.mxu0 0.0
    %2226 = vmatprep.subr.mxu0 0.0
    %2227 = vmatpush2.msra.mxu0 0.0
    %2228 = vmatprep.subr.mxu0 0.0
    %2229 = vmatpush2.msra.mxu0 0.0
    %2230 = vmatprep.subr.mxu0 0.0
    %2231 = vmatpush2.msra.mxu0 0.0
    %2232 = vmatprep.subr.mxu0 0.0
    %2233 = vmatpush2.msra.mxu0 0.0
    %2234 = vmatprep.subr.mxu0 0.0
    %2235 = vmatpush2.msra.mxu0 0.0
    %2236 = vmatprep.subr.mxu0 0.0
    %2237 = vmatpush2.msra.mxu0 0.0
    %2238 = vmatprep.subr.mxu0 0.0
    %2239 = vmatpush2.msra.mxu0 0.0
    %2240 = vmatprep.subr.mxu0 0.0
    %2241 = vmatpush2.msra.mxu0 0.0
    %2242 = vmatprep.mubr.f32.mxu0 0.0
    %2243 = vmatmul.mubr.f32.gmra.mxu0 %v2173
    %v2244 = vpop.f32.mrf.mxu0
    %v2245 = vadd.f32 0.0, %v2244
    %v2246 = vpop.f32.mrf.mxu0
    %2247 = vmatprep.mubr.f32.mxu0 0.0
    %2248 = vmatmul.mubr.f32.gmra.mxu0 %v2175
    %v2249 = vpop.f32.mrf.mxu0
    %v2250 = vadd.f32 0.0, %v2249
    %v2251 = vpop.f32.mrf.mxu0
    %2252 = vdwg.mxu0
    %v2253 = vadd.f32 %v2152, %v2245
    %v2254 = vadd.f32 %v2153, %v2250
    %s2255 = scalar_lea.vmem [#allocation2], 1920
    %v2256 = vld [vmem:[%s2255] sm:$0xff]
    %v2257 = vld [vmem:[%s2255 + $0x8] sm:$0xff]
    %v2258 = vld [vmem:[%s2255 + $0x10] sm:$0xff]
    %v2259 = vld [vmem:[%s2255 + $0x18] sm:$0xff]
    %v2260 = vld [vmem:[%s2255 + $0x20] sm:$0xff]
    %v2261 = vld [vmem:[%s2255 + $0x28] sm:$0xff]
    %v2262 = vld [vmem:[%s2255 + $0x30] sm:$0xff]
    %v2263 = vld [vmem:[%s2255 + $0x38] sm:$0xff]
    %v2264 = vld [vmem:[%s2255 + $0x40] sm:$0xff]
    %v2265 = vld [vmem:[%s2255 + $0x48] sm:$0xff]
    %v2266 = vld [vmem:[%s2255 + $0x50] sm:$0xff]
    %v2267 = vld [vmem:[%s2255 + $0x58] sm:$0xff]
    %v2268 = vld [vmem:[%s2255 + $0x60] sm:$0xff]
    %v2269 = vld [vmem:[%s2255 + $0x68] sm:$0xff]
    %v2270 = vld [vmem:[%s2255 + $0x70] sm:$0xff]
    %v2271 = vld [vmem:[%s2255 + $0x78] sm:$0xff]
    %v2272 = vrot.slane %v1856, 4
    %v2273 = vrot.slane %v1857, 4
    %v2274 = vsel %vm596, %v2272, %v2273
    %v2275 = vrot.slane %v1858, 4
    %v2276 = vsel %vm596, %v2273, %v2275
    %2279 = vmatprep.subr.mxu0 0.0
    %2280 = vmatpush1.msra.mxu0 %v2271
    %2281 = vmatprep.subr.mxu0 0.0
    %2282 = vmatpush1.msra.mxu0 %v2270
    %2283 = vmatprep.subr.mxu0 0.0
    %2284 = vmatpush1.msra.mxu0 %v2269
    %2285 = vmatprep.subr.mxu0 0.0
    %2286 = vmatpush1.msra.mxu0 %v2268
    %2287 = vmatprep.subr.mxu0 0.0
    %2288 = vmatpush1.msra.mxu0 %v2267
    %2289 = vmatprep.subr.mxu0 0.0
    %2290 = vmatpush1.msra.mxu0 %v2266
    %2291 = vmatprep.subr.mxu0 0.0
    %2292 = vmatpush1.msra.mxu0 %v2265
    %2293 = vmatprep.subr.mxu0 0.0
    %2294 = vmatpush1.msra.mxu0 %v2264
    %2295 = vmatprep.subr.mxu0 0.0
    %2296 = vmatpush1.msra.mxu0 %v2263
    %2297 = vmatprep.subr.mxu0 0.0
    %2298 = vmatpush1.msra.mxu0 %v2262
    %2299 = vmatprep.subr.mxu0 0.0
    %2300 = vmatpush1.msra.mxu0 %v2261
    %2301 = vmatprep.subr.mxu0 0.0
    %2302 = vmatpush1.msra.mxu0 %v2260
    %2303 = vmatprep.subr.mxu0 0.0
    %2304 = vmatpush1.msra.mxu0 %v2259
    %2305 = vmatprep.subr.mxu0 0.0
    %2306 = vmatpush1.msra.mxu0 %v2258
    %2307 = vmatprep.subr.mxu0 0.0
    %2308 = vmatpush1.msra.mxu0 %v2257
    %2309 = vmatprep.subr.mxu0 0.0
    %2310 = vmatpush1.msra.mxu0 %v2256
    %2311 = vmatprep.subr.mxu0 0.0
    %2312 = vmatpush2.msra.mxu0 0.0
    %2313 = vmatprep.subr.mxu0 0.0
    %2314 = vmatpush2.msra.mxu0 0.0
    %2315 = vmatprep.subr.mxu0 0.0
    %2316 = vmatpush2.msra.mxu0 0.0
    %2317 = vmatprep.subr.mxu0 0.0
    %2318 = vmatpush2.msra.mxu0 0.0
    %2319 = vmatprep.subr.mxu0 0.0
    %2320 = vmatpush2.msra.mxu0 0.0
    %2321 = vmatprep.subr.mxu0 0.0
    %2322 = vmatpush2.msra.mxu0 0.0
    %2323 = vmatprep.subr.mxu0 0.0
    %2324 = vmatpush2.msra.mxu0 0.0
    %2325 = vmatprep.subr.mxu0 0.0
    %2326 = vmatpush2.msra.mxu0 0.0
    %2327 = vmatprep.subr.mxu0 0.0
    %2328 = vmatpush2.msra.mxu0 0.0
    %2329 = vmatprep.subr.mxu0 0.0
    %2330 = vmatpush2.msra.mxu0 0.0
    %2331 = vmatprep.subr.mxu0 0.0
    %2332 = vmatpush2.msra.mxu0 0.0
    %2333 = vmatprep.subr.mxu0 0.0
    %2334 = vmatpush2.msra.mxu0 0.0
    %2335 = vmatprep.subr.mxu0 0.0
    %2336 = vmatpush2.msra.mxu0 0.0
    %2337 = vmatprep.subr.mxu0 0.0
    %2338 = vmatpush2.msra.mxu0 0.0
    %2339 = vmatprep.subr.mxu0 0.0
    %2340 = vmatpush2.msra.mxu0 0.0
    %2341 = vmatprep.subr.mxu0 0.0
    %2342 = vmatpush2.msra.mxu0 0.0
    %2343 = vmatprep.mubr.f32.mxu0 0.0
    %2344 = vmatmul.mubr.f32.gmra.mxu0 %v2274
    %v2345 = vpop.f32.mrf.mxu0
    %v2346 = vadd.f32 0.0, %v2345
    %v2347 = vpop.f32.mrf.mxu0
    %2348 = vmatprep.mubr.f32.mxu0 0.0
    %2349 = vmatmul.mubr.f32.gmra.mxu0 %v2276
    %v2350 = vpop.f32.mrf.mxu0
    %v2351 = vadd.f32 0.0, %v2350
    %v2352 = vpop.f32.mrf.mxu0
    %2353 = vdwg.mxu0
    %v2354 = vadd.f32 %v2253, %v2346
    %v2355 = vadd.f32 %v2254, %v2351
    %v2357 = vrot.slane %v2355, 4
    %v2359 = vsel %vm321, %v2354, %v2357
    %v2360 = vld [vmem:[#allocation5 + $0xa] sm:$0x1]
    %v2361 = vlaneseq
    %v2362 = vshrl.u32 %v2361, 7
    %v2363 = vsub.s32 0, %v2362
    %v2364 = vrot.slane %v2360, %v2363
    %v2365 = vadd.f32 %v2359, %v2364
    %v2366 = vadd.f32 %v2357, %v2364
    %v2367 = vld [vmem:[#allocation5 + $0xb] sm:$0x1]
    %v2368 = vlaneseq
    %v2369 = vshrl.u32 %v2368, 7
    %v2370 = vsub.s32 0, %v2369
    %v2371 = vrot.slane %v2367, %v2370
    %v2372 = vmul.f32 %v2365, %v2371
    %v2373 = vmul.f32 %v2366, %v2371
    %v2374 = vld [vmem:[#allocation5 + $0xc] sm:$0x1]
    %v2375 = vlaneseq
    %v2376 = vshrl.u32 %v2375, 7
    %v2377 = vsub.s32 0, %v2376
    %v2378 = vrot.slane %v2374, %v2377
    %v2379 = vadd.f32 %v2372, %v2378
    %v2380 = vadd.f32 %v2373, %v2378
    %v2381 = vmax.f32 %v2379, 0.0
    %v2382 = vmax.f32 %v2380, 0.0
    %s2383 = scalar_lea.vmem [#allocation2], 2048
    %v2384 = vld [vmem:[%s2383] sm:$0xff]
    %v2385 = vld [vmem:[%s2383 + $0x8] sm:$0xff]
    %v2386 = vld [vmem:[%s2383 + $0x10] sm:$0xff]
    %v2387 = vld [vmem:[%s2383 + $0x18] sm:$0xff]
    %v2388 = vld [vmem:[%s2383 + $0x20] sm:$0xff]
    %v2389 = vld [vmem:[%s2383 + $0x28] sm:$0xff]
    %v2390 = vld [vmem:[%s2383 + $0x30] sm:$0xff]
    %v2391 = vld [vmem:[%s2383 + $0x38] sm:$0xff]
    %v2392 = vld [vmem:[%s2383 + $0x40] sm:$0xff]
    %v2393 = vld [vmem:[%s2383 + $0x48] sm:$0xff]
    %v2394 = vld [vmem:[%s2383 + $0x50] sm:$0xff]
    %v2395 = vld [vmem:[%s2383 + $0x58] sm:$0xff]
    %v2396 = vld [vmem:[%s2383 + $0x60] sm:$0xff]
    %v2397 = vld [vmem:[%s2383 + $0x68] sm:$0xff]
    %v2398 = vld [vmem:[%s2383 + $0x70] sm:$0xff]
    %v2399 = vld [vmem:[%s2383 + $0x78] sm:$0xff]
    %v2400 = vld [vmem:[#allocation5 + $0xd] sm:$0x1]
    %v2401 = vlaneseq
    %v2402 = vshrl.u32 %v2401, 7
    %v2403 = vsub.s32 0, %v2402
    %v2404 = vrot.slane %v2400, %v2403
    %2405 = vmatprep.subr.mxu0 0.0
    %2406 = vmatpush1.msra.mxu0 %v2399
    %2407 = vmatprep.subr.mxu0 0.0
    %2408 = vmatpush1.msra.mxu0 %v2398
    %2409 = vmatprep.subr.mxu0 0.0
    %2410 = vmatpush1.msra.mxu0 %v2397
    %2411 = vmatprep.subr.mxu0 0.0
    %2412 = vmatpush1.msra.mxu0 %v2396
    %2413 = vmatprep.subr.mxu0 0.0
    %2414 = vmatpush1.msra.mxu0 %v2395
    %2415 = vmatprep.subr.mxu0 0.0
    %2416 = vmatpush1.msra.mxu0 %v2394
    %2417 = vmatprep.subr.mxu0 0.0
    %2418 = vmatpush1.msra.mxu0 %v2393
    %2419 = vmatprep.subr.mxu0 0.0
    %2420 = vmatpush1.msra.mxu0 %v2392
    %2421 = vmatprep.subr.mxu0 0.0
    %2422 = vmatpush1.msra.mxu0 %v2391
    %2423 = vmatprep.subr.mxu0 0.0
    %2424 = vmatpush1.msra.mxu0 %v2390
    %2425 = vmatprep.subr.mxu0 0.0
    %2426 = vmatpush1.msra.mxu0 %v2389
    %2427 = vmatprep.subr.mxu0 0.0
    %2428 = vmatpush1.msra.mxu0 %v2388
    %2429 = vmatprep.subr.mxu0 0.0
    %2430 = vmatpush1.msra.mxu0 %v2387
    %2431 = vmatprep.subr.mxu0 0.0
    %2432 = vmatpush1.msra.mxu0 %v2386
    %2433 = vmatprep.subr.mxu0 0.0
    %2434 = vmatpush1.msra.mxu0 %v2385
    %2435 = vmatprep.subr.mxu0 0.0
    %2436 = vmatpush1.msra.mxu0 %v2384
    %2437 = vmatprep.subr.mxu0 0.0
    %2438 = vmatpush2.msra.mxu0 0.0
    %2439 = vmatprep.subr.mxu0 0.0
    %2440 = vmatpush2.msra.mxu0 0.0
    %2441 = vmatprep.subr.mxu0 0.0
    %2442 = vmatpush2.msra.mxu0 0.0
    %2443 = vmatprep.subr.mxu0 0.0
    %2444 = vmatpush2.msra.mxu0 0.0
    %2445 = vmatprep.subr.mxu0 0.0
    %2446 = vmatpush2.msra.mxu0 0.0
    %2447 = vmatprep.subr.mxu0 0.0
    %2448 = vmatpush2.msra.mxu0 0.0
    %2449 = vmatprep.subr.mxu0 0.0
    %2450 = vmatpush2.msra.mxu0 0.0
    %2451 = vmatprep.subr.mxu0 0.0
    %2452 = vmatpush2.msra.mxu0 0.0
    %2453 = vmatprep.subr.mxu0 0.0
    %2454 = vmatpush2.msra.mxu0 0.0
    %2455 = vmatprep.subr.mxu0 0.0
    %2456 = vmatpush2.msra.mxu0 0.0
    %2457 = vmatprep.subr.mxu0 0.0
    %2458 = vmatpush2.msra.mxu0 0.0
    %2459 = vmatprep.subr.mxu0 0.0
    %2460 = vmatpush2.msra.mxu0 0.0
    %2461 = vmatprep.subr.mxu0 0.0
    %2462 = vmatpush2.msra.mxu0 0.0
    %2463 = vmatprep.subr.mxu0 0.0
    %2464 = vmatpush2.msra.mxu0 0.0
    %2465 = vmatprep.subr.mxu0 0.0
    %2466 = vmatpush2.msra.mxu0 0.0
    %2467 = vmatprep.subr.mxu0 0.0
    %2468 = vmatpush2.msra.mxu0 0.0
    %2469 = vmatprep.mubr.f32.mxu0 0.0
    %2470 = vmatmul.mubr.f32.gmra.mxu0 %v2381
    %v2471 = vpop.f32.mrf.mxu0
    %v2472 = vadd.f32 %v2404, %v2471
    %v2473 = vpop.f32.mrf.mxu0
    %2474 = vmatprep.mubr.f32.mxu0 0.0
    %2475 = vmatmul.mubr.f32.gmra.mxu0 %v2382
    %v2476 = vpop.f32.mrf.mxu0
    %v2477 = vadd.f32 %v2404, %v2476
    %v2478 = vpop.f32.mrf.mxu0
    %2479 = vdwg.mxu0
    %v2480 = vld [vmem:[#allocation5 + $0xe] sm:$0x1]
    %v2481 = vlaneseq
    %v2482 = vshrl.u32 %v2481, 7
    %v2483 = vsub.s32 0, %v2482
    %v2484 = vrot.slane %v2480, %v2483
    %v2485 = vmul.f32 %v2381, %v2484
    %v2486 = vmul.f32 %v2382, %v2484
    %v2487 = vld [vmem:[#allocation5 + $0xf] sm:$0x1]
    %v2488 = vlaneseq
    %v2489 = vshrl.u32 %v2488, 7
    %v2490 = vsub.s32 0, %v2489
    %v2491 = vrot.slane %v2487, %v2490
    %v2492 = vadd.f32 %v2485, %v2491
    %v2493 = vadd.f32 %v2486, %v2491
    %v2494 = vmax.f32 %v2492, 0.0
    %v2495 = vmax.f32 %v2493, 0.0
    %s2496 = scalar_lea.vmem [#allocation2], 2176
    %v2497 = vld [vmem:[%s2496] sm:$0xff]
    %v2498 = vld [vmem:[%s2496 + $0x8] sm:$0xff]
    %v2499 = vld [vmem:[%s2496 + $0x10] sm:$0xff]
    %v2500 = vld [vmem:[%s2496 + $0x18] sm:$0xff]
    %v2501 = vld [vmem:[%s2496 + $0x20] sm:$0xff]
    %v2502 = vld [vmem:[%s2496 + $0x28] sm:$0xff]
    %v2503 = vld [vmem:[%s2496 + $0x30] sm:$0xff]
    %v2504 = vld [vmem:[%s2496 + $0x38] sm:$0xff]
    %v2505 = vld [vmem:[%s2496 + $0x40] sm:$0xff]
    %v2506 = vld [vmem:[%s2496 + $0x48] sm:$0xff]
    %v2507 = vld [vmem:[%s2496 + $0x50] sm:$0xff]
    %v2508 = vld [vmem:[%s2496 + $0x58] sm:$0xff]
    %v2509 = vld [vmem:[%s2496 + $0x60] sm:$0xff]
    %v2510 = vld [vmem:[%s2496 + $0x68] sm:$0xff]
    %v2511 = vld [vmem:[%s2496 + $0x70] sm:$0xff]
    %v2512 = vld [vmem:[%s2496 + $0x78] sm:$0xff]
    %2513 = vmatprep.subr.mxu0 0.0
    %2514 = vmatpush1.msra.mxu0 %v2512
    %2515 = vmatprep.subr.mxu0 0.0
    %2516 = vmatpush1.msra.mxu0 %v2511
    %2517 = vmatprep.subr.mxu0 0.0
    %2518 = vmatpush1.msra.mxu0 %v2510
    %2519 = vmatprep.subr.mxu0 0.0
    %2520 = vmatpush1.msra.mxu0 %v2509
    %2521 = vmatprep.subr.mxu0 0.0
    %2522 = vmatpush1.msra.mxu0 %v2508
    %2523 = vmatprep.subr.mxu0 0.0
    %2524 = vmatpush1.msra.mxu0 %v2507
    %2525 = vmatprep.subr.mxu0 0.0
    %2526 = vmatpush1.msra.mxu0 %v2506
    %2527 = vmatprep.subr.mxu0 0.0
    %2528 = vmatpush1.msra.mxu0 %v2505
    %2529 = vmatprep.subr.mxu0 0.0
    %2530 = vmatpush1.msra.mxu0 %v2504
    %2531 = vmatprep.subr.mxu0 0.0
    %2532 = vmatpush1.msra.mxu0 %v2503
    %2533 = vmatprep.subr.mxu0 0.0
    %2534 = vmatpush1.msra.mxu0 %v2502
    %2535 = vmatprep.subr.mxu0 0.0
    %2536 = vmatpush1.msra.mxu0 %v2501
    %2537 = vmatprep.subr.mxu0 0.0
    %2538 = vmatpush1.msra.mxu0 %v2500
    %2539 = vmatprep.subr.mxu0 0.0
    %2540 = vmatpush1.msra.mxu0 %v2499
    %2541 = vmatprep.subr.mxu0 0.0
    %2542 = vmatpush1.msra.mxu0 %v2498
    %2543 = vmatprep.subr.mxu0 0.0
    %2544 = vmatpush1.msra.mxu0 %v2497
    %2545 = vmatprep.subr.mxu0 0.0
    %2546 = vmatpush2.msra.mxu0 0.0
    %2547 = vmatprep.subr.mxu0 0.0
    %2548 = vmatpush2.msra.mxu0 0.0
    %2549 = vmatprep.subr.mxu0 0.0
    %2550 = vmatpush2.msra.mxu0 0.0
    %2551 = vmatprep.subr.mxu0 0.0
    %2552 = vmatpush2.msra.mxu0 0.0
    %2553 = vmatprep.subr.mxu0 0.0
    %2554 = vmatpush2.msra.mxu0 0.0
    %2555 = vmatprep.subr.mxu0 0.0
    %2556 = vmatpush2.msra.mxu0 0.0
    %2557 = vmatprep.subr.mxu0 0.0
    %2558 = vmatpush2.msra.mxu0 0.0
    %2559 = vmatprep.subr.mxu0 0.0
    %2560 = vmatpush2.msra.mxu0 0.0
    %2561 = vmatprep.subr.mxu0 0.0
    %2562 = vmatpush2.msra.mxu0 0.0
    %2563 = vmatprep.subr.mxu0 0.0
    %2564 = vmatpush2.msra.mxu0 0.0
    %2565 = vmatprep.subr.mxu0 0.0
    %2566 = vmatpush2.msra.mxu0 0.0
    %2567 = vmatprep.subr.mxu0 0.0
    %2568 = vmatpush2.msra.mxu0 0.0
    %2569 = vmatprep.subr.mxu0 0.0
    %2570 = vmatpush2.msra.mxu0 0.0
    %2571 = vmatprep.subr.mxu0 0.0
    %2572 = vmatpush2.msra.mxu0 0.0
    %2573 = vmatprep.subr.mxu0 0.0
    %2574 = vmatpush2.msra.mxu0 0.0
    %2575 = vmatprep.subr.mxu0 0.0
    %2576 = vmatpush2.msra.mxu0 0.0
    %2577 = vmatprep.mubr.f32.mxu0 0.0
    %2578 = vmatmul.mubr.f32.gmra.mxu0 %v2494
    %v2579 = vpop.f32.mrf.mxu0
    %v2580 = vadd.f32 0.0, %v2579
    %v2581 = vpop.f32.mrf.mxu0
    %2582 = vmatprep.mubr.f32.mxu0 0.0
    %2583 = vmatmul.mubr.f32.gmra.mxu0 %v2495
    %v2584 = vpop.f32.mrf.mxu0
    %v2585 = vadd.f32 0.0, %v2584
    %v2586 = vpop.f32.mrf.mxu0
    %2587 = vdwg.mxu0
    %v2588 = vld [vmem:[#allocation5 + $0x10] sm:$0x1]
    %v2589 = vlaneseq
    %v2590 = vshrl.u32 %v2589, 7
    %v2591 = vsub.s32 0, %v2590
    %v2592 = vrot.slane %v2588, %v2591
    %v2593 = vmul.f32 %v2580, %v2592
    %v2594 = vmul.f32 %v2585, %v2592
    %v2595 = vld [vmem:[#allocation5 + $0x11] sm:$0x1]
    %v2596 = vlaneseq
    %v2597 = vshrl.u32 %v2596, 7
    %v2598 = vsub.s32 0, %v2597
    %v2599 = vrot.slane %v2595, %v2598
    %v2600 = vadd.f32 %v2593, %v2599
    %v2601 = vadd.f32 %v2594, %v2599
    %v2602 = vmax.f32 %v2600, 0.0
    %v2603 = vmax.f32 %v2601, 0.0
    %v2605 = vrot.slane %v2602, 7
    %v2608 = vrot.slane %v2602, 5
    %v2609 = vrot.slane %v2603, 5
    %v2610 = vsel %vm1069, %v2608, %v2609
    %v2612 = vsel %vm1057, 0.0, %v2605
    %v2613 = vsel %vm96, %v2612, 0.0
    %v2614 = vsel %vm1057, 0.0, %v2610
    %v2615 = vsel %vm96, %v2614, 0.0
    %s2616 = scalar_lea.vmem [#allocation2], 2304
    %v2617 = vld [vmem:[%s2616] sm:$0xff]
    %v2618 = vld [vmem:[%s2616 + $0x8] sm:$0xff]
    %v2619 = vld [vmem:[%s2616 + $0x10] sm:$0xff]
    %v2620 = vld [vmem:[%s2616 + $0x18] sm:$0xff]
    %v2621 = vld [vmem:[%s2616 + $0x20] sm:$0xff]
    %v2622 = vld [vmem:[%s2616 + $0x28] sm:$0xff]
    %v2623 = vld [vmem:[%s2616 + $0x30] sm:$0xff]
    %v2624 = vld [vmem:[%s2616 + $0x38] sm:$0xff]
    %v2625 = vld [vmem:[%s2616 + $0x40] sm:$0xff]
    %v2626 = vld [vmem:[%s2616 + $0x48] sm:$0xff]
    %v2627 = vld [vmem:[%s2616 + $0x50] sm:$0xff]
    %v2628 = vld [vmem:[%s2616 + $0x58] sm:$0xff]
    %v2629 = vld [vmem:[%s2616 + $0x60] sm:$0xff]
    %v2630 = vld [vmem:[%s2616 + $0x68] sm:$0xff]
    %v2631 = vld [vmem:[%s2616 + $0x70] sm:$0xff]
    %v2632 = vld [vmem:[%s2616 + $0x78] sm:$0xff]
    %s2633 = scalar_lea.vmem [#allocation2], 2432
    %v2634 = vld [vmem:[%s2633] sm:$0xff]
    %v2635 = vld [vmem:[%s2633 + $0x8] sm:$0xff]
    %v2636 = vld [vmem:[%s2633 + $0x10] sm:$0xff]
    %v2637 = vld [vmem:[%s2633 + $0x18] sm:$0xff]
    %v2638 = vld [vmem:[%s2633 + $0x20] sm:$0xff]
    %v2639 = vld [vmem:[%s2633 + $0x28] sm:$0xff]
    %v2640 = vld [vmem:[%s2633 + $0x30] sm:$0xff]
    %v2641 = vld [vmem:[%s2633 + $0x38] sm:$0xff]
    %v2642 = vld [vmem:[%s2633 + $0x40] sm:$0xff]
    %v2643 = vld [vmem:[%s2633 + $0x48] sm:$0xff]
    %v2644 = vld [vmem:[%s2633 + $0x50] sm:$0xff]
    %v2645 = vld [vmem:[%s2633 + $0x58] sm:$0xff]
    %v2646 = vld [vmem:[%s2633 + $0x60] sm:$0xff]
    %v2647 = vld [vmem:[%s2633 + $0x68] sm:$0xff]
    %v2648 = vld [vmem:[%s2633 + $0x70] sm:$0xff]
    %v2649 = vld [vmem:[%s2633 + $0x78] sm:$0xff]
    %v2652 = vrot.slane %v2613, 1
    %v2653 = vrot.slane %v2615, 1
    %v2654 = vsel %vm96, %v2652, %v2653
    %2657 = vmatprep.subr.mxu0 0.0
    %2658 = vmatpush1.msra.mxu0 %v2649
    %2659 = vmatprep.subr.mxu0 0.0
    %2660 = vmatpush1.msra.mxu0 %v2648
    %2661 = vmatprep.subr.mxu0 0.0
    %2662 = vmatpush1.msra.mxu0 %v2647
    %2663 = vmatprep.subr.mxu0 0.0
    %2664 = vmatpush1.msra.mxu0 %v2646
    %2665 = vmatprep.subr.mxu0 0.0
    %2666 = vmatpush1.msra.mxu0 %v2645
    %2667 = vmatprep.subr.mxu0 0.0
    %2668 = vmatpush1.msra.mxu0 %v2644
    %2669 = vmatprep.subr.mxu0 0.0
    %2670 = vmatpush1.msra.mxu0 %v2643
    %2671 = vmatprep.subr.mxu0 0.0
    %2672 = vmatpush1.msra.mxu0 %v2642
    %2673 = vmatprep.subr.mxu0 0.0
    %2674 = vmatpush1.msra.mxu0 %v2641
    %2675 = vmatprep.subr.mxu0 0.0
    %2676 = vmatpush1.msra.mxu0 %v2640
    %2677 = vmatprep.subr.mxu0 0.0
    %2678 = vmatpush1.msra.mxu0 %v2639
    %2679 = vmatprep.subr.mxu0 0.0
    %2680 = vmatpush1.msra.mxu0 %v2638
    %2681 = vmatprep.subr.mxu0 0.0
    %2682 = vmatpush1.msra.mxu0 %v2637
    %2683 = vmatprep.subr.mxu0 0.0
    %2684 = vmatpush1.msra.mxu0 %v2636
    %2685 = vmatprep.subr.mxu0 0.0
    %2686 = vmatpush1.msra.mxu0 %v2635
    %2687 = vmatprep.subr.mxu0 0.0
    %2688 = vmatpush1.msra.mxu0 %v2634
    %2689 = vmatprep.subr.mxu0 0.0
    %2690 = vmatpush2.msra.mxu0 0.0
    %2691 = vmatprep.subr.mxu0 0.0
    %2692 = vmatpush2.msra.mxu0 0.0
    %2693 = vmatprep.subr.mxu0 0.0
    %2694 = vmatpush2.msra.mxu0 0.0
    %2695 = vmatprep.subr.mxu0 0.0
    %2696 = vmatpush2.msra.mxu0 0.0
    %2697 = vmatprep.subr.mxu0 0.0
    %2698 = vmatpush2.msra.mxu0 0.0
    %2699 = vmatprep.subr.mxu0 0.0
    %2700 = vmatpush2.msra.mxu0 0.0
    %2701 = vmatprep.subr.mxu0 0.0
    %2702 = vmatpush2.msra.mxu0 0.0
    %2703 = vmatprep.subr.mxu0 0.0
    %2704 = vmatpush2.msra.mxu0 0.0
    %2705 = vmatprep.subr.mxu0 0.0
    %2706 = vmatpush2.msra.mxu0 0.0
    %2707 = vmatprep.subr.mxu0 0.0
    %2708 = vmatpush2.msra.mxu0 0.0
    %2709 = vmatprep.subr.mxu0 0.0
    %2710 = vmatpush2.msra.mxu0 0.0
    %2711 = vmatprep.subr.mxu0 0.0
    %2712 = vmatpush2.msra.mxu0 0.0
    %2713 = vmatprep.subr.mxu0 0.0
    %2714 = vmatpush2.msra.mxu0 0.0
    %2715 = vmatprep.subr.mxu0 0.0
    %2716 = vmatpush2.msra.mxu0 0.0
    %2717 = vmatprep.subr.mxu0 0.0
    %2718 = vmatpush2.msra.mxu0 0.0
    %2719 = vmatprep.subr.mxu0 0.0
    %2720 = vmatpush2.msra.mxu0 0.0
    %2721 = vmatprep.mubr.f32.mxu0 0.0
    %2722 = vmatmul.mubr.f32.gmra.mxu0 %v2654
    %v2723 = vpop.f32.mrf.mxu0
    %v2724 = vadd.f32 0.0, %v2723
    %v2725 = vpop.f32.mrf.mxu0
    %2726 = vmatprep.mubr.f32.mxu0 0.0
    %2727 = vmatmul.mubr.f32.gmra.mxu0 %v2653
    %v2728 = vpop.f32.mrf.mxu0
    %v2729 = vadd.f32 0.0, %v2728
    %v2730 = vpop.f32.mrf.mxu0
    %2731 = vdwg.mxu0
    %2732 = vmatprep.subr.mxu0 0.0
    %2733 = vmatpush1.msra.mxu0 %v2632
    %2734 = vmatprep.subr.mxu0 0.0
    %2735 = vmatpush1.msra.mxu0 %v2631
    %2736 = vmatprep.subr.mxu0 0.0
    %2737 = vmatpush1.msra.mxu0 %v2630
    %2738 = vmatprep.subr.mxu0 0.0
    %2739 = vmatpush1.msra.mxu0 %v2629
    %2740 = vmatprep.subr.mxu0 0.0
    %2741 = vmatpush1.msra.mxu0 %v2628
    %2742 = vmatprep.subr.mxu0 0.0
    %2743 = vmatpush1.msra.mxu0 %v2627
    %2744 = vmatprep.subr.mxu0 0.0
    %2745 = vmatpush1.msra.mxu0 %v2626
    %2746 = vmatprep.subr.mxu0 0.0
    %2747 = vmatpush1.msra.mxu0 %v2625
    %2748 = vmatprep.subr.mxu0 0.0
    %2749 = vmatpush1.msra.mxu0 %v2624
    %2750 = vmatprep.subr.mxu0 0.0
    %2751 = vmatpush1.msra.mxu0 %v2623
    %2752 = vmatprep.subr.mxu0 0.0
    %2753 = vmatpush1.msra.mxu0 %v2622
    %2754 = vmatprep.subr.mxu0 0.0
    %2755 = vmatpush1.msra.mxu0 %v2621
    %2756 = vmatprep.subr.mxu0 0.0
    %2757 = vmatpush1.msra.mxu0 %v2620
    %2758 = vmatprep.subr.mxu0 0.0
    %2759 = vmatpush1.msra.mxu0 %v2619
    %2760 = vmatprep.subr.mxu0 0.0
    %2761 = vmatpush1.msra.mxu0 %v2618
    %2762 = vmatprep.subr.mxu0 0.0
    %2763 = vmatpush1.msra.mxu0 %v2617
    %2764 = vmatprep.subr.mxu0 0.0
    %2765 = vmatpush2.msra.mxu0 0.0
    %2766 = vmatprep.subr.mxu0 0.0
    %2767 = vmatpush2.msra.mxu0 0.0
    %2768 = vmatprep.subr.mxu0 0.0
    %2769 = vmatpush2.msra.mxu0 0.0
    %2770 = vmatprep.subr.mxu0 0.0
    %2771 = vmatpush2.msra.mxu0 0.0
    %2772 = vmatprep.subr.mxu0 0.0
    %2773 = vmatpush2.msra.mxu0 0.0
    %2774 = vmatprep.subr.mxu0 0.0
    %2775 = vmatpush2.msra.mxu0 0.0
    %2776 = vmatprep.subr.mxu0 0.0
    %2777 = vmatpush2.msra.mxu0 0.0
    %2778 = vmatprep.subr.mxu0 0.0
    %2779 = vmatpush2.msra.mxu0 0.0
    %2780 = vmatprep.subr.mxu0 0.0
    %2781 = vmatpush2.msra.mxu0 0.0
    %2782 = vmatprep.subr.mxu0 0.0
    %2783 = vmatpush2.msra.mxu0 0.0
    %2784 = vmatprep.subr.mxu0 0.0
    %2785 = vmatpush2.msra.mxu0 0.0
    %2786 = vmatprep.subr.mxu0 0.0
    %2787 = vmatpush2.msra.mxu0 0.0
    %2788 = vmatprep.subr.mxu0 0.0
    %2789 = vmatpush2.msra.mxu0 0.0
    %2790 = vmatprep.subr.mxu0 0.0
    %2791 = vmatpush2.msra.mxu0 0.0
    %2792 = vmatprep.subr.mxu0 0.0
    %2793 = vmatpush2.msra.mxu0 0.0
    %2794 = vmatprep.subr.mxu0 0.0
    %2795 = vmatpush2.msra.mxu0 0.0
    %2796 = vmatprep.mubr.f32.mxu0 0.0
    %2797 = vmatmul.mubr.f32.gmra.mxu0 %v2613
    %v2798 = vpop.f32.mrf.mxu0
    %v2799 = vadd.f32 %v2724, %v2798
    %v2800 = vpop.f32.mrf.mxu0
    %2801 = vmatprep.mubr.f32.mxu0 0.0
    %2802 = vmatmul.mubr.f32.gmra.mxu0 %v2615
    %v2803 = vpop.f32.mrf.mxu0
    %v2804 = vadd.f32 %v2729, %v2803
    %v2805 = vpop.f32.mrf.mxu0
    %2806 = vdwg.mxu0
    %s2807 = scalar_lea.vmem [#allocation2], 2560
    %v2808 = vld [vmem:[%s2807] sm:$0xff]
    %v2809 = vld [vmem:[%s2807 + $0x8] sm:$0xff]
    %v2810 = vld [vmem:[%s2807 + $0x10] sm:$0xff]
    %v2811 = vld [vmem:[%s2807 + $0x18] sm:$0xff]
    %v2812 = vld [vmem:[%s2807 + $0x20] sm:$0xff]
    %v2813 = vld [vmem:[%s2807 + $0x28] sm:$0xff]
    %v2814 = vld [vmem:[%s2807 + $0x30] sm:$0xff]
    %v2815 = vld [vmem:[%s2807 + $0x38] sm:$0xff]
    %v2816 = vld [vmem:[%s2807 + $0x40] sm:$0xff]
    %v2817 = vld [vmem:[%s2807 + $0x48] sm:$0xff]
    %v2818 = vld [vmem:[%s2807 + $0x50] sm:$0xff]
    %v2819 = vld [vmem:[%s2807 + $0x58] sm:$0xff]
    %v2820 = vld [vmem:[%s2807 + $0x60] sm:$0xff]
    %v2821 = vld [vmem:[%s2807 + $0x68] sm:$0xff]
    %v2822 = vld [vmem:[%s2807 + $0x70] sm:$0xff]
    %v2823 = vld [vmem:[%s2807 + $0x78] sm:$0xff]
    %v2824 = vrot.slane %v2613, 2
    %v2825 = vrot.slane %v2615, 2
    %v2826 = vsel %vm321, %v2824, %v2825
    %2829 = vmatprep.subr.mxu0 0.0
    %2830 = vmatpush1.msra.mxu0 %v2823
    %2831 = vmatprep.subr.mxu0 0.0
    %2832 = vmatpush1.msra.mxu0 %v2822
    %2833 = vmatprep.subr.mxu0 0.0
    %2834 = vmatpush1.msra.mxu0 %v2821
    %2835 = vmatprep.subr.mxu0 0.0
    %2836 = vmatpush1.msra.mxu0 %v2820
    %2837 = vmatprep.subr.mxu0 0.0
    %2838 = vmatpush1.msra.mxu0 %v2819
    %2839 = vmatprep.subr.mxu0 0.0
    %2840 = vmatpush1.msra.mxu0 %v2818
    %2841 = vmatprep.subr.mxu0 0.0
    %2842 = vmatpush1.msra.mxu0 %v2817
    %2843 = vmatprep.subr.mxu0 0.0
    %2844 = vmatpush1.msra.mxu0 %v2816
    %2845 = vmatprep.subr.mxu0 0.0
    %2846 = vmatpush1.msra.mxu0 %v2815
    %2847 = vmatprep.subr.mxu0 0.0
    %2848 = vmatpush1.msra.mxu0 %v2814
    %2849 = vmatprep.subr.mxu0 0.0
    %2850 = vmatpush1.msra.mxu0 %v2813
    %2851 = vmatprep.subr.mxu0 0.0
    %2852 = vmatpush1.msra.mxu0 %v2812
    %2853 = vmatprep.subr.mxu0 0.0
    %2854 = vmatpush1.msra.mxu0 %v2811
    %2855 = vmatprep.subr.mxu0 0.0
    %2856 = vmatpush1.msra.mxu0 %v2810
    %2857 = vmatprep.subr.mxu0 0.0
    %2858 = vmatpush1.msra.mxu0 %v2809
    %2859 = vmatprep.subr.mxu0 0.0
    %2860 = vmatpush1.msra.mxu0 %v2808
    %2861 = vmatprep.subr.mxu0 0.0
    %2862 = vmatpush2.msra.mxu0 0.0
    %2863 = vmatprep.subr.mxu0 0.0
    %2864 = vmatpush2.msra.mxu0 0.0
    %2865 = vmatprep.subr.mxu0 0.0
    %2866 = vmatpush2.msra.mxu0 0.0
    %2867 = vmatprep.subr.mxu0 0.0
    %2868 = vmatpush2.msra.mxu0 0.0
    %2869 = vmatprep.subr.mxu0 0.0
    %2870 = vmatpush2.msra.mxu0 0.0
    %2871 = vmatprep.subr.mxu0 0.0
    %2872 = vmatpush2.msra.mxu0 0.0
    %2873 = vmatprep.subr.mxu0 0.0
    %2874 = vmatpush2.msra.mxu0 0.0
    %2875 = vmatprep.subr.mxu0 0.0
    %2876 = vmatpush2.msra.mxu0 0.0
    %2877 = vmatprep.subr.mxu0 0.0
    %2878 = vmatpush2.msra.mxu0 0.0
    %2879 = vmatprep.subr.mxu0 0.0
    %2880 = vmatpush2.msra.mxu0 0.0
    %2881 = vmatprep.subr.mxu0 0.0
    %2882 = vmatpush2.msra.mxu0 0.0
    %2883 = vmatprep.subr.mxu0 0.0
    %2884 = vmatpush2.msra.mxu0 0.0
    %2885 = vmatprep.subr.mxu0 0.0
    %2886 = vmatpush2.msra.mxu0 0.0
    %2887 = vmatprep.subr.mxu0 0.0
    %2888 = vmatpush2.msra.mxu0 0.0
    %2889 = vmatprep.subr.mxu0 0.0
    %2890 = vmatpush2.msra.mxu0 0.0
    %2891 = vmatprep.subr.mxu0 0.0
    %2892 = vmatpush2.msra.mxu0 0.0
    %2893 = vmatprep.mubr.f32.mxu0 0.0
    %2894 = vmatmul.mubr.f32.gmra.mxu0 %v2826
    %v2895 = vpop.f32.mrf.mxu0
    %v2896 = vadd.f32 0.0, %v2895
    %v2897 = vpop.f32.mrf.mxu0
    %2898 = vmatprep.mubr.f32.mxu0 0.0
    %2899 = vmatmul.mubr.f32.gmra.mxu0 %v2825
    %v2900 = vpop.f32.mrf.mxu0
    %v2901 = vadd.f32 0.0, %v2900
    %v2902 = vpop.f32.mrf.mxu0
    %2903 = vdwg.mxu0
    %v2904 = vadd.f32 %v2799, %v2896
    %v2905 = vadd.f32 %v2804, %v2901
    %v2907 = vrot.slane %v2905, 2
    %v2909 = vsel %vm321, %v2904, %v2907
    %v2910 = vld [vmem:[#allocation5 + $0x12] sm:$0x1]
    %v2911 = vlaneseq
    %v2912 = vshrl.u32 %v2911, 7
    %v2913 = vsub.s32 0, %v2912
    %v2914 = vrot.slane %v2910, %v2913
    %v2915 = vmul.f32 %v2909, %v2914
    %v2916 = vmul.f32 %v2907, %v2914
    %v2917 = vld [vmem:[#allocation5 + $0x13] sm:$0x1]
    %v2918 = vlaneseq
    %v2919 = vshrl.u32 %v2918, 7
    %v2920 = vsub.s32 0, %v2919
    %v2921 = vrot.slane %v2917, %v2920
    %v2922 = vadd.f32 %v2915, %v2921
    %v2923 = vadd.f32 %v2916, %v2921
    %v2924 = vmax.f32 %v2922, 0.0
    %v2925 = vmax.f32 %v2923, 0.0
    %s2926 = scalar_lea.vmem [#allocation2], 2688
    %v2927 = vld [vmem:[%s2926] sm:$0xff]
    %v2928 = vld [vmem:[%s2926 + $0x8] sm:$0xff]
    %v2929 = vld [vmem:[%s2926 + $0x10] sm:$0xff]
    %v2930 = vld [vmem:[%s2926 + $0x18] sm:$0xff]
    %v2931 = vld [vmem:[%s2926 + $0x20] sm:$0xff]
    %v2932 = vld [vmem:[%s2926 + $0x28] sm:$0xff]
    %v2933 = vld [vmem:[%s2926 + $0x30] sm:$0xff]
    %v2934 = vld [vmem:[%s2926 + $0x38] sm:$0xff]
    %v2935 = vld [vmem:[%s2926 + $0x40] sm:$0xff]
    %v2936 = vld [vmem:[%s2926 + $0x48] sm:$0xff]
    %v2937 = vld [vmem:[%s2926 + $0x50] sm:$0xff]
    %v2938 = vld [vmem:[%s2926 + $0x58] sm:$0xff]
    %v2939 = vld [vmem:[%s2926 + $0x60] sm:$0xff]
    %v2940 = vld [vmem:[%s2926 + $0x68] sm:$0xff]
    %v2941 = vld [vmem:[%s2926 + $0x70] sm:$0xff]
    %v2942 = vld [vmem:[%s2926 + $0x78] sm:$0xff]
    %2943 = vmatprep.subr.mxu0 0.0
    %2944 = vmatpush1.msra.mxu0 %v2942
    %2945 = vmatprep.subr.mxu0 0.0
    %2946 = vmatpush1.msra.mxu0 %v2941
    %2947 = vmatprep.subr.mxu0 0.0
    %2948 = vmatpush1.msra.mxu0 %v2940
    %2949 = vmatprep.subr.mxu0 0.0
    %2950 = vmatpush1.msra.mxu0 %v2939
    %2951 = vmatprep.subr.mxu0 0.0
    %2952 = vmatpush1.msra.mxu0 %v2938
    %2953 = vmatprep.subr.mxu0 0.0
    %2954 = vmatpush1.msra.mxu0 %v2937
    %2955 = vmatprep.subr.mxu0 0.0
    %2956 = vmatpush1.msra.mxu0 %v2936
    %2957 = vmatprep.subr.mxu0 0.0
    %2958 = vmatpush1.msra.mxu0 %v2935
    %2959 = vmatprep.subr.mxu0 0.0
    %2960 = vmatpush1.msra.mxu0 %v2934
    %2961 = vmatprep.subr.mxu0 0.0
    %2962 = vmatpush1.msra.mxu0 %v2933
    %2963 = vmatprep.subr.mxu0 0.0
    %2964 = vmatpush1.msra.mxu0 %v2932
    %2965 = vmatprep.subr.mxu0 0.0
    %2966 = vmatpush1.msra.mxu0 %v2931
    %2967 = vmatprep.subr.mxu0 0.0
    %2968 = vmatpush1.msra.mxu0 %v2930
    %2969 = vmatprep.subr.mxu0 0.0
    %2970 = vmatpush1.msra.mxu0 %v2929
    %2971 = vmatprep.subr.mxu0 0.0
    %2972 = vmatpush1.msra.mxu0 %v2928
    %2973 = vmatprep.subr.mxu0 0.0
    %2974 = vmatpush1.msra.mxu0 %v2927
    %2975 = vmatprep.subr.mxu0 0.0
    %2976 = vmatpush2.msra.mxu0 0.0
    %2977 = vmatprep.subr.mxu0 0.0
    %2978 = vmatpush2.msra.mxu0 0.0
    %2979 = vmatprep.subr.mxu0 0.0
    %2980 = vmatpush2.msra.mxu0 0.0
    %2981 = vmatprep.subr.mxu0 0.0
    %2982 = vmatpush2.msra.mxu0 0.0
    %2983 = vmatprep.subr.mxu0 0.0
    %2984 = vmatpush2.msra.mxu0 0.0
    %2985 = vmatprep.subr.mxu0 0.0
    %2986 = vmatpush2.msra.mxu0 0.0
    %2987 = vmatprep.subr.mxu0 0.0
    %2988 = vmatpush2.msra.mxu0 0.0
    %2989 = vmatprep.subr.mxu0 0.0
    %2990 = vmatpush2.msra.mxu0 0.0
    %2991 = vmatprep.subr.mxu0 0.0
    %2992 = vmatpush2.msra.mxu0 0.0
    %2993 = vmatprep.subr.mxu0 0.0
    %2994 = vmatpush2.msra.mxu0 0.0
    %2995 = vmatprep.subr.mxu0 0.0
    %2996 = vmatpush2.msra.mxu0 0.0
    %2997 = vmatprep.subr.mxu0 0.0
    %2998 = vmatpush2.msra.mxu0 0.0
    %2999 = vmatprep.subr.mxu0 0.0
    %3000 = vmatpush2.msra.mxu0 0.0
    %3001 = vmatprep.subr.mxu0 0.0
    %3002 = vmatpush2.msra.mxu0 0.0
    %3003 = vmatprep.subr.mxu0 0.0
    %3004 = vmatpush2.msra.mxu0 0.0
    %3005 = vmatprep.subr.mxu0 0.0
    %3006 = vmatpush2.msra.mxu0 0.0
    %3007 = vmatprep.mubr.f32.mxu0 0.0
    %3008 = vmatmul.mubr.f32.gmra.mxu0 %v2924
    %v3009 = vpop.f32.mrf.mxu0
    %v3010 = vadd.f32 0.0, %v3009
    %v3011 = vpop.f32.mrf.mxu0
    %3012 = vmatprep.mubr.f32.mxu0 0.0
    %3013 = vmatmul.mubr.f32.gmra.mxu0 %v2925
    %v3014 = vpop.f32.mrf.mxu0
    %v3015 = vadd.f32 0.0, %v3014
    %v3016 = vpop.f32.mrf.mxu0
    %3017 = vdwg.mxu0
    %v3018 = vadd.f32 %v2472, %v3010
    %v3019 = vadd.f32 %v2477, %v3015
    %vm3020 = vcmp.ge.s32.totalorder %v1626, 3
    %v3021 = vsel %vm3020, 1, 0
    %v3022 = vmul.u32 %v3021, 3
    %v3023 = vsub.s32 %v1626, %v3022
    %v3024 = vmul.u32 %v3023, 2
    %v3025 = vmul.u32 %v3021, 6
    %v3026 = vadd.s32 %v3024, %v3025
    %vm3027 = vcmp.eq.s32.totalorder %v1630, %v3026
    %v3028 = vsel %vm3027, 1, 0
    %v3029 = vcvt.s32.f32 %v3028
    %v3030 = vadd.s32 %v3026, 1
    %vm3031 = vcmp.eq.s32.totalorder %v1630, %v3030
    %v3032 = vsel %vm3031, 1, 0
    %v3033 = vcvt.s32.f32 %v3032
    %vm3034 = vcmask 97280
    %v3036 = vsel %vm3034, %v3029, 0
    %v3039 = vsel %vm596, %v3019, 0
    %3041 = vmatprep.subr.mxu0 0.0
    %3042 = vmatpush1.msra.mxu0 0.0
    %3043 = vmatprep.subr.mxu0 0.0
    %3044 = vmatpush1.msra.mxu0 0.0
    %3045 = vmatprep.subr.mxu0 0.0
    %3046 = vmatpush1.msra.mxu0 0.0
    %3047 = vmatprep.subr.mxu0 0.0
    %3048 = vmatpush1.msra.mxu0 0.0
    %3049 = vmatprep.subr.mxu0 0.0
    %3050 = vmatpush1.msra.mxu0 0.0
    %3051 = vmatprep.subr.mxu0 0.0
    %3052 = vmatpush1.msra.mxu0 0.0
    %3053 = vmatprep.subr.mxu0 0.0
    %3054 = vmatpush1.msra.mxu0 0.0
    %3055 = vmatprep.subr.mxu0 0.0
    %3056 = vmatpush1.msra.mxu0 0.0
    %3057 = vmatprep.subr.mxu0 0.0
    %3058 = vmatpush1.msra.mxu0 0.0
    %3059 = vmatprep.subr.mxu0 0.0
    %3060 = vmatpush1.msra.mxu0 0.0
    %3061 = vmatprep.subr.mxu0 0.0
    %3062 = vmatpush1.msra.mxu0 0.0
    %3063 = vmatprep.subr.mxu0 0.0
    %3064 = vmatpush1.msra.mxu0 0.0
    %3065 = vmatprep.subr.mxu0 0.0
    %3066 = vmatpush1.msra.mxu0 0.0
    %3067 = vmatprep.subr.mxu0 0.0
    %3068 = vmatpush1.msra.mxu0 0.0
    %3069 = vmatprep.subr.mxu0 0.0
    %3070 = vmatpush1.msra.mxu0 %v3039
    %3071 = vmatprep.subr.mxu0 0.0
    %3072 = vmatpush1.msra.mxu0 %v3018
    %3073 = vmatprep.subr.mxu0 0.0
    %3074 = vmatpush2.msra.mxu0 0.0
    %3075 = vmatprep.subr.mxu0 0.0
    %3076 = vmatpush2.msra.mxu0 0.0
    %3077 = vmatprep.subr.mxu0 0.0
    %3078 = vmatpush2.msra.mxu0 0.0
    %3079 = vmatprep.subr.mxu0 0.0
    %3080 = vmatpush2.msra.mxu0 0.0
    %3081 = vmatprep.subr.mxu0 0.0
    %3082 = vmatpush2.msra.mxu0 0.0
    %3083 = vmatprep.subr.mxu0 0.0
    %3084 = vmatpush2.msra.mxu0 0.0
    %3085 = vmatprep.subr.mxu0 0.0
    %3086 = vmatpush2.msra.mxu0 0.0
    %3087 = vmatprep.subr.mxu0 0.0
    %3088 = vmatpush2.msra.mxu0 0.0
    %3089 = vmatprep.subr.mxu0 0.0
    %3090 = vmatpush2.msra.mxu0 0.0
    %3091 = vmatprep.subr.mxu0 0.0
    %3092 = vmatpush2.msra.mxu0 0.0
    %3093 = vmatprep.subr.mxu0 0.0
    %3094 = vmatpush2.msra.mxu0 0.0
    %3095 = vmatprep.subr.mxu0 0.0
    %3096 = vmatpush2.msra.mxu0 0.0
    %3097 = vmatprep.subr.mxu0 0.0
    %3098 = vmatpush2.msra.mxu0 0.0
    %3099 = vmatprep.subr.mxu0 0.0
    %3100 = vmatpush2.msra.mxu0 0.0
    %3101 = vmatprep.subr.mxu0 0.0
    %3102 = vmatpush2.msra.mxu0 0.0
    %3103 = vmatprep.subr.mxu0 0.0
    %3104 = vmatpush2.msra.mxu0 0.0
    %3105 = vmatprep.mubr.f32.mxu0 0.0
    %3106 = vmatmul.mubr.f32.gmra.mxu0 %v3036
    %v3107 = vpop.f32.mrf.mxu0
    %v3108 = vadd.f32 0.0, %v3107
    %v3109 = vpop.f32.mrf.mxu0
    %3110 = vdwg.mxu0
    %v3112 = vsel %vm3034, %v3033, 0
    %3114 = vmatprep.subr.mxu0 0.0
    %3115 = vmatpush1.msra.mxu0 0.0
    %3116 = vmatprep.subr.mxu0 0.0
    %3117 = vmatpush1.msra.mxu0 0.0
    %3118 = vmatprep.subr.mxu0 0.0
    %3119 = vmatpush1.msra.mxu0 0.0
    %3120 = vmatprep.subr.mxu0 0.0
    %3121 = vmatpush1.msra.mxu0 0.0
    %3122 = vmatprep.subr.mxu0 0.0
    %3123 = vmatpush1.msra.mxu0 0.0
    %3124 = vmatprep.subr.mxu0 0.0
    %3125 = vmatpush1.msra.mxu0 0.0
    %3126 = vmatprep.subr.mxu0 0.0
    %3127 = vmatpush1.msra.mxu0 0.0
    %3128 = vmatprep.subr.mxu0 0.0
    %3129 = vmatpush1.msra.mxu0 0.0
    %3130 = vmatprep.subr.mxu0 0.0
    %3131 = vmatpush1.msra.mxu0 0.0
    %3132 = vmatprep.subr.mxu0 0.0
    %3133 = vmatpush1.msra.mxu0 0.0
    %3134 = vmatprep.subr.mxu0 0.0
    %3135 = vmatpush1.msra.mxu0 0.0
    %3136 = vmatprep.subr.mxu0 0.0
    %3137 = vmatpush1.msra.mxu0 0.0
    %3138 = vmatprep.subr.mxu0 0.0
    %3139 = vmatpush1.msra.mxu0 0.0
    %3140 = vmatprep.subr.mxu0 0.0
    %3141 = vmatpush1.msra.mxu0 0.0
    %3142 = vmatprep.subr.mxu0 0.0
    %3143 = vmatpush1.msra.mxu0 %v3039
    %3144 = vmatprep.subr.mxu0 0.0
    %3145 = vmatpush1.msra.mxu0 %v3018
    %3146 = vmatprep.subr.mxu0 0.0
    %3147 = vmatpush2.msra.mxu0 0.0
    %3148 = vmatprep.subr.mxu0 0.0
    %3149 = vmatpush2.msra.mxu0 0.0
    %3150 = vmatprep.subr.mxu0 0.0
    %3151 = vmatpush2.msra.mxu0 0.0
    %3152 = vmatprep.subr.mxu0 0.0
    %3153 = vmatpush2.msra.mxu0 0.0
    %3154 = vmatprep.subr.mxu0 0.0
    %3155 = vmatpush2.msra.mxu0 0.0
    %3156 = vmatprep.subr.mxu0 0.0
    %3157 = vmatpush2.msra.mxu0 0.0
    %3158 = vmatprep.subr.mxu0 0.0
    %3159 = vmatpush2.msra.mxu0 0.0
    %3160 = vmatprep.subr.mxu0 0.0
    %3161 = vmatpush2.msra.mxu0 0.0
    %3162 = vmatprep.subr.mxu0 0.0
    %3163 = vmatpush2.msra.mxu0 0.0
    %3164 = vmatprep.subr.mxu0 0.0
    %3165 = vmatpush2.msra.mxu0 0.0
    %3166 = vmatprep.subr.mxu0 0.0
    %3167 = vmatpush2.msra.mxu0 0.0
    %3168 = vmatprep.subr.mxu0 0.0
    %3169 = vmatpush2.msra.mxu0 0.0
    %3170 = vmatprep.subr.mxu0 0.0
    %3171 = vmatpush2.msra.mxu0 0.0
    %3172 = vmatprep.subr.mxu0 0.0
    %3173 = vmatpush2.msra.mxu0 0.0
    %3174 = vmatprep.subr.mxu0 0.0
    %3175 = vmatpush2.msra.mxu0 0.0
    %3176 = vmatprep.subr.mxu0 0.0
    %3177 = vmatpush2.msra.mxu0 0.0
    %3178 = vmatprep.mubr.f32.mxu0 0.0
    %3179 = vmatmul.mubr.f32.gmra.mxu0 %v3112
    %v3180 = vpop.f32.mrf.mxu0
    %v3181 = vadd.f32 0.0, %v3180
    %v3182 = vpop.f32.mrf.mxu0
    %3183 = vdwg.mxu0
    %v3184 = vmax.f32 %v3108, %v3181
    %s3185 = scalar_lea.vmem [#allocation2], 2816
    %v3186 = vld [vmem:[%s3185] sm:$0xff]
    %v3187 = vld [vmem:[%s3185 + $0x8] sm:$0xff]
    %v3188 = vld [vmem:[%s3185 + $0x10] sm:$0xff]
    %v3189 = vld [vmem:[%s3185 + $0x18] sm:$0xff]
    %v3190 = vld [vmem:[%s3185 + $0x20] sm:$0xff]
    %v3191 = vld [vmem:[%s3185 + $0x28] sm:$0xff]
    %v3192 = vld [vmem:[%s3185 + $0x30] sm:$0xff]
    %v3193 = vld [vmem:[%s3185 + $0x38] sm:$0xff]
    %v3194 = vld [vmem:[%s3185 + $0x40] sm:$0xff]
    %v3195 = vld [vmem:[%s3185 + $0x48] sm:$0xff]
    %v3196 = vld [vmem:[%s3185 + $0x50] sm:$0xff]
    %v3197 = vld [vmem:[%s3185 + $0x58] sm:$0xff]
    %v3198 = vld [vmem:[%s3185 + $0x60] sm:$0xff]
    %v3199 = vld [vmem:[%s3185 + $0x68] sm:$0xff]
    %v3200 = vld [vmem:[%s3185 + $0x70] sm:$0xff]
    %v3201 = vld [vmem:[%s3185 + $0x78] sm:$0xff]
    %s3202 = scalar_lea.vmem [#allocation2], 2944
    %v3203 = vld [vmem:[%s3202] sm:$0xff]
    %v3204 = vld [vmem:[%s3202 + $0x8] sm:$0xff]
    %v3205 = vld [vmem:[%s3202 + $0x10] sm:$0xff]
    %v3206 = vld [vmem:[%s3202 + $0x18] sm:$0xff]
    %v3207 = vld [vmem:[%s3202 + $0x20] sm:$0xff]
    %v3208 = vld [vmem:[%s3202 + $0x28] sm:$0xff]
    %v3209 = vld [vmem:[%s3202 + $0x30] sm:$0xff]
    %v3210 = vld [vmem:[%s3202 + $0x38] sm:$0xff]
    %v3211 = vld [vmem:[%s3202 + $0x40] sm:$0xff]
    %v3212 = vld [vmem:[%s3202 + $0x48] sm:$0xff]
    %v3213 = vld [vmem:[%s3202 + $0x50] sm:$0xff]
    %v3214 = vld [vmem:[%s3202 + $0x58] sm:$0xff]
    %v3215 = vld [vmem:[%s3202 + $0x60] sm:$0xff]
    %v3216 = vld [vmem:[%s3202 + $0x68] sm:$0xff]
    %v3217 = vld [vmem:[%s3202 + $0x70] sm:$0xff]
    %v3218 = vld [vmem:[%s3202 + $0x78] sm:$0xff]
    %v3220 = vrot.slane %v3184, 1
    %3222 = vmatprep.subr.mxu0 0.0
    %3223 = vmatpush1.msra.mxu0 %v3218
    %3224 = vmatprep.subr.mxu0 0.0
    %3225 = vmatpush1.msra.mxu0 %v3217
    %3226 = vmatprep.subr.mxu0 0.0
    %3227 = vmatpush1.msra.mxu0 %v3216
    %3228 = vmatprep.subr.mxu0 0.0
    %3229 = vmatpush1.msra.mxu0 %v3215
    %3230 = vmatprep.subr.mxu0 0.0
    %3231 = vmatpush1.msra.mxu0 %v3214
    %3232 = vmatprep.subr.mxu0 0.0
    %3233 = vmatpush1.msra.mxu0 %v3213
    %3234 = vmatprep.subr.mxu0 0.0
    %3235 = vmatpush1.msra.mxu0 %v3212
    %3236 = vmatprep.subr.mxu0 0.0
    %3237 = vmatpush1.msra.mxu0 %v3211
    %3238 = vmatprep.subr.mxu0 0.0
    %3239 = vmatpush1.msra.mxu0 %v3210
    %3240 = vmatprep.subr.mxu0 0.0
    %3241 = vmatpush1.msra.mxu0 %v3209
    %3242 = vmatprep.subr.mxu0 0.0
    %3243 = vmatpush1.msra.mxu0 %v3208
    %3244 = vmatprep.subr.mxu0 0.0
    %3245 = vmatpush1.msra.mxu0 %v3207
    %3246 = vmatprep.subr.mxu0 0.0
    %3247 = vmatpush1.msra.mxu0 %v3206
    %3248 = vmatprep.subr.mxu0 0.0
    %3249 = vmatpush1.msra.mxu0 %v3205
    %3250 = vmatprep.subr.mxu0 0.0
    %3251 = vmatpush1.msra.mxu0 %v3204
    %3252 = vmatprep.subr.mxu0 0.0
    %3253 = vmatpush1.msra.mxu0 %v3203
    %3254 = vmatprep.subr.mxu0 0.0
    %3255 = vmatpush2.msra.mxu0 0.0
    %3256 = vmatprep.subr.mxu0 0.0
    %3257 = vmatpush2.msra.mxu0 0.0
    %3258 = vmatprep.subr.mxu0 0.0
    %3259 = vmatpush2.msra.mxu0 0.0
    %3260 = vmatprep.subr.mxu0 0.0
    %3261 = vmatpush2.msra.mxu0 0.0
    %3262 = vmatprep.subr.mxu0 0.0
    %3263 = vmatpush2.msra.mxu0 0.0
    %3264 = vmatprep.subr.mxu0 0.0
    %3265 = vmatpush2.msra.mxu0 0.0
    %3266 = vmatprep.subr.mxu0 0.0
    %3267 = vmatpush2.msra.mxu0 0.0
    %3268 = vmatprep.subr.mxu0 0.0
    %3269 = vmatpush2.msra.mxu0 0.0
    %3270 = vmatprep.subr.mxu0 0.0
    %3271 = vmatpush2.msra.mxu0 0.0
    %3272 = vmatprep.subr.mxu0 0.0
    %3273 = vmatpush2.msra.mxu0 0.0
    %3274 = vmatprep.subr.mxu0 0.0
    %3275 = vmatpush2.msra.mxu0 0.0
    %3276 = vmatprep.subr.mxu0 0.0
    %3277 = vmatpush2.msra.mxu0 0.0
    %3278 = vmatprep.subr.mxu0 0.0
    %3279 = vmatpush2.msra.mxu0 0.0
    %3280 = vmatprep.subr.mxu0 0.0
    %3281 = vmatpush2.msra.mxu0 0.0
    %3282 = vmatprep.subr.mxu0 0.0
    %3283 = vmatpush2.msra.mxu0 0.0
    %3284 = vmatprep.subr.mxu0 0.0
    %3285 = vmatpush2.msra.mxu0 0.0
    %3286 = vmatprep.mubr.f32.mxu0 0.0
    %3287 = vmatmul.mubr.f32.gmra.mxu0 %v3220
    %v3288 = vpop.f32.mrf.mxu0
    %v3289 = vadd.f32 0.0, %v3288
    %v3290 = vpop.f32.mrf.mxu0
    %3291 = vdwg.mxu0
    %3292 = vmatprep.subr.mxu0 0.0
    %3293 = vmatpush1.msra.mxu0 %v3201
    %3294 = vmatprep.subr.mxu0 0.0
    %3295 = vmatpush1.msra.mxu0 %v3200
    %3296 = vmatprep.subr.mxu0 0.0
    %3297 = vmatpush1.msra.mxu0 %v3199
    %3298 = vmatprep.subr.mxu0 0.0
    %3299 = vmatpush1.msra.mxu0 %v3198
    %3300 = vmatprep.subr.mxu0 0.0
    %3301 = vmatpush1.msra.mxu0 %v3197
    %3302 = vmatprep.subr.mxu0 0.0
    %3303 = vmatpush1.msra.mxu0 %v3196
    %3304 = vmatprep.subr.mxu0 0.0
    %3305 = vmatpush1.msra.mxu0 %v3195
    %3306 = vmatprep.subr.mxu0 0.0
    %3307 = vmatpush1.msra.mxu0 %v3194
    %3308 = vmatprep.subr.mxu0 0.0
    %3309 = vmatpush1.msra.mxu0 %v3193
    %3310 = vmatprep.subr.mxu0 0.0
    %3311 = vmatpush1.msra.mxu0 %v3192
    %3312 = vmatprep.subr.mxu0 0.0
    %3313 = vmatpush1.msra.mxu0 %v3191
    %3314 = vmatprep.subr.mxu0 0.0
    %3315 = vmatpush1.msra.mxu0 %v3190
    %3316 = vmatprep.subr.mxu0 0.0
    %3317 = vmatpush1.msra.mxu0 %v3189
    %3318 = vmatprep.subr.mxu0 0.0
    %3319 = vmatpush1.msra.mxu0 %v3188
    %3320 = vmatprep.subr.mxu0 0.0
    %3321 = vmatpush1.msra.mxu0 %v3187
    %3322 = vmatprep.subr.mxu0 0.0
    %3323 = vmatpush1.msra.mxu0 %v3186
    %3324 = vmatprep.subr.mxu0 0.0
    %3325 = vmatpush2.msra.mxu0 0.0
    %3326 = vmatprep.subr.mxu0 0.0
    %3327 = vmatpush2.msra.mxu0 0.0
    %3328 = vmatprep.subr.mxu0 0.0
    %3329 = vmatpush2.msra.mxu0 0.0
    %3330 = vmatprep.subr.mxu0 0.0
    %3331 = vmatpush2.msra.mxu0 0.0
    %3332 = vmatprep.subr.mxu0 0.0
    %3333 = vmatpush2.msra.mxu0 0.0
    %3334 = vmatprep.subr.mxu0 0.0
    %3335 = vmatpush2.msra.mxu0 0.0
    %3336 = vmatprep.subr.mxu0 0.0
    %3337 = vmatpush2.msra.mxu0 0.0
    %3338 = vmatprep.subr.mxu0 0.0
    %3339 = vmatpush2.msra.mxu0 0.0
    %3340 = vmatprep.subr.mxu0 0.0
    %3341 = vmatpush2.msra.mxu0 0.0
    %3342 = vmatprep.subr.mxu0 0.0
    %3343 = vmatpush2.msra.mxu0 0.0
    %3344 = vmatprep.subr.mxu0 0.0
    %3345 = vmatpush2.msra.mxu0 0.0
    %3346 = vmatprep.subr.mxu0 0.0
    %3347 = vmatpush2.msra.mxu0 0.0
    %3348 = vmatprep.subr.mxu0 0.0
    %3349 = vmatpush2.msra.mxu0 0.0
    %3350 = vmatprep.subr.mxu0 0.0
    %3351 = vmatpush2.msra.mxu0 0.0
    %3352 = vmatprep.subr.mxu0 0.0
    %3353 = vmatpush2.msra.mxu0 0.0
    %3354 = vmatprep.subr.mxu0 0.0
    %3355 = vmatpush2.msra.mxu0 0.0
    %3356 = vmatprep.mubr.f32.mxu0 0.0
    %3357 = vmatmul.mubr.f32.gmra.mxu0 %v3184
    %v3358 = vpop.f32.mrf.mxu0
    %v3359 = vadd.f32 %v3289, %v3358
    %v3360 = vpop.f32.mrf.mxu0
    %3361 = vdwg.mxu0
    %s3362 = scalar_lea.vmem [#allocation2], 3072
    %v3363 = vld [vmem:[%s3362] sm:$0xff]
    %v3364 = vld [vmem:[%s3362 + $0x8] sm:$0xff]
    %v3365 = vld [vmem:[%s3362 + $0x10] sm:$0xff]
    %v3366 = vld [vmem:[%s3362 + $0x18] sm:$0xff]
    %v3367 = vld [vmem:[%s3362 + $0x20] sm:$0xff]
    %v3368 = vld [vmem:[%s3362 + $0x28] sm:$0xff]
    %v3369 = vld [vmem:[%s3362 + $0x30] sm:$0xff]
    %v3370 = vld [vmem:[%s3362 + $0x38] sm:$0xff]
    %v3371 = vld [vmem:[%s3362 + $0x40] sm:$0xff]
    %v3372 = vld [vmem:[%s3362 + $0x48] sm:$0xff]
    %v3373 = vld [vmem:[%s3362 + $0x50] sm:$0xff]
    %v3374 = vld [vmem:[%s3362 + $0x58] sm:$0xff]
    %v3375 = vld [vmem:[%s3362 + $0x60] sm:$0xff]
    %v3376 = vld [vmem:[%s3362 + $0x68] sm:$0xff]
    %v3377 = vld [vmem:[%s3362 + $0x70] sm:$0xff]
    %v3378 = vld [vmem:[%s3362 + $0x78] sm:$0xff]
    %v3379 = vrot.slane %v3184, 2
    %3381 = vmatprep.subr.mxu0 0.0
    %3382 = vmatpush1.msra.mxu0 %v3378
    %3383 = vmatprep.subr.mxu0 0.0
    %3384 = vmatpush1.msra.mxu0 %v3377
    %3385 = vmatprep.subr.mxu0 0.0
    %3386 = vmatpush1.msra.mxu0 %v3376
    %3387 = vmatprep.subr.mxu0 0.0
    %3388 = vmatpush1.msra.mxu0 %v3375
    %3389 = vmatprep.subr.mxu0 0.0
    %3390 = vmatpush1.msra.mxu0 %v3374
    %3391 = vmatprep.subr.mxu0 0.0
    %3392 = vmatpush1.msra.mxu0 %v3373
    %3393 = vmatprep.subr.mxu0 0.0
    %3394 = vmatpush1.msra.mxu0 %v3372
    %3395 = vmatprep.subr.mxu0 0.0
    %3396 = vmatpush1.msra.mxu0 %v3371
    %3397 = vmatprep.subr.mxu0 0.0
    %3398 = vmatpush1.msra.mxu0 %v3370
    %3399 = vmatprep.subr.mxu0 0.0
    %3400 = vmatpush1.msra.mxu0 %v3369
    %3401 = vmatprep.subr.mxu0 0.0
    %3402 = vmatpush1.msra.mxu0 %v3368
    %3403 = vmatprep.subr.mxu0 0.0
    %3404 = vmatpush1.msra.mxu0 %v3367
    %3405 = vmatprep.subr.mxu0 0.0
    %3406 = vmatpush1.msra.mxu0 %v3366
    %3407 = vmatprep.subr.mxu0 0.0
    %3408 = vmatpush1.msra.mxu0 %v3365
    %3409 = vmatprep.subr.mxu0 0.0
    %3410 = vmatpush1.msra.mxu0 %v3364
    %3411 = vmatprep.subr.mxu0 0.0
    %3412 = vmatpush1.msra.mxu0 %v3363
    %3413 = vmatprep.subr.mxu0 0.0
    %3414 = vmatpush2.msra.mxu0 0.0
    %3415 = vmatprep.subr.mxu0 0.0
    %3416 = vmatpush2.msra.mxu0 0.0
    %3417 = vmatprep.subr.mxu0 0.0
    %3418 = vmatpush2.msra.mxu0 0.0
    %3419 = vmatprep.subr.mxu0 0.0
    %3420 = vmatpush2.msra.mxu0 0.0
    %3421 = vmatprep.subr.mxu0 0.0
    %3422 = vmatpush2.msra.mxu0 0.0
    %3423 = vmatprep.subr.mxu0 0.0
    %3424 = vmatpush2.msra.mxu0 0.0
    %3425 = vmatprep.subr.mxu0 0.0
    %3426 = vmatpush2.msra.mxu0 0.0
    %3427 = vmatprep.subr.mxu0 0.0
    %3428 = vmatpush2.msra.mxu0 0.0
    %3429 = vmatprep.subr.mxu0 0.0
    %3430 = vmatpush2.msra.mxu0 0.0
    %3431 = vmatprep.subr.mxu0 0.0
    %3432 = vmatpush2.msra.mxu0 0.0
    %3433 = vmatprep.subr.mxu0 0.0
    %3434 = vmatpush2.msra.mxu0 0.0
    %3435 = vmatprep.subr.mxu0 0.0
    %3436 = vmatpush2.msra.mxu0 0.0
    %3437 = vmatprep.subr.mxu0 0.0
    %3438 = vmatpush2.msra.mxu0 0.0
    %3439 = vmatprep.subr.mxu0 0.0
    %3440 = vmatpush2.msra.mxu0 0.0
    %3441 = vmatprep.subr.mxu0 0.0
    %3442 = vmatpush2.msra.mxu0 0.0
    %3443 = vmatprep.subr.mxu0 0.0
    %3444 = vmatpush2.msra.mxu0 0.0
    %3445 = vmatprep.mubr.f32.mxu0 0.0
    %3446 = vmatmul.mubr.f32.gmra.mxu0 %v3379
    %v3447 = vpop.f32.mrf.mxu0
    %v3448 = vadd.f32 0.0, %v3447
    %v3449 = vpop.f32.mrf.mxu0
    %3450 = vdwg.mxu0
    %v3451 = vadd.f32 %v3359, %v3448
    %v3453 = vrot.slane %v3451, 2
    %v3455 = vsel %vm1057, %v3451, %v3453
    %v3456 = vld [vmem:[#allocation5 + $0x14] sm:$0x1]
    %v3457 = vlaneseq
    %v3458 = vshrl.u32 %v3457, 7
    %v3459 = vsub.s32 0, %v3458
    %v3460 = vrot.slane %v3456, %v3459
    %v3461 = vadd.f32 %v3455, %v3460
    %v3462 = vld [vmem:[#allocation5 + $0x15] sm:$0x1]
    %v3463 = vlaneseq
    %v3464 = vshrl.u32 %v3463, 7
    %v3465 = vsub.s32 0, %v3464
    %v3466 = vrot.slane %v3462, %v3465
    %v3467 = vmul.f32 %v3461, %v3466
    %v3468 = vld [vmem:[#allocation5 + $0x16] sm:$0x1]
    %v3469 = vlaneseq
    %v3470 = vshrl.u32 %v3469, 7
    %v3471 = vsub.s32 0, %v3470
    %v3472 = vrot.slane %v3468, %v3471
    %v3473 = vadd.f32 %v3467, %v3472
    %v3474 = vmax.f32 %v3473, 0.0
    %s3475 = scalar_lea.vmem [#allocation2], 3200
    %v3476 = vld [vmem:[%s3475] sm:$0xff]
    %v3477 = vld [vmem:[%s3475 + $0x8] sm:$0xff]
    %v3478 = vld [vmem:[%s3475 + $0x10] sm:$0xff]
    %v3479 = vld [vmem:[%s3475 + $0x18] sm:$0xff]
    %v3480 = vld [vmem:[%s3475 + $0x20] sm:$0xff]
    %v3481 = vld [vmem:[%s3475 + $0x28] sm:$0xff]
    %v3482 = vld [vmem:[%s3475 + $0x30] sm:$0xff]
    %v3483 = vld [vmem:[%s3475 + $0x38] sm:$0xff]
    %v3484 = vld [vmem:[%s3475 + $0x40] sm:$0xff]
    %v3485 = vld [vmem:[%s3475 + $0x48] sm:$0xff]
    %v3486 = vld [vmem:[%s3475 + $0x50] sm:$0xff]
    %v3487 = vld [vmem:[%s3475 + $0x58] sm:$0xff]
    %v3488 = vld [vmem:[%s3475 + $0x60] sm:$0xff]
    %v3489 = vld [vmem:[%s3475 + $0x68] sm:$0xff]
    %v3490 = vld [vmem:[%s3475 + $0x70] sm:$0xff]
    %v3491 = vld [vmem:[%s3475 + $0x78] sm:$0xff]
    %v3492 = vld [vmem:[#allocation5 + $0x17] sm:$0x1]
    %v3493 = vlaneseq
    %v3494 = vshrl.u32 %v3493, 7
    %v3495 = vsub.s32 0, %v3494
    %v3496 = vrot.slane %v3492, %v3495
    %3497 = vmatprep.subr.mxu0 0.0
    %3498 = vmatpush1.msra.mxu0 %v3491
    %3499 = vmatprep.subr.mxu0 0.0
    %3500 = vmatpush1.msra.mxu0 %v3490
    %3501 = vmatprep.subr.mxu0 0.0
    %3502 = vmatpush1.msra.mxu0 %v3489
    %3503 = vmatprep.subr.mxu0 0.0
    %3504 = vmatpush1.msra.mxu0 %v3488
    %3505 = vmatprep.subr.mxu0 0.0
    %3506 = vmatpush1.msra.mxu0 %v3487
    %3507 = vmatprep.subr.mxu0 0.0
    %3508 = vmatpush1.msra.mxu0 %v3486
    %3509 = vmatprep.subr.mxu0 0.0
    %3510 = vmatpush1.msra.mxu0 %v3485
    %3511 = vmatprep.subr.mxu0 0.0
    %3512 = vmatpush1.msra.mxu0 %v3484
    %3513 = vmatprep.subr.mxu0 0.0
    %3514 = vmatpush1.msra.mxu0 %v3483
    %3515 = vmatprep.subr.mxu0 0.0
    %3516 = vmatpush1.msra.mxu0 %v3482
    %3517 = vmatprep.subr.mxu0 0.0
    %3518 = vmatpush1.msra.mxu0 %v3481
    %3519 = vmatprep.subr.mxu0 0.0
    %3520 = vmatpush1.msra.mxu0 %v3480
    %3521 = vmatprep.subr.mxu0 0.0
    %3522 = vmatpush1.msra.mxu0 %v3479
    %3523 = vmatprep.subr.mxu0 0.0
    %3524 = vmatpush1.msra.mxu0 %v3478
    %3525 = vmatprep.subr.mxu0 0.0
    %3526 = vmatpush1.msra.mxu0 %v3477
    %3527 = vmatprep.subr.mxu0 0.0
    %3528 = vmatpush1.msra.mxu0 %v3476
    %3529 = vmatprep.subr.mxu0 0.0
    %3530 = vmatpush2.msra.mxu0 0.0
    %3531 = vmatprep.subr.mxu0 0.0
    %3532 = vmatpush2.msra.mxu0 0.0
    %3533 = vmatprep.subr.mxu0 0.0
    %3534 = vmatpush2.msra.mxu0 0.0
    %3535 = vmatprep.subr.mxu0 0.0
    %3536 = vmatpush2.msra.mxu0 0.0
    %3537 = vmatprep.subr.mxu0 0.0
    %3538 = vmatpush2.msra.mxu0 0.0
    %3539 = vmatprep.subr.mxu0 0.0
    %3540 = vmatpush2.msra.mxu0 0.0
    %3541 = vmatprep.subr.mxu0 0.0
    %3542 = vmatpush2.msra.mxu0 0.0
    %3543 = vmatprep.subr.mxu0 0.0
    %3544 = vmatpush2.msra.mxu0 0.0
    %3545 = vmatprep.subr.mxu0 0.0
    %3546 = vmatpush2.msra.mxu0 0.0
    %3547 = vmatprep.subr.mxu0 0.0
    %3548 = vmatpush2.msra.mxu0 0.0
    %3549 = vmatprep.subr.mxu0 0.0
    %3550 = vmatpush2.msra.mxu0 0.0
    %3551 = vmatprep.subr.mxu0 0.0
    %3552 = vmatpush2.msra.mxu0 0.0
    %3553 = vmatprep.subr.mxu0 0.0
    %3554 = vmatpush2.msra.mxu0 0.0
    %3555 = vmatprep.subr.mxu0 0.0
    %3556 = vmatpush2.msra.mxu0 0.0
    %3557 = vmatprep.subr.mxu0 0.0
    %3558 = vmatpush2.msra.mxu0 0.0
    %3559 = vmatprep.subr.mxu0 0.0
    %3560 = vmatpush2.msra.mxu0 0.0
    %3561 = vmatprep.mubr.f32.mxu0 0.0
    %3562 = vmatmul.mubr.f32.gmra.mxu0 %v3474
    %v3563 = vpop.f32.mrf.mxu0
    %v3564 = vadd.f32 %v3496, %v3563
    %v3565 = vpop.f32.mrf.mxu0
    %3566 = vdwg.mxu0
    %v3567 = vmax.f32 %v3564, 0.0
    %s3568 = scalar_lea.vmem [#allocation2], 3328
    %v3569 = vld [vmem:[%s3568] sm:$0xff]
    %v3570 = vld [vmem:[%s3568 + $0x8] sm:$0xff]
    %v3571 = vld [vmem:[%s3568 + $0x10] sm:$0xff]
    %v3572 = vld [vmem:[%s3568 + $0x18] sm:$0xff]
    %v3573 = vld [vmem:[%s3568 + $0x20] sm:$0xff]
    %v3574 = vld [vmem:[%s3568 + $0x28] sm:$0xff]
    %v3575 = vld [vmem:[%s3568 + $0x30] sm:$0xff]
    %v3576 = vld [vmem:[%s3568 + $0x38] sm:$0xff]
    %v3577 = vld [vmem:[%s3568 + $0x40] sm:$0xff]
    %v3578 = vld [vmem:[%s3568 + $0x48] sm:$0xff]
    %v3579 = vld [vmem:[%s3568 + $0x50] sm:$0xff]
    %v3580 = vld [vmem:[%s3568 + $0x58] sm:$0xff]
    %v3581 = vld [vmem:[%s3568 + $0x60] sm:$0xff]
    %v3582 = vld [vmem:[%s3568 + $0x68] sm:$0xff]
    %v3583 = vld [vmem:[%s3568 + $0x70] sm:$0xff]
    %v3584 = vld [vmem:[%s3568 + $0x78] sm:$0xff]
    %v3585 = vld [vmem:[#allocation5 + $0x18] sm:$0x1]
    %v3586 = vlaneseq
    %v3587 = vshrl.u32 %v3586, 7
    %v3588 = vsub.s32 0, %v3587
    %v3589 = vrot.slane %v3585, %v3588
    %3590 = vmatprep.subr.mxu0 0.0
    %3591 = vmatpush1.msra.mxu0 %v3584
    %3592 = vmatprep.subr.mxu0 0.0
    %3593 = vmatpush1.msra.mxu0 %v3583
    %3594 = vmatprep.subr.mxu0 0.0
    %3595 = vmatpush1.msra.mxu0 %v3582
    %3596 = vmatprep.subr.mxu0 0.0
    %3597 = vmatpush1.msra.mxu0 %v3581
    %3598 = vmatprep.subr.mxu0 0.0
    %3599 = vmatpush1.msra.mxu0 %v3580
    %3600 = vmatprep.subr.mxu0 0.0
    %3601 = vmatpush1.msra.mxu0 %v3579
    %3602 = vmatprep.subr.mxu0 0.0
    %3603 = vmatpush1.msra.mxu0 %v3578
    %3604 = vmatprep.subr.mxu0 0.0
    %3605 = vmatpush1.msra.mxu0 %v3577
    %3606 = vmatprep.subr.mxu0 0.0
    %3607 = vmatpush1.msra.mxu0 %v3576
    %3608 = vmatprep.subr.mxu0 0.0
    %3609 = vmatpush1.msra.mxu0 %v3575
    %3610 = vmatprep.subr.mxu0 0.0
    %3611 = vmatpush1.msra.mxu0 %v3574
    %3612 = vmatprep.subr.mxu0 0.0
    %3613 = vmatpush1.msra.mxu0 %v3573
    %3614 = vmatprep.subr.mxu0 0.0
    %3615 = vmatpush1.msra.mxu0 %v3572
    %3616 = vmatprep.subr.mxu0 0.0
    %3617 = vmatpush1.msra.mxu0 %v3571
    %3618 = vmatprep.subr.mxu0 0.0
    %3619 = vmatpush1.msra.mxu0 %v3570
    %3620 = vmatprep.subr.mxu0 0.0
    %3621 = vmatpush1.msra.mxu0 %v3569
    %3622 = vmatprep.subr.mxu0 0.0
    %3623 = vmatpush2.msra.mxu0 0.0
    %3624 = vmatprep.subr.mxu0 0.0
    %3625 = vmatpush2.msra.mxu0 0.0
    %3626 = vmatprep.subr.mxu0 0.0
    %3627 = vmatpush2.msra.mxu0 0.0
    %3628 = vmatprep.subr.mxu0 0.0
    %3629 = vmatpush2.msra.mxu0 0.0
    %3630 = vmatprep.subr.mxu0 0.0
    %3631 = vmatpush2.msra.mxu0 0.0
    %3632 = vmatprep.subr.mxu0 0.0
    %3633 = vmatpush2.msra.mxu0 0.0
    %3634 = vmatprep.subr.mxu0 0.0
    %3635 = vmatpush2.msra.mxu0 0.0
    %3636 = vmatprep.subr.mxu0 0.0
    %3637 = vmatpush2.msra.mxu0 0.0
    %3638 = vmatprep.subr.mxu0 0.0
    %3639 = vmatpush2.msra.mxu0 0.0
    %3640 = vmatprep.subr.mxu0 0.0
    %3641 = vmatpush2.msra.mxu0 0.0
    %3642 = vmatprep.subr.mxu0 0.0
    %3643 = vmatpush2.msra.mxu0 0.0
    %3644 = vmatprep.subr.mxu0 0.0
    %3645 = vmatpush2.msra.mxu0 0.0
    %3646 = vmatprep.subr.mxu0 0.0
    %3647 = vmatpush2.msra.mxu0 0.0
    %3648 = vmatprep.subr.mxu0 0.0
    %3649 = vmatpush2.msra.mxu0 0.0
    %3650 = vmatprep.subr.mxu0 0.0
    %3651 = vmatpush2.msra.mxu0 0.0
    %3652 = vmatprep.subr.mxu0 0.0
    %3653 = vmatpush2.msra.mxu0 0.0
    %3654 = vmatprep.mubr.f32.mxu0 0.0
    %3655 = vmatmul.mubr.f32.gmra.mxu0 %v3567
    %v3656 = vpop.f32.mrf.mxu0
    %v3657 = vadd.f32 %v3589, %v3656
    %v3658 = vpop.f32.mrf.mxu0
    %3659 = vdwg.mxu0
    %3660 = vst [vmem:[#allocation7] sm:$0x3] %v3657
    // Predicated region
    $region22: #{manifoldnet_res_forward.1} parent=1 // pred_check
      _
    $region23: #{manifoldnet_res_forward.1} parent=1 // pred_check_branch
      %3662 = sbr.rel (0) target = $region25
    $region24: #{manifoldnet_res_forward.1} parent=1 // pred_region
      %s3664 = ssub.s32 32, 32
      %3665 = vsyncadd [#allocation4], %s3664
      %s3667 = sshll.u32 [#allocation7], 4
      %s3668 = int_to_ptr.vmem [resolvable:$true] %s3667
      %3670 = dma.vmem_to_hbm [thread:$0]  %s3668, 32, %s3, [#allocation4]
    $region25: #{manifoldnet_res_forward.1} parent=1 // pred_fallthru
      _
    // Predicated region
    $region26: #{manifoldnet_res_forward.1} parent=1 // pred_check
      _
    $region27: #{manifoldnet_res_forward.1} parent=1 // pred_check_branch
      %3672 = sbr.rel (0) target = $region29
    $region28: #{manifoldnet_res_forward.1} parent=1 // pred_region
      %3673 = dma.done [#allocation4], 32
    $region29: #{manifoldnet_res_forward.1} parent=1 // pred_fallthru
      _
    %3674 = vsyncpa [#allocation3], 1
    %3675 = vsyncpa [#allocation6], 1
    %3676 = vsyncpa [#allocation4], 1

</llo_original>
